<compile_context>
chip_gen: v7x
topology: tpu7x:2x2x1
jax: 0.10.0
libtpu: 0.0.40
codegen_flags: <defaults>
</compile_context>

<pallas_src>
import math
import jax
import jax.numpy as jnp
from jax.experimental import pallas as pl
from jax.experimental.pallas import tpu as pltpu

NEG_INF = -1e30


def _layernorm(x, g, b, eps=1e-5):
    mu = jnp.mean(x, axis=-1, keepdims=True)
    var = jnp.mean((x - mu) ** 2, axis=-1, keepdims=True)
    return (x - mu) * jax.lax.rsqrt(var + eps) * g + b


def _softmax_lastdim(x):
    # in-kernel softmax: divide moved to EUP via approx reciprocal
    m = jnp.max(x, axis=-1, keepdims=True)
    e = jnp.exp(x - m)
    return e * pl.reciprocal(jnp.sum(e, axis=-1, keepdims=True), approx=True)


def satt_kernel(xe_ref, pe_ref, mask_ref, tdec_ref,
                wq_ref, bq_ref, wk_ref, bk_ref, wv_ref, bv_ref,
                eow_ref, eob_ref,
                ff1w_ref, ff1b_ref, ff2w_ref, ff2b_ref,
                n1g_ref, n1b_ref, n2g_ref, n2b_ref, nfg_ref, nfb_ref,
                wqd_ref, bqd_ref, wkd_ref, bkd_ref,
                outm_ref,
                out_ref):
    TB, L, H = xe_ref.shape
    M = TB * L
    scale = 1.0 / math.sqrt(H)

    xe = xe_ref[...]                                   # (TB, L, H) raw embeddings, f32
    pe = pe_ref[...]                                   # (L, H)
    mask = mask_ref[...].reshape(TB, L)                # 1.0 where src == 0 (padding)
    pad = mask > 0.5

    x = xe + pe[None, :, :]                            # PositionalEncoding (dropout = id)
    xm = x.reshape(M, H)                               # flatten: MXU sees M = TB*L rows
    xm_bf = xm.astype(jnp.bfloat16)

    # ---------------- transformer encoder layer (1 head, post-norm) ----------
    # three separate projections (no 32-lane column slicing of a fused result)
    q = jnp.dot(xm_bf, wq_ref[...], preferred_element_type=jnp.float32) + bq_ref[...]
    k = jnp.dot(xm_bf, wk_ref[...], preferred_element_type=jnp.float32) + bk_ref[...]
    v = jnp.dot(xm_bf, wv_ref[...], preferred_element_type=jnp.float32) + bv_ref[...]
    qb = (q * scale).astype(jnp.bfloat16).reshape(TB, L, H)
    kb = k.astype(jnp.bfloat16).reshape(TB, L, H)
    vb = v.astype(jnp.bfloat16).reshape(TB, L, H)

    scores = jnp.einsum('bqh,bkh->bqk', qb, kb,
                        preferred_element_type=jnp.float32)               # (TB, L, L)
    scores = jnp.where(pad[:, None, :], NEG_INF, scores)                  # key padding mask
    attn = _softmax_lastdim(scores)
    sa = jnp.einsum('bqk,bkh->bqh', attn.astype(jnp.bfloat16), vb,
                    preferred_element_type=jnp.float32).reshape(M, H)
    sa = jnp.dot(sa.astype(jnp.bfloat16), eow_ref[...],
                 preferred_element_type=jnp.float32) + eob_ref[...]

    x1 = _layernorm(xm + sa, n1g_ref[...], n1b_ref[...])

    # FFN: bf16 MXU operands, f32 accumulation; elementwise chain in f32
    h = jnp.dot(x1.astype(jnp.bfloat16), ff1w_ref[...],
                preferred_element_type=jnp.float32) + ff1b_ref[...]
    h = jnp.maximum(h, 0.0)                                               # ReLU
    ff = jnp.dot(h.astype(jnp.bfloat16), ff2w_ref[...],
                 preferred_element_type=jnp.float32) + ff2b_ref[...]

    x2 = _layernorm(x1 + ff, n2g_ref[...], n2b_ref[...])
    xenc = _layernorm(x2, nfg_ref[...], nfb_ref[...])                     # final encoder norm

    # -------------- decoder MultiheadAttention (softmax weights only) --------
    # kept in f32: tiny matmuls feeding the 1000x-amplified decay/softmax path
    trg = xe[:, L - 1, :]                                                 # (TB, H)
    qd = (jnp.dot(trg, wqd_ref[...], preferred_element_type=jnp.float32)
          + bqd_ref[...]) * scale                                         # (TB, H)
    kd = (jnp.dot(xenc, wkd_ref[...], preferred_element_type=jnp.float32)
          + bkd_ref[...]).reshape(TB, L, H)
    sc = jnp.sum(qd[:, None, :] * kd, axis=-1)                            # (TB, L)
    sc = jnp.where(pad, NEG_INF, sc)
    w = _softmax_lastdim(sc)

    alpha = w * (1.0 - mask)                                              # weight * src_mask_neg

    # -------------- decay kernel 'exp' (precomputed in wrapper) --------------
    beta = alpha * tdec_ref[...].reshape(TB, L)
    gamma = _softmax_lastdim(jnp.where(pad, NEG_INF, beta))               # softmax over L

    d_out = jnp.sum(gamma[:, :, None] * xe, axis=1)                       # (TB, H) f32
    out = jnp.dot(d_out.astype(jnp.bfloat16), outm_ref[...],
                  preferred_element_type=jnp.float32)                     # (TB, V)
    # lane-dense writeback: one (1, 1, TB*V) slab per grid step
    out_ref[...] = out.reshape(1, 1, TB * out.shape[-1])


def satt_forward_pallas(src, t, params, tb=None):
    B, L = src.shape
    emb = params['emb']
    V, H = emb.shape

    # Target ~1024 rows (tb*L) per grid step, but keep >= 2 grid steps so both
    # v7x TensorCores get work under dimension_semantics=("parallel",).
    if tb is None:
        tb = max(1, min(max(1, 1024 // L), (B + 1) // 2))
    Bp = ((B + tb - 1) // tb) * tb
    if Bp != B:
        padn = Bp - B
        # pad with non-padding token id 1 and t=0 so softmaxes stay finite
        src = jnp.concatenate([src, jnp.ones((padn, L), src.dtype)], axis=0)
        t = jnp.concatenate([t, jnp.zeros((padn, L), t.dtype)], axis=0)

    # Glue (plain JAX): embedding gather, mask construction, decay precompute.
    x_embed = emb[src]                                        # (Bp, L, H)
    mask = (src == 0).astype(jnp.float32).reshape(Bp, 1, L)
    a = params['decay'][0, 0]
    b = params['decay'][1, 0]
    tdec = (1000.0 * jnp.exp(-a * t.astype(jnp.float32)) + b).reshape(Bp, 1, L)

    # One-time weight layout prep in XLA: per-projection transposes + bf16 casts.
    bf = jnp.bfloat16
    e_inw = params['e_inw']
    wq = e_inw[0:H].T.astype(bf)                              # (H, H)
    wk = e_inw[H:2 * H].T.astype(bf)
    wv = e_inw[2 * H:3 * H].T.astype(bf)
    bq = params['e_inb'][0:1]                                 # (1, H)
    bk = params['e_inb'][1:2]
    bv = params['e_inb'][2:3]
    eow = params['e_outw'].T.astype(bf)                       # (H, H)
    eob = params['e_outb']                                    # (1, H)
    ff1w = params['ff1_w'].T.astype(bf)                       # (H, F)
    ff2w = params['ff2_w'].T.astype(bf)                       # (F, H)
    wqd = params['d_inw'][0:H].T                              # (H, H)  f32 (sensitive path)
    wkd = params['d_inw'][H:2 * H].T                          # (H, H)  f32
    bqd = params['d_inb'][0:1]                                # (1, H)
    bkd = params['d_inb'][1:2]                                # (1, H)
    outm = emb.T.astype(bf)                                   # (H, V) shared embedding

    def per_batch(shape):
        nd = len(shape)
        return pl.BlockSpec(shape, lambda i, nd=nd: (i,) + (0,) * (nd - 1))

    def shared(arr):
        nd = arr.ndim
        return pl.BlockSpec(arr.shape, lambda i, nd=nd: (0,) * nd)

    in_arrays = [x_embed, params['pe'], mask, tdec,
                 wq, bq, wk, bk, wv, bv,
                 eow, eob,
                 ff1w, params['ff1_b'], ff2w, params['ff2_b'],
                 params['n1_g'], params['n1_b'], params['n2_g'], params['n2_b'],
                 params['nf_g'], params['nf_b'],
                 wqd, bqd, wkd, bkd,
                 outm]

    in_specs = [per_batch((tb, L, H)),        # x_embed
                shared(params['pe']),         # positional encoding
                per_batch((tb, 1, L)),        # padding mask
                per_batch((tb, 1, L))]        # precomputed decay
    in_specs += [shared(a) for a in in_arrays[4:]]

    G = Bp // tb
    out = pl.pallas_call(
        satt_kernel,
        grid=(G,),
        in_specs=in_specs,
        out_specs=pl.BlockSpec((1, 1, tb * V), lambda i: (i, 0, 0)),
        out_shape=jax.ShapeDtypeStruct((G, 1, tb * V), jnp.float32),
        compiler_params=pltpu.CompilerParams(
            dimension_semantics=("parallel",),
            vmem_limit_bytes=48 * 1024 * 1024),
    )(*in_arrays)
    return out.reshape(Bp, V)[:B]


# ----------------------------- pure-JAX reference -----------------------------
def satt_forward_ref(src, t, params):
    emb = params['emb']
    V, H = emb.shape
    scale = 1.0 / math.sqrt(H)
    x_embed = emb[src]
    mask = src == 0
    x = x_embed + params['pe'][None]

    Wq, Wk, Wv = params['e_inw'][0:H], params['e_inw'][H:2 * H], params['e_inw'][2 * H:]
    bq, bk, bv = params['e_inb'][0], params['e_inb'][1], params['e_inb'][2]
    q = x @ Wq.T + bq
    k = x @ Wk.T + bk
    v = x @ Wv.T + bv
    scores = jnp.einsum('blh,bmh->blm', q, k) * scale
    scores = jnp.where(mask[:, None, :], NEG_INF, scores)
    attn = jax.nn.softmax(scores, axis=-1)
    sa = jnp.einsum('blm,bmh->blh', attn, v)
    sa = sa @ params['e_outw'].T + params['e_outb'][0]
    x1 = _layernorm(x + sa, params['n1_g'][0], params['n1_b'][0])
    h = jnp.maximum(x1 @ params['ff1_w'].T + params['ff1_b'][0], 0.0)
    ff = h @ params['ff2_w'].T + params['ff2_b'][0]
    x2 = _layernorm(x1 + ff, params['n2_g'][0], params['n2_b'][0])
    xenc = _layernorm(x2, params['nf_g'][0], params['nf_b'][0])

    Wqd, Wkd = params['d_inw'][0:H], params['d_inw'][H:2 * H]
    bqd, bkd = params['d_inb'][0], params['d_inb'][1]
    trg = x_embed[:, -1, :]
    qd = (trg @ Wqd.T + bqd) * scale
    kd = xenc @ Wkd.T + bkd
    sc = jnp.einsum('bh,blh->bl', qd, kd)
    sc = jnp.where(mask, NEG_INF, sc)
    w = jax.nn.softmax(sc, axis=-1)
    alpha = w * (~mask).astype(jnp.float32)
    a = params['decay'][0, 0]
    b = params['decay'][1, 0]
    tdec = 1000.0 * jnp.exp(-a * t) + b
    beta = alpha * tdec
    gamma = jax.nn.softmax(jnp.where(mask, NEG_INF, beta), axis=-1)
    d = jnp.einsum('bl,blh->bh', gamma, x_embed)
    return d @ emb.T


def make_pe(max_len, d_model):
    position = jnp.arange(max_len, dtype=jnp.float32)[:, None]
    div_term = jnp.exp(jnp.arange(0, d_model, 2, dtype=jnp.float32)
                       * (-math.log(10000.0) / d_model))
    pe = jnp.zeros((max_len, d_model), jnp.float32)
    pe = pe.at[:, 0::2].set(jnp.sin(position * div_term))
    pe = pe.at[:, 1::2].set(jnp.cos(position * div_term))
    return pe


if __name__ == "__main__":
    # input_size (vocab) = 32, hidden_size = 32, window_size (seq) = 8, batch = 2,
    # num_heads = 1, num_layers = 1, dim_feedforward = 2048 (hard-coded in SATT),
    # kernel_type = 'exp-1' -> K = 1, shared_embedding = True, contextualize_opt = None.
    B, L, H, V, F_ff = 2, 8, 32, 32, 2048

    key = jax.random.PRNGKey(0)
    keys = jax.random.split(key, 16)

    def w(k, shape, scale=0.05):
        return (scale * jax.random.normal(k, shape)).astype(jnp.float32)

    emb = w(keys[0], (V, H), 0.1).at[0].set(0.0)          # padding_idx = 0 row is zero
    params = dict(
        emb=emb,
        pe=make_pe(L, H),
        e_inw=w(keys[1], (3 * H, H)), e_inb=w(keys[2], (3, H), 0.01),
        e_outw=w(keys[3], (H, H)),    e_outb=w(keys[4], (1, H), 0.01),
        ff1_w=w(keys[5], (F_ff, H)),  ff1_b=w(keys[6], (1, F_ff), 0.01),
        ff2_w=w(keys[7], (H, F_ff)),  ff2_b=w(keys[8], (1, H), 0.01),
        n1_g=jnp.ones((1, H), jnp.float32), n1_b=jnp.zeros((1, H), jnp.float32),
        n2_g=jnp.ones((1, H), jnp.float32), n2_b=jnp.zeros((1, H), jnp.float32),
        nf_g=jnp.ones((1, H), jnp.float32), nf_b=jnp.zeros((1, H), jnp.float32),
        d_inw=w(keys[9], (3 * H, H)), d_inb=w(keys[10], (3, H), 0.01),
        decay=jnp.array([[0.005], [0.3]], jnp.float32),   # 'exp' kernel params (a, b)
    )

    src = jax.random.randint(keys[11], (B, L), 1, V)
    src = src.at[0, 1].set(0).at[1, 0].set(0)             # a few padding tokens
    t = jax.random.uniform(keys[12], (B, L), jnp.float32, 0.0, 10.0)
    # `features` argument of SATT.forward is unused by the forward pass.

    out = jax.block_until_ready(satt_forward_pallas(src, t, params))
    ref = satt_forward_ref(src, t, params)

    assert out.shape == (B, V)
    assert bool(jnp.all(jnp.isfinite(out)))
    assert bool(jnp.allclose(out, ref, rtol=2e-2, atol=2e-2)), \
        f"mismatch: max abs err {jnp.max(jnp.abs(out - ref))}"
    print("KERNEL_OK")
</pallas_src>

<mosaic_0001>
module attributes {stable_mosaic.version = 11 : i64} {
  func.func @satt_kernel(%arg0: i32, %arg1: memref<1x8x32xf32, #tpu.memory_space<vmem>>, %arg2: memref<8x32xf32, #tpu.memory_space<vmem>>, %arg3: memref<1x1x8xf32, #tpu.memory_space<vmem>>, %arg4: memref<1x1x8xf32, #tpu.memory_space<vmem>>, %arg5: memref<32x32xbf16, #tpu.memory_space<vmem>>, %arg6: memref<1x32xf32, #tpu.memory_space<vmem>>, %arg7: memref<32x32xbf16, #tpu.memory_space<vmem>>, %arg8: memref<1x32xf32, #tpu.memory_space<vmem>>, %arg9: memref<32x32xbf16, #tpu.memory_space<vmem>>, %arg10: memref<1x32xf32, #tpu.memory_space<vmem>>, %arg11: memref<32x32xbf16, #tpu.memory_space<vmem>>, %arg12: memref<1x32xf32, #tpu.memory_space<vmem>>, %arg13: memref<32x2048xbf16, #tpu.memory_space<vmem>>, %arg14: memref<1x2048xf32, #tpu.memory_space<vmem>>, %arg15: memref<2048x32xbf16, #tpu.memory_space<vmem>>, %arg16: memref<1x32xf32, #tpu.memory_space<vmem>>, %arg17: memref<1x32xf32, #tpu.memory_space<vmem>>, %arg18: memref<1x32xf32, #tpu.memory_space<vmem>>, %arg19: memref<1x32xf32, #tpu.memory_space<vmem>>, %arg20: memref<1x32xf32, #tpu.memory_space<vmem>>, %arg21: memref<1x32xf32, #tpu.memory_space<vmem>>, %arg22: memref<1x32xf32, #tpu.memory_space<vmem>>, %arg23: memref<32x32xf32, #tpu.memory_space<vmem>>, %arg24: memref<1x32xf32, #tpu.memory_space<vmem>>, %arg25: memref<32x32xf32, #tpu.memory_space<vmem>>, %arg26: memref<1x32xf32, #tpu.memory_space<vmem>>, %arg27: memref<32x32xbf16, #tpu.memory_space<vmem>>, %arg28: memref<1x1x32xf32, #tpu.memory_space<vmem>>) attributes {dimension_semantics = [#tpu.dimension_semantics<parallel>], iteration_bounds = array<i64: 2>, scalar_prefetch = 0 : i64, scratch_operands = 0 : i64, tpu.core_type = #tpu.core_type<tc>, window_params = [{transform_indices = @transform_0, window_bounds = array<i64: 1, 8, 32>}, {pipeline_mode = #tpu.pipeline_mode<synchronous>, transform_indices = @transform_1, window_bounds = array<i64: 8, 32>}, {transform_indices = @transform_2, window_bounds = array<i64: 1, 1, 8>}, {transform_indices = @transform_3, window_bounds = array<i64: 1, 1, 8>}, {pipeline_mode = #tpu.pipeline_mode<synchronous>, transform_indices = @transform_4, window_bounds = array<i64: 32, 32>}, {pipeline_mode = #tpu.pipeline_mode<synchronous>, transform_indices = @transform_5, window_bounds = array<i64: 1, 32>}, {pipeline_mode = #tpu.pipeline_mode<synchronous>, transform_indices = @transform_6, window_bounds = array<i64: 32, 32>}, {pipeline_mode = #tpu.pipeline_mode<synchronous>, transform_indices = @transform_7, window_bounds = array<i64: 1, 32>}, {pipeline_mode = #tpu.pipeline_mode<synchronous>, transform_indices = @transform_8, window_bounds = array<i64: 32, 32>}, {pipeline_mode = #tpu.pipeline_mode<synchronous>, transform_indices = @transform_9, window_bounds = array<i64: 1, 32>}, {pipeline_mode = #tpu.pipeline_mode<synchronous>, transform_indices = @transform_10, window_bounds = array<i64: 32, 32>}, {pipeline_mode = #tpu.pipeline_mode<synchronous>, transform_indices = @transform_11, window_bounds = array<i64: 1, 32>}, {pipeline_mode = #tpu.pipeline_mode<synchronous>, transform_indices = @transform_12, window_bounds = array<i64: 32, 2048>}, {pipeline_mode = #tpu.pipeline_mode<synchronous>, transform_indices = @transform_13, window_bounds = array<i64: 1, 2048>}, {pipeline_mode = #tpu.pipeline_mode<synchronous>, transform_indices = @transform_14, window_bounds = array<i64: 2048, 32>}, {pipeline_mode = #tpu.pipeline_mode<synchronous>, transform_indices = @transform_15, window_bounds = array<i64: 1, 32>}, {pipeline_mode = #tpu.pipeline_mode<synchronous>, transform_indices = @transform_16, window_bounds = array<i64: 1, 32>}, {pipeline_mode = #tpu.pipeline_mode<synchronous>, transform_indices = @transform_17, window_bounds = array<i64: 1, 32>}, {pipeline_mode = #tpu.pipeline_mode<synchronous>, transform_indices = @transform_18, window_bounds = array<i64: 1, 32>}, {pipeline_mode = #tpu.pipeline_mode<synchronous>, transform_indices = @transform_19, window_bounds = array<i64: 1, 32>}, {pipeline_mode = #tpu.pipeline_mode<synchronous>, transform_indices = @transform_20, window_bounds = array<i64: 1, 32>}, {pipeline_mode = #tpu.pipeline_mode<synchronous>, transform_indices = @transform_21, window_bounds = array<i64: 1, 32>}, {pipeline_mode = #tpu.pipeline_mode<synchronous>, transform_indices = @transform_22, window_bounds = array<i64: 32, 32>}, {pipeline_mode = #tpu.pipeline_mode<synchronous>, transform_indices = @transform_23, window_bounds = array<i64: 1, 32>}, {pipeline_mode = #tpu.pipeline_mode<synchronous>, transform_indices = @transform_24, window_bounds = array<i64: 32, 32>}, {pipeline_mode = #tpu.pipeline_mode<synchronous>, transform_indices = @transform_25, window_bounds = array<i64: 1, 32>}, {pipeline_mode = #tpu.pipeline_mode<synchronous>, transform_indices = @transform_26, window_bounds = array<i64: 32, 32>}, {transform_indices = @transform_27, window_bounds = array<i64: 1, 1, 32>}]} {
    %c0 = arith.constant 0 : index
    %c0_0 = arith.constant 0 : index
    %c0_1 = arith.constant 0 : index
    %0 = vector.load %arg1[%c0, %c0_0, %c0_1] : memref<1x8x32xf32, #tpu.memory_space<vmem>>, vector<1x8x32xf32>
    %c0_2 = arith.constant 0 : index
    %c0_3 = arith.constant 0 : index
    %1 = vector.load %arg2[%c0_2, %c0_3] : memref<8x32xf32, #tpu.memory_space<vmem>>, vector<8x32xf32>
    %c0_4 = arith.constant 0 : index
    %c0_5 = arith.constant 0 : index
    %c0_6 = arith.constant 0 : index
    %2 = vector.load %arg3[%c0_4, %c0_5, %c0_6] : memref<1x1x8xf32, #tpu.memory_space<vmem>>, vector<1x1x8xf32>
    %3 = vector.shape_cast %2 : vector<1x1x8xf32> to vector<1x8xf32>
    %cst = arith.constant 5.000000e-01 : f32
    %4 = vector.broadcast %cst : f32 to vector<1x8xf32>
    %5 = arith.cmpf ogt, %3, %4 : vector<1x8xf32>
    %6 = vector.shape_cast %1 : vector<8x32xf32> to vector<1x8x32xf32>
    %7 = arith.addf %0, %6 : vector<1x8x32xf32>
    %8 = vector.shape_cast %7 : vector<1x8x32xf32> to vector<8x32xf32>
    %9 = arith.truncf %8 : vector<8x32xf32> to vector<8x32xbf16>
    %c0_7 = arith.constant 0 : index
    %c0_8 = arith.constant 0 : index
    %10 = vector.load %arg5[%c0_7, %c0_8] : memref<32x32xbf16, #tpu.memory_space<vmem>>, vector<32x32xbf16>
    %cst_9 = arith.constant dense<0.000000e+00> : vector<8x32xf32>
    %11 = tpu.matmul %9, %10, %cst_9 {dimension_numbers = #tpu.dot_dimension_numbers<[1], [0], [0], [1], [0, 0, 1, 1], [], []>} : vector<8x32xbf16>, vector<32x32xbf16>, vector<8x32xf32> -> vector<8x32xf32>
    %c0_10 = arith.constant 0 : index
    %c0_11 = arith.constant 0 : index
    %12 = vector.load %arg6[%c0_10, %c0_11] : memref<1x32xf32, #tpu.memory_space<vmem>>, vector<1x32xf32>
    %13 = vector.broadcast %12 : vector<1x32xf32> to vector<8x32xf32>
    %14 = arith.addf %11, %13 : vector<8x32xf32>
    %c0_12 = arith.constant 0 : index
    %c0_13 = arith.constant 0 : index
    %15 = vector.load %arg7[%c0_12, %c0_13] : memref<32x32xbf16, #tpu.memory_space<vmem>>, vector<32x32xbf16>
    %cst_14 = arith.constant dense<0.000000e+00> : vector<8x32xf32>
    %16 = tpu.matmul %9, %15, %cst_14 {dimension_numbers = #tpu.dot_dimension_numbers<[1], [0], [0], [1], [0, 0, 1, 1], [], []>} : vector<8x32xbf16>, vector<32x32xbf16>, vector<8x32xf32> -> vector<8x32xf32>
    %c0_15 = arith.constant 0 : index
    %c0_16 = arith.constant 0 : index
    %17 = vector.load %arg8[%c0_15, %c0_16] : memref<1x32xf32, #tpu.memory_space<vmem>>, vector<1x32xf32>
    %18 = vector.broadcast %17 : vector<1x32xf32> to vector<8x32xf32>
    %19 = arith.addf %16, %18 : vector<8x32xf32>
    %c0_17 = arith.constant 0 : index
    %c0_18 = arith.constant 0 : index
    %20 = vector.load %arg9[%c0_17, %c0_18] : memref<32x32xbf16, #tpu.memory_space<vmem>>, vector<32x32xbf16>
    %cst_19 = arith.constant dense<0.000000e+00> : vector<8x32xf32>
    %21 = tpu.matmul %9, %20, %cst_19 {dimension_numbers = #tpu.dot_dimension_numbers<[1], [0], [0], [1], [0, 0, 1, 1], [], []>} : vector<8x32xbf16>, vector<32x32xbf16>, vector<8x32xf32> -> vector<8x32xf32>
    %c0_20 = arith.constant 0 : index
    %c0_21 = arith.constant 0 : index
    %22 = vector.load %arg10[%c0_20, %c0_21] : memref<1x32xf32, #tpu.memory_space<vmem>>, vector<1x32xf32>
    %23 = vector.broadcast %22 : vector<1x32xf32> to vector<8x32xf32>
    %24 = arith.addf %21, %23 : vector<8x32xf32>
    %cst_22 = arith.constant 0.176776692 : f32
    %25 = vector.broadcast %cst_22 : f32 to vector<8x32xf32>
    %26 = arith.mulf %14, %25 : vector<8x32xf32>
    %27 = arith.truncf %26 : vector<8x32xf32> to vector<8x32xbf16>
    %28 = vector.shape_cast %27 : vector<8x32xbf16> to vector<1x8x32xbf16>
    %29 = arith.truncf %19 : vector<8x32xf32> to vector<8x32xbf16>
    %30 = vector.shape_cast %29 : vector<8x32xbf16> to vector<1x8x32xbf16>
    %31 = arith.truncf %24 : vector<8x32xf32> to vector<8x32xbf16>
    %32 = vector.shape_cast %31 : vector<8x32xbf16> to vector<1x8x32xbf16>
    "tpu.trace_start"() <{level = 10 : i32, message = "bqh,bkh->bqk"}> : () -> ()
    %cst_23 = arith.constant dense<0.000000e+00> : vector<1x8x8xf32>
    %33 = tpu.matmul %28, %30, %cst_23 {dimension_numbers = #tpu.dot_dimension_numbers<[2], [2], [1], [1], [0, 0, 0, 1, 1, 1], [0], [0]>} : vector<1x8x32xbf16>, vector<1x8x32xbf16>, vector<1x8x8xf32> -> vector<1x8x8xf32>
    "tpu.trace_stop"() : () -> ()
    %34 = vector.shape_cast %5 : vector<1x8xi1> to vector<1x1x8xi1>
    %cst_24 = arith.constant -1.000000e+30 : f32
    %35 = vector.shape_cast %34 : vector<1x1x8xi1> to vector<1x1x8xi1>
    %36 = vector.broadcast %35 : vector<1x1x8xi1> to vector<1x8x8xi1>
    %37 = vector.broadcast %cst_24 : f32 to vector<1x8x8xf32>
    %38 = arith.select %36, %37, %33 : vector<1x8x8xi1>, vector<1x8x8xf32>
    %cst_25 = arith.constant dense<0xFF800000> : vector<1x8xf32>
    %39 = vector.multi_reduction <maximumf>, %38, %cst_25 [2] : vector<1x8x8xf32> to vector<1x8xf32>
    %40 = vector.shape_cast %39 : vector<1x8xf32> to vector<1x8x1xf32>
    %41 = vector.broadcast %40 : vector<1x8x1xf32> to vector<1x8x8xf32>
    %42 = arith.subf %38, %41 : vector<1x8x8xf32>
    %43 = math.exp %42 : vector<1x8x8xf32>
    %cst_26 = arith.constant dense<0.000000e+00> : vector<1x8xf32>
    %44 = vector.multi_reduction <add>, %43, %cst_26 [2] : vector<1x8x8xf32> to vector<1x8xf32>
    %45 = vector.shape_cast %44 : vector<1x8xf32> to vector<1x8x1xf32>
    %46 = tpu.reciprocal %45 {approx = true} : vector<1x8x1xf32> -> vector<1x8x1xf32>
    %47 = vector.broadcast %46 : vector<1x8x1xf32> to vector<1x8x8xf32>
    %48 = arith.mulf %43, %47 : vector<1x8x8xf32>
    %49 = arith.truncf %48 : vector<1x8x8xf32> to vector<1x8x8xbf16>
    "tpu.trace_start"() <{level = 10 : i32, message = "bqk,bkh->bqh"}> : () -> ()
    %cst_27 = arith.constant dense<0.000000e+00> : vector<1x8x32xf32>
    %50 = tpu.matmul %49, %32, %cst_27 {dimension_numbers = #tpu.dot_dimension_numbers<[2], [1], [1], [2], [0, 0, 0, 1, 1, 2], [0], [0]>} : vector<1x8x8xbf16>, vector<1x8x32xbf16>, vector<1x8x32xf32> -> vector<1x8x32xf32>
    "tpu.trace_stop"() : () -> ()
    %51 = vector.shape_cast %50 : vector<1x8x32xf32> to vector<8x32xf32>
    %52 = arith.truncf %51 : vector<8x32xf32> to vector<8x32xbf16>
    %c0_28 = arith.constant 0 : index
    %c0_29 = arith.constant 0 : index
    %53 = vector.load %arg11[%c0_28, %c0_29] : memref<32x32xbf16, #tpu.memory_space<vmem>>, vector<32x32xbf16>
    %cst_30 = arith.constant dense<0.000000e+00> : vector<8x32xf32>
    %54 = tpu.matmul %52, %53, %cst_30 {dimension_numbers = #tpu.dot_dimension_numbers<[1], [0], [0], [1], [0, 0, 1, 1], [], []>} : vector<8x32xbf16>, vector<32x32xbf16>, vector<8x32xf32> -> vector<8x32xf32>
    %c0_31 = arith.constant 0 : index
    %c0_32 = arith.constant 0 : index
    %55 = vector.load %arg12[%c0_31, %c0_32] : memref<1x32xf32, #tpu.memory_space<vmem>>, vector<1x32xf32>
    %56 = vector.broadcast %55 : vector<1x32xf32> to vector<8x32xf32>
    %57 = arith.addf %54, %56 : vector<8x32xf32>
    %58 = arith.addf %8, %57 : vector<8x32xf32>
    %c0_33 = arith.constant 0 : index
    %c0_34 = arith.constant 0 : index
    %59 = vector.load %arg17[%c0_33, %c0_34] : memref<1x32xf32, #tpu.memory_space<vmem>>, vector<1x32xf32>
    %c0_35 = arith.constant 0 : index
    %c0_36 = arith.constant 0 : index
    %60 = vector.load %arg18[%c0_35, %c0_36] : memref<1x32xf32, #tpu.memory_space<vmem>>, vector<1x32xf32>
    %cst_37 = arith.constant dense<0.000000e+00> : vector<8xf32>
    %61 = vector.multi_reduction <add>, %58, %cst_37 [1] : vector<8x32xf32> to vector<8xf32>
    %62 = vector.shape_cast %61 : vector<8xf32> to vector<8x1xf32>
    %cst_38 = arith.constant 3.200000e+01 : f32
    %63 = vector.broadcast %cst_38 : f32 to vector<8x1xf32>
    %64 = arith.divf %62, %63 : vector<8x1xf32>
    %65 = vector.broadcast %64 : vector<8x1xf32> to vector<8x32xf32>
    %66 = arith.subf %58, %65 : vector<8x32xf32>
    %67 = arith.mulf %66, %66 : vector<8x32xf32>
    %cst_39 = arith.constant dense<0.000000e+00> : vector<8xf32>
    %68 = vector.multi_reduction <add>, %67, %cst_39 [1] : vector<8x32xf32> to vector<8xf32>
    %69 = vector.shape_cast %68 : vector<8xf32> to vector<8x1xf32>
    %cst_40 = arith.constant 3.200000e+01 : f32
    %70 = vector.broadcast %cst_40 : f32 to vector<8x1xf32>
    %71 = arith.divf %69, %70 : vector<8x1xf32>
    %72 = vector.broadcast %64 : vector<8x1xf32> to vector<8x32xf32>
    %73 = arith.subf %58, %72 : vector<8x32xf32>
    %cst_41 = arith.constant 9.99999974E-6 : f32
    %74 = vector.broadcast %cst_41 : f32 to vector<8x1xf32>
    %75 = arith.addf %71, %74 : vector<8x1xf32>
    %76 = math.rsqrt %75 : vector<8x1xf32>
    %77 = vector.broadcast %76 : vector<8x1xf32> to vector<8x32xf32>
    %78 = arith.mulf %73, %77 : vector<8x32xf32>
    %79 = vector.broadcast %59 : vector<1x32xf32> to vector<8x32xf32>
    %80 = arith.mulf %78, %79 : vector<8x32xf32>
    %81 = vector.broadcast %60 : vector<1x32xf32> to vector<8x32xf32>
    %82 = arith.addf %80, %81 : vector<8x32xf32>
    %83 = arith.truncf %82 : vector<8x32xf32> to vector<8x32xbf16>
    %c0_42 = arith.constant 0 : index
    %c0_43 = arith.constant 0 : index
    %84 = vector.load %arg13[%c0_42, %c0_43] : memref<32x2048xbf16, #tpu.memory_space<vmem>>, vector<32x2048xbf16>
    %cst_44 = arith.constant dense<0.000000e+00> : vector<8x2048xf32>
    %85 = tpu.matmul %83, %84, %cst_44 {dimension_numbers = #tpu.dot_dimension_numbers<[1], [0], [0], [1], [0, 0, 1, 1], [], []>} : vector<8x32xbf16>, vector<32x2048xbf16>, vector<8x2048xf32> -> vector<8x2048xf32>
    %c0_45 = arith.constant 0 : index
    %c0_46 = arith.constant 0 : index
    %86 = vector.load %arg14[%c0_45, %c0_46] : memref<1x2048xf32, #tpu.memory_space<vmem>>, vector<1x2048xf32>
    %87 = vector.broadcast %86 : vector<1x2048xf32> to vector<8x2048xf32>
    %88 = arith.addf %85, %87 : vector<8x2048xf32>
    %cst_47 = arith.constant 0.000000e+00 : f32
    %89 = vector.broadcast %cst_47 : f32 to vector<8x2048xf32>
    %90 = arith.maximumf %88, %89 : vector<8x2048xf32>
    %91 = arith.truncf %90 : vector<8x2048xf32> to vector<8x2048xbf16>
    %c0_48 = arith.constant 0 : index
    %c0_49 = arith.constant 0 : index
    %92 = vector.load %arg15[%c0_48, %c0_49] : memref<2048x32xbf16, #tpu.memory_space<vmem>>, vector<2048x32xbf16>
    %cst_50 = arith.constant dense<0.000000e+00> : vector<8x32xf32>
    %93 = tpu.matmul %91, %92, %cst_50 {dimension_numbers = #tpu.dot_dimension_numbers<[1], [0], [0], [1], [0, 0, 1, 1], [], []>} : vector<8x2048xbf16>, vector<2048x32xbf16>, vector<8x32xf32> -> vector<8x32xf32>
    %c0_51 = arith.constant 0 : index
    %c0_52 = arith.constant 0 : index
    %94 = vector.load %arg16[%c0_51, %c0_52] : memref<1x32xf32, #tpu.memory_space<vmem>>, vector<1x32xf32>
    %95 = vector.broadcast %94 : vector<1x32xf32> to vector<8x32xf32>
    %96 = arith.addf %93, %95 : vector<8x32xf32>
    %97 = arith.addf %82, %96 : vector<8x32xf32>
    %c0_53 = arith.constant 0 : index
    %c0_54 = arith.constant 0 : index
    %98 = vector.load %arg19[%c0_53, %c0_54] : memref<1x32xf32, #tpu.memory_space<vmem>>, vector<1x32xf32>
    %c0_55 = arith.constant 0 : index
    %c0_56 = arith.constant 0 : index
    %99 = vector.load %arg20[%c0_55, %c0_56] : memref<1x32xf32, #tpu.memory_space<vmem>>, vector<1x32xf32>
    %cst_57 = arith.constant dense<0.000000e+00> : vector<8xf32>
    %100 = vector.multi_reduction <add>, %97, %cst_57 [1] : vector<8x32xf32> to vector<8xf32>
    %101 = vector.shape_cast %100 : vector<8xf32> to vector<8x1xf32>
    %cst_58 = arith.constant 3.200000e+01 : f32
    %102 = vector.broadcast %cst_58 : f32 to vector<8x1xf32>
    %103 = arith.divf %101, %102 : vector<8x1xf32>
    %104 = vector.broadcast %103 : vector<8x1xf32> to vector<8x32xf32>
    %105 = arith.subf %97, %104 : vector<8x32xf32>
    %106 = arith.mulf %105, %105 : vector<8x32xf32>
    %cst_59 = arith.constant dense<0.000000e+00> : vector<8xf32>
    %107 = vector.multi_reduction <add>, %106, %cst_59 [1] : vector<8x32xf32> to vector<8xf32>
    %108 = vector.shape_cast %107 : vector<8xf32> to vector<8x1xf32>
    %cst_60 = arith.constant 3.200000e+01 : f32
    %109 = vector.broadcast %cst_60 : f32 to vector<8x1xf32>
    %110 = arith.divf %108, %109 : vector<8x1xf32>
    %111 = vector.broadcast %103 : vector<8x1xf32> to vector<8x32xf32>
    %112 = arith.subf %97, %111 : vector<8x32xf32>
    %cst_61 = arith.constant 9.99999974E-6 : f32
    %113 = vector.broadcast %cst_61 : f32 to vector<8x1xf32>
    %114 = arith.addf %110, %113 : vector<8x1xf32>
    %115 = math.rsqrt %114 : vector<8x1xf32>
    %116 = vector.broadcast %115 : vector<8x1xf32> to vector<8x32xf32>
    %117 = arith.mulf %112, %116 : vector<8x32xf32>
    %118 = vector.broadcast %98 : vector<1x32xf32> to vector<8x32xf32>
    %119 = arith.mulf %117, %118 : vector<8x32xf32>
    %120 = vector.broadcast %99 : vector<1x32xf32> to vector<8x32xf32>
    %121 = arith.addf %119, %120 : vector<8x32xf32>
    %c0_62 = arith.constant 0 : index
    %c0_63 = arith.constant 0 : index
    %122 = vector.load %arg21[%c0_62, %c0_63] : memref<1x32xf32, #tpu.memory_space<vmem>>, vector<1x32xf32>
    %c0_64 = arith.constant 0 : index
    %c0_65 = arith.constant 0 : index
    %123 = vector.load %arg22[%c0_64, %c0_65] : memref<1x32xf32, #tpu.memory_space<vmem>>, vector<1x32xf32>
    %cst_66 = arith.constant dense<0.000000e+00> : vector<8xf32>
    %124 = vector.multi_reduction <add>, %121, %cst_66 [1] : vector<8x32xf32> to vector<8xf32>
    %125 = vector.shape_cast %124 : vector<8xf32> to vector<8x1xf32>
    %cst_67 = arith.constant 3.200000e+01 : f32
    %126 = vector.broadcast %cst_67 : f32 to vector<8x1xf32>
    %127 = arith.divf %125, %126 : vector<8x1xf32>
    %128 = vector.broadcast %127 : vector<8x1xf32> to vector<8x32xf32>
    %129 = arith.subf %121, %128 : vector<8x32xf32>
    %130 = arith.mulf %129, %129 : vector<8x32xf32>
    %cst_68 = arith.constant dense<0.000000e+00> : vector<8xf32>
    %131 = vector.multi_reduction <add>, %130, %cst_68 [1] : vector<8x32xf32> to vector<8xf32>
    %132 = vector.shape_cast %131 : vector<8xf32> to vector<8x1xf32>
    %cst_69 = arith.constant 3.200000e+01 : f32
    %133 = vector.broadcast %cst_69 : f32 to vector<8x1xf32>
    %134 = arith.divf %132, %133 : vector<8x1xf32>
    %135 = vector.broadcast %127 : vector<8x1xf32> to vector<8x32xf32>
    %136 = arith.subf %121, %135 : vector<8x32xf32>
    %cst_70 = arith.constant 9.99999974E-6 : f32
    %137 = vector.broadcast %cst_70 : f32 to vector<8x1xf32>
    %138 = arith.addf %134, %137 : vector<8x1xf32>
    %139 = math.rsqrt %138 : vector<8x1xf32>
    %140 = vector.broadcast %139 : vector<8x1xf32> to vector<8x32xf32>
    %141 = arith.mulf %136, %140 : vector<8x32xf32>
    %142 = vector.broadcast %122 : vector<1x32xf32> to vector<8x32xf32>
    %143 = arith.mulf %141, %142 : vector<8x32xf32>
    %144 = vector.broadcast %123 : vector<1x32xf32> to vector<8x32xf32>
    %145 = arith.addf %143, %144 : vector<8x32xf32>
    %146 = vector.extract_strided_slice %0 {offsets = [0, 7, 0], sizes = [1, 1, 32], strides = [1, 1, 1]} : vector<1x8x32xf32> to vector<1x1x32xf32>
    %147 = vector.shape_cast %146 : vector<1x1x32xf32> to vector<1x32xf32>
    %c0_71 = arith.constant 0 : index
    %c0_72 = arith.constant 0 : index
    %148 = vector.load %arg23[%c0_71, %c0_72] : memref<32x32xf32, #tpu.memory_space<vmem>>, vector<32x32xf32>
    %cst_73 = arith.constant dense<0.000000e+00> : vector<1x32xf32>
    %149 = tpu.matmul %147, %148, %cst_73 {dimension_numbers = #tpu.dot_dimension_numbers<[1], [0], [0], [1], [0, 0, 1, 1], [], []>} : vector<1x32xf32>, vector<32x32xf32>, vector<1x32xf32> -> vector<1x32xf32>
    %c0_74 = arith.constant 0 : index
    %c0_75 = arith.constant 0 : index
    %150 = vector.load %arg24[%c0_74, %c0_75] : memref<1x32xf32, #tpu.memory_space<vmem>>, vector<1x32xf32>
    %151 = arith.addf %149, %150 : vector<1x32xf32>
    %cst_76 = arith.constant 0.176776692 : f32
    %152 = vector.broadcast %cst_76 : f32 to vector<1x32xf32>
    %153 = arith.mulf %151, %152 : vector<1x32xf32>
    %c0_77 = arith.constant 0 : index
    %c0_78 = arith.constant 0 : index
    %154 = vector.load %arg25[%c0_77, %c0_78] : memref<32x32xf32, #tpu.memory_space<vmem>>, vector<32x32xf32>
    %cst_79 = arith.constant dense<0.000000e+00> : vector<8x32xf32>
    %155 = tpu.matmul %145, %154, %cst_79 {dimension_numbers = #tpu.dot_dimension_numbers<[1], [0], [0], [1], [0, 0, 1, 1], [], []>} : vector<8x32xf32>, vector<32x32xf32>, vector<8x32xf32> -> vector<8x32xf32>
    %c0_80 = arith.constant 0 : index
    %c0_81 = arith.constant 0 : index
    %156 = vector.load %arg26[%c0_80, %c0_81] : memref<1x32xf32, #tpu.memory_space<vmem>>, vector<1x32xf32>
    %157 = vector.broadcast %156 : vector<1x32xf32> to vector<8x32xf32>
    %158 = arith.addf %155, %157 : vector<8x32xf32>
    %159 = vector.shape_cast %158 : vector<8x32xf32> to vector<1x8x32xf32>
    %160 = vector.shape_cast %153 : vector<1x32xf32> to vector<1x1x32xf32>
    %161 = vector.broadcast %160 : vector<1x1x32xf32> to vector<1x8x32xf32>
    %162 = arith.mulf %161, %159 : vector<1x8x32xf32>
    %cst_82 = arith.constant dense<0.000000e+00> : vector<1x8xf32>
    %163 = vector.multi_reduction <add>, %162, %cst_82 [2] : vector<1x8x32xf32> to vector<1x8xf32>
    %cst_83 = arith.constant -1.000000e+30 : f32
    %164 = vector.broadcast %cst_83 : f32 to vector<1x8xf32>
    %165 = arith.select %5, %164, %163 : vector<1x8xi1>, vector<1x8xf32>
    %cst_84 = arith.constant dense<0xFF800000> : vector<1xf32>
    %166 = vector.multi_reduction <maximumf>, %165, %cst_84 [1] : vector<1x8xf32> to vector<1xf32>
    %167 = vector.shape_cast %166 : vector<1xf32> to vector<1x1xf32>
    %168 = vector.broadcast %167 : vector<1x1xf32> to vector<1x8xf32>
    %169 = arith.subf %165, %168 : vector<1x8xf32>
    %170 = math.exp %169 : vector<1x8xf32>
    %cst_85 = arith.constant dense<0.000000e+00> : vector<1xf32>
    %171 = vector.multi_reduction <add>, %170, %cst_85 [1] : vector<1x8xf32> to vector<1xf32>
    %172 = vector.shape_cast %171 : vector<1xf32> to vector<1x1xf32>
    %173 = tpu.reciprocal %172 {approx = true} : vector<1x1xf32> -> vector<1x1xf32>
    %174 = vector.broadcast %173 : vector<1x1xf32> to vector<1x8xf32>
    %175 = arith.mulf %170, %174 : vector<1x8xf32>
    %cst_86 = arith.constant 1.000000e+00 : f32
    %176 = vector.broadcast %cst_86 : f32 to vector<1x8xf32>
    %177 = arith.subf %176, %3 : vector<1x8xf32>
    %178 = arith.mulf %175, %177 : vector<1x8xf32>
    %c0_87 = arith.constant 0 : index
    %c0_88 = arith.constant 0 : index
    %c0_89 = arith.constant 0 : index
    %179 = vector.load %arg4[%c0_87, %c0_88, %c0_89] : memref<1x1x8xf32, #tpu.memory_space<vmem>>, vector<1x1x8xf32>
    %180 = vector.shape_cast %179 : vector<1x1x8xf32> to vector<1x8xf32>
    %181 = arith.mulf %178, %180 : vector<1x8xf32>
    %cst_90 = arith.constant -1.000000e+30 : f32
    %182 = vector.broadcast %cst_90 : f32 to vector<1x8xf32>
    %183 = arith.select %5, %182, %181 : vector<1x8xi1>, vector<1x8xf32>
    %cst_91 = arith.constant dense<0xFF800000> : vector<1xf32>
    %184 = vector.multi_reduction <maximumf>, %183, %cst_91 [1] : vector<1x8xf32> to vector<1xf32>
    %185 = vector.shape_cast %184 : vector<1xf32> to vector<1x1xf32>
    %186 = vector.broadcast %185 : vector<1x1xf32> to vector<1x8xf32>
    %187 = arith.subf %183, %186 : vector<1x8xf32>
    %188 = math.exp %187 : vector<1x8xf32>
    %cst_92 = arith.constant dense<0.000000e+00> : vector<1xf32>
    %189 = vector.multi_reduction <add>, %188, %cst_92 [1] : vector<1x8xf32> to vector<1xf32>
    %190 = vector.shape_cast %189 : vector<1xf32> to vector<1x1xf32>
    %191 = tpu.reciprocal %190 {approx = true} : vector<1x1xf32> -> vector<1x1xf32>
    %192 = vector.broadcast %191 : vector<1x1xf32> to vector<1x8xf32>
    %193 = arith.mulf %188, %192 : vector<1x8xf32>
    %194 = vector.shape_cast %193 : vector<1x8xf32> to vector<1x8x1xf32>
    %195 = vector.broadcast %194 : vector<1x8x1xf32> to vector<1x8x32xf32>
    %196 = arith.mulf %195, %0 : vector<1x8x32xf32>
    %cst_93 = arith.constant dense<0.000000e+00> : vector<1x32xf32>
    %197 = vector.multi_reduction <add>, %196, %cst_93 [1] : vector<1x8x32xf32> to vector<1x32xf32>
    %198 = arith.truncf %197 : vector<1x32xf32> to vector<1x32xbf16>
    %c0_94 = arith.constant 0 : index
    %c0_95 = arith.constant 0 : index
    %199 = vector.load %arg27[%c0_94, %c0_95] : memref<32x32xbf16, #tpu.memory_space<vmem>>, vector<32x32xbf16>
    %cst_96 = arith.constant dense<0.000000e+00> : vector<1x32xf32>
    %200 = tpu.matmul %198, %199, %cst_96 {dimension_numbers = #tpu.dot_dimension_numbers<[1], [0], [0], [1], [0, 0, 1, 1], [], []>} : vector<1x32xbf16>, vector<32x32xbf16>, vector<1x32xf32> -> vector<1x32xf32>
    %201 = vector.shape_cast %200 : vector<1x32xf32> to vector<1x1x32xf32>
    %c0_97 = arith.constant 0 : index
    %c0_98 = arith.constant 0 : index
    %c0_99 = arith.constant 0 : index
    %202 = vector.load %arg28[%c0_97, %c0_98, %c0_99] : memref<1x1x32xf32, #tpu.memory_space<vmem>>, vector<1x1x32xf32>
    tpu.vector_store %arg28[%c0_97, %c0_98, %c0_99], %201 {strides = array<i32>} : memref<1x1x32xf32, #tpu.memory_space<vmem>>, vector<1x1x32xf32>,
    return
  }
  func.func @transform_0(%arg0: i32) -> (i32, i32, i32) {
    %c0_i32 = arith.constant 0 : i32
    %c0_i32_0 = arith.constant 0 : i32
    %c0_i32_1 = arith.constant 0 : i32
    return %arg0, %c0_i32, %c0_i32_0 : i32, i32, i32
  }
  func.func @transform_1(%arg0: i32) -> (i32, i32) {
    %c0_i32 = arith.constant 0 : i32
    %c0_i32_0 = arith.constant 0 : i32
    %c0_i32_1 = arith.constant 0 : i32
    return %c0_i32, %c0_i32_0 : i32, i32
  }
  func.func @transform_2(%arg0: i32) -> (i32, i32, i32) {
    %c0_i32 = arith.constant 0 : i32
    %c0_i32_0 = arith.constant 0 : i32
    %c0_i32_1 = arith.constant 0 : i32
    return %arg0, %c0_i32, %c0_i32_0 : i32, i32, i32
  }
  func.func @transform_3(%arg0: i32) -> (i32, i32, i32) {
    %c0_i32 = arith.constant 0 : i32
    %c0_i32_0 = arith.constant 0 : i32
    %c0_i32_1 = arith.constant 0 : i32
    return %arg0, %c0_i32, %c0_i32_0 : i32, i32, i32
  }
  func.func @transform_4(%arg0: i32) -> (i32, i32) {
    %c0_i32 = arith.constant 0 : i32
    %c0_i32_0 = arith.constant 0 : i32
    %c0_i32_1 = arith.constant 0 : i32
    return %c0_i32, %c0_i32_0 : i32, i32
  }
  func.func @transform_5(%arg0: i32) -> (i32, i32) {
    %c0_i32 = arith.constant 0 : i32
    %c0_i32_0 = arith.constant 0 : i32
    %c0_i32_1 = arith.constant 0 : i32
    return %c0_i32, %c0_i32_0 : i32, i32
  }
  func.func @transform_6(%arg0: i32) -> (i32, i32) {
    %c0_i32 = arith.constant 0 : i32
    %c0_i32_0 = arith.constant 0 : i32
    %c0_i32_1 = arith.constant 0 : i32
    return %c0_i32, %c0_i32_0 : i32, i32
  }
  func.func @transform_7(%arg0: i32) -> (i32, i32) {
    %c0_i32 = arith.constant 0 : i32
    %c0_i32_0 = arith.constant 0 : i32
    %c0_i32_1 = arith.constant 0 : i32
    return %c0_i32, %c0_i32_0 : i32, i32
  }
  func.func @transform_8(%arg0: i32) -> (i32, i32) {
    %c0_i32 = arith.constant 0 : i32
    %c0_i32_0 = arith.constant 0 : i32
    %c0_i32_1 = arith.constant 0 : i32
    return %c0_i32, %c0_i32_0 : i32, i32
  }
  func.func @transform_9(%arg0: i32) -> (i32, i32) {
    %c0_i32 = arith.constant 0 : i32
    %c0_i32_0 = arith.constant 0 : i32
    %c0_i32_1 = arith.constant 0 : i32
    return %c0_i32, %c0_i32_0 : i32, i32
  }
  func.func @transform_10(%arg0: i32) -> (i32, i32) {
    %c0_i32 = arith.constant 0 : i32
    %c0_i32_0 = arith.constant 0 : i32
    %c0_i32_1 = arith.constant 0 : i32
    return %c0_i32, %c0_i32_0 : i32, i32
  }
  func.func @transform_11(%arg0: i32) -> (i32, i32) {
    %c0_i32 = arith.constant 0 : i32
    %c0_i32_0 = arith.constant 0 : i32
    %c0_i32_1 = arith.constant 0 : i32
    return %c0_i32, %c0_i32_0 : i32, i32
  }
  func.func @transform_12(%arg0: i32) -> (i32, i32) {
    %c0_i32 = arith.constant 0 : i32
    %c0_i32_0 = arith.constant 0 : i32
    %c0_i32_1 = arith.constant 0 : i32
    return %c0_i32, %c0_i32_0 : i32, i32
  }
  func.func @transform_13(%arg0: i32) -> (i32, i32) {
    %c0_i32 = arith.constant 0 : i32
    %c0_i32_0 = arith.constant 0 : i32
    %c0_i32_1 = arith.constant 0 : i32
    return %c0_i32, %c0_i32_0 : i32, i32
  }
  func.func @transform_14(%arg0: i32) -> (i32, i32) {
    %c0_i32 = arith.constant 0 : i32
    %c0_i32_0 = arith.constant 0 : i32
    %c0_i32_1 = arith.constant 0 : i32
    return %c0_i32, %c0_i32_0 : i32, i32
  }
  func.func @transform_15(%arg0: i32) -> (i32, i32) {
    %c0_i32 = arith.constant 0 : i32
    %c0_i32_0 = arith.constant 0 : i32
    %c0_i32_1 = arith.constant 0 : i32
    return %c0_i32, %c0_i32_0 : i32, i32
  }
  func.func @transform_16(%arg0: i32) -> (i32, i32) {
    %c0_i32 = arith.constant 0 : i32
    %c0_i32_0 = arith.constant 0 : i32
    %c0_i32_1 = arith.constant 0 : i32
    return %c0_i32, %c0_i32_0 : i32, i32
  }
  func.func @transform_17(%arg0: i32) -> (i32, i32) {
    %c0_i32 = arith.constant 0 : i32
    %c0_i32_0 = arith.constant 0 : i32
    %c0_i32_1 = arith.constant 0 : i32
    return %c0_i32, %c0_i32_0 : i32, i32
  }
  func.func @transform_18(%arg0: i32) -> (i32, i32) {
    %c0_i32 = arith.constant 0 : i32
    %c0_i32_0 = arith.constant 0 : i32
    %c0_i32_1 = arith.constant 0 : i32
    return %c0_i32, %c0_i32_0 : i32, i32
  }
  func.func @transform_19(%arg0: i32) -> (i32, i32) {
    %c0_i32 = arith.constant 0 : i32
    %c0_i32_0 = arith.constant 0 : i32
    %c0_i32_1 = arith.constant 0 : i32
    return %c0_i32, %c0_i32_0 : i32, i32
  }
  func.func @transform_20(%arg0: i32) -> (i32, i32) {
    %c0_i32 = arith.constant 0 : i32
    %c0_i32_0 = arith.constant 0 : i32
    %c0_i32_1 = arith.constant 0 : i32
    return %c0_i32, %c0_i32_0 : i32, i32
  }
  func.func @transform_21(%arg0: i32) -> (i32, i32) {
    %c0_i32 = arith.constant 0 : i32
    %c0_i32_0 = arith.constant 0 : i32
    %c0_i32_1 = arith.constant 0 : i32
    return %c0_i32, %c0_i32_0 : i32, i32
  }
  func.func @transform_22(%arg0: i32) -> (i32, i32) {
    %c0_i32 = arith.constant 0 : i32
    %c0_i32_0 = arith.constant 0 : i32
    %c0_i32_1 = arith.constant 0 : i32
    return %c0_i32, %c0_i32_0 : i32, i32
  }
  func.func @transform_23(%arg0: i32) -> (i32, i32) {
    %c0_i32 = arith.constant 0 : i32
    %c0_i32_0 = arith.constant 0 : i32
    %c0_i32_1 = arith.constant 0 : i32
    return %c0_i32, %c0_i32_0 : i32, i32
  }
  func.func @transform_24(%arg0: i32) -> (i32, i32) {
    %c0_i32 = arith.constant 0 : i32
    %c0_i32_0 = arith.constant 0 : i32
    %c0_i32_1 = arith.constant 0 : i32
    return %c0_i32, %c0_i32_0 : i32, i32
  }
  func.func @transform_25(%arg0: i32) -> (i32, i32) {
    %c0_i32 = arith.constant 0 : i32
    %c0_i32_0 = arith.constant 0 : i32
    %c0_i32_1 = arith.constant 0 : i32
    return %c0_i32, %c0_i32_0 : i32, i32
  }
  func.func @transform_26(%arg0: i32) -> (i32, i32) {
    %c0_i32 = arith.constant 0 : i32
    %c0_i32_0 = arith.constant 0 : i32
    %c0_i32_1 = arith.constant 0 : i32
    return %c0_i32, %c0_i32_0 : i32, i32
  }
  func.func @transform_27(%arg0: i32) -> (i32, i32, i32) {
    %c0_i32 = arith.constant 0 : i32
    %c0_i32_0 = arith.constant 0 : i32
    %c0_i32_1 = arith.constant 0 : i32
    return %arg0, %c0_i32, %c0_i32_0 : i32, i32, i32
  }
}

</mosaic_0001>

<llo_original>
// kernel: tpu_custom_call.1
$region0: #{tpu_custom_call.1}
  #allocation0 [shape = 'u32[]', space=smem, size = 0x4, offset = 0x4, fixed_abs, tag = 'smem constant byte address 0x4 - core index']
  #allocation1 [shape = 'u32[144,128]{1,0:T(1,128)}', space=vmem, size = 0x12000, scoped, tag = 'internal scratch']
  %s0 = inlined_call_operand.vmem [shape: f32[2,8,32], index: 0, kind: input, shape index: {}]
  %s1 = inlined_call_operand.vmem [shape: f32[8,32], index: 1, kind: input, shape index: {}]
  %s2 = inlined_call_operand.vmem [shape: f32[2,1,8], index: 2, kind: input, shape index: {}]
  %s3 = inlined_call_operand.vmem [shape: f32[2,1,8], index: 3, kind: input, shape index: {}]
  %s4 = inlined_call_operand.vmem [shape: bf16[32,32], index: 4, kind: input, shape index: {}]
  %s5 = inlined_call_operand.vmem [shape: f32[1,32], index: 5, kind: input, shape index: {}]
  %s6 = inlined_call_operand.vmem [shape: bf16[32,32], index: 6, kind: input, shape index: {}]
  %s7 = inlined_call_operand.vmem [shape: f32[1,32], index: 7, kind: input, shape index: {}]
  %s8 = inlined_call_operand.vmem [shape: bf16[32,32], index: 8, kind: input, shape index: {}]
  %s9 = inlined_call_operand.vmem [shape: f32[1,32], index: 9, kind: input, shape index: {}]
  %s10 = inlined_call_operand.vmem [shape: bf16[32,32], index: 10, kind: input, shape index: {}]
  %s11 = inlined_call_operand.vmem [shape: f32[1,32], index: 11, kind: input, shape index: {}]
  %s12 = inlined_call_operand.vmem [shape: bf16[32,2048], index: 12, kind: input, shape index: {}]
  %s13 = inlined_call_operand.vmem [shape: f32[1,2048], index: 13, kind: input, shape index: {}]
  %s14 = inlined_call_operand.vmem [shape: bf16[2048,32], index: 14, kind: input, shape index: {}]
  %s15 = inlined_call_operand.vmem [shape: f32[1,32], index: 15, kind: input, shape index: {}]
  %s16 = inlined_call_operand.vmem [shape: f32[1,32], index: 16, kind: input, shape index: {}]
  %s17 = inlined_call_operand.vmem [shape: f32[1,32], index: 17, kind: input, shape index: {}]
  %s18 = inlined_call_operand.vmem [shape: f32[1,32], index: 18, kind: input, shape index: {}]
  %s19 = inlined_call_operand.vmem [shape: f32[1,32], index: 19, kind: input, shape index: {}]
  %s20 = inlined_call_operand.vmem [shape: f32[1,32], index: 20, kind: input, shape index: {}]
  %s21 = inlined_call_operand.vmem [shape: f32[1,32], index: 21, kind: input, shape index: {}]
  %s22 = inlined_call_operand.vmem [shape: f32[32,32], index: 22, kind: input, shape index: {}]
  %s23 = inlined_call_operand.vmem [shape: f32[1,32], index: 23, kind: input, shape index: {}]
  %s24 = inlined_call_operand.vmem [shape: f32[32,32], index: 24, kind: input, shape index: {}]
  %s25 = inlined_call_operand.vmem [shape: f32[1,32], index: 25, kind: input, shape index: {}]
  %s26 = inlined_call_operand.vmem [shape: bf16[32,32], index: 26, kind: input, shape index: {}]
  %s27 = inlined_call_operand.hbm [shape: f32[2,1,32], index: 27, kind: output, shape index: {}]
  %s28 = sld [smem:[#allocation0]]
  $region141: #{tpu_custom_call.1} parent=0
    _
  %s30 = ssub.s32 1, %s28
  %s31 = scalar_select 0, %s30, %s28
  $region1: #{tpu_custom_call.1} parent=0
    #allocation2 [shape = 'u8[1024]{0}', space=vmem, size = 0x400, scoped, tag = 'output window, operand 0']
    #allocation3 [shape = 's32[2]{0}', space=sflag, size = 0x8, scoped, tag = 'scoped memory for tpu_custom_call.1']
    %32 = vsyncpa [#allocation3], 0
    %s33 = scalar_lea.sflag [#allocation3], 1
    %34 = vsyncpa %s33, 0
    loop: start=0, step=1, limit=4
    $region2: #{tpu_custom_call.1} parent=1 // loop_pre_header
      _
    $region3: #{tpu_custom_call.1} parent=1 // loop_header
      %s36 = sphi 0, %s40
      %p37 = scmp.ge.s32.totalorder %s36, 4
      %s46 = sphi 0, %s48
      %s49 = sphi 0, %s46
      %s50 = sphi 0, %s49
      %s66 = sphi 0, %s50
      %s70 = sphi 0, %s70
      %s72 = sphi 0, %s70
      %s73 = sphi 0, %s72
      %s87 = sphi 0, %s73
      %s93 = sphi 0, %s95
      %s96 = sphi 0, %s93
      %s97 = sphi 0, %s96
      %s113 = sphi 0, %s97
      %s119 = sphi 0, %s121
      %s122 = sphi 0, %s119
      %s123 = sphi 0, %s122
      %s139 = sphi 0, %s123
      %s143 = sphi 0, %s143
      %s145 = sphi 0, %s143
      %s146 = sphi 0, %s145
      %s160 = sphi 0, %s146
      %s164 = sphi 0, %s164
      %s166 = sphi 0, %s164
      %s167 = sphi 0, %s166
      %s181 = sphi 0, %s167
      %s185 = sphi 0, %s185
      %s187 = sphi 0, %s185
      %s188 = sphi 0, %s187
      %s202 = sphi 0, %s188
      %s206 = sphi 0, %s206
      %s208 = sphi 0, %s206
      %s209 = sphi 0, %s208
      %s223 = sphi 0, %s209
      %s227 = sphi 0, %s227
      %s229 = sphi 0, %s227
      %s230 = sphi 0, %s229
      %s244 = sphi 0, %s230
      %s248 = sphi 0, %s248
      %s250 = sphi 0, %s248
      %s251 = sphi 0, %s250
      %s265 = sphi 0, %s251
      %s269 = sphi 0, %s269
      %s271 = sphi 0, %s269
      %s272 = sphi 0, %s271
      %s286 = sphi 0, %s272
      %s290 = sphi 0, %s290
      %s292 = sphi 0, %s290
      %s293 = sphi 0, %s292
      %s307 = sphi 0, %s293
      %s311 = sphi 0, %s311
      %s313 = sphi 0, %s311
      %s314 = sphi 0, %s313
      %s328 = sphi 0, %s314
      %s332 = sphi 0, %s332
      %s334 = sphi 0, %s332
      %s335 = sphi 0, %s334
      %s349 = sphi 0, %s335
      %s353 = sphi 0, %s353
      %s355 = sphi 0, %s353
      %s356 = sphi 0, %s355
      %s370 = sphi 0, %s356
      %s374 = sphi 0, %s374
      %s376 = sphi 0, %s374
      %s377 = sphi 0, %s376
      %s391 = sphi 0, %s377
      %s395 = sphi 0, %s395
      %s397 = sphi 0, %s395
      %s398 = sphi 0, %s397
      %s412 = sphi 0, %s398
      %s416 = sphi 0, %s416
      %s418 = sphi 0, %s416
      %s419 = sphi 0, %s418
      %s433 = sphi 0, %s419
      %s437 = sphi 0, %s437
      %s439 = sphi 0, %s437
      %s440 = sphi 0, %s439
      %s454 = sphi 0, %s440
      %s458 = sphi 0, %s458
      %s460 = sphi 0, %s458
      %s461 = sphi 0, %s460
      %s475 = sphi 0, %s461
      %s479 = sphi 0, %s479
      %s481 = sphi 0, %s479
      %s482 = sphi 0, %s481
      %s496 = sphi 0, %s482
      %s500 = sphi 0, %s500
      %s502 = sphi 0, %s500
      %s503 = sphi 0, %s502
      %s517 = sphi 0, %s503
      %s521 = sphi 0, %s521
      %s523 = sphi 0, %s521
      %s524 = sphi 0, %s523
      %s538 = sphi 0, %s524
      %s542 = sphi 0, %s542
      %s544 = sphi 0, %s542
      %s545 = sphi 0, %s544
      %s559 = sphi 0, %s545
      %s563 = sphi 0, %s563
      %s565 = sphi 0, %s563
      %s566 = sphi 0, %s565
      %s580 = sphi 0, %s566
      %s584 = sphi 0, %s584
      %s586 = sphi 0, %s584
      %s587 = sphi 0, %s586
      %s601 = sphi 0, %s587
      %s605 = sphi 0, %s605
      %s607 = sphi 0, %s605
      %s608 = sphi 0, %s607
      %s622 = sphi 0, %s608
      %s628 = sphi 0, %s630
      %s631 = sphi 0, %s628
      %s632 = sphi 0, %s631
      %s648 = sphi 0, %s632
    $region4: #{tpu_custom_call.1} parent=1 // loop_header_branch
      %39 = sbr.rel (%p37) target = $region8
    $region5: #{tpu_custom_call.1} parent=1 // loop_body
      %s41 = ssub.s32 %s36, 1
      %s42 = ssub.s32 %s36, 2
      %s43 = sadd.s32 %s36, 1
      %s44 = ssub.s32 %s36, %s43
      %p45 = scmp.eq.s32.totalorder %s44, 0
      %s47 = sadd.s32 %s46, 1
      %s48 = scalar_select %p45, %s46, %s47
      %p51 = pneg %p45
      %p52 = scmp.eq.s32.totalorder %s36, 1
      %p53 = por %p51, %p52
      %p54 = scmp.ne.s32.totalorder %s46, %s49
      %p55 = scmp.eq.s32.totalorder %s36, 0
      %p56 = por %p54, %p55
      %p57 = scmp.ne.s32.totalorder %s46, %s49
      %p58 = scmp.eq.s32.totalorder %s41, 1
      %p59 = por %p57, %p58
      %p60 = scmp.ne.s32.totalorder %s49, %s50
      %p61 = scmp.eq.s32.totalorder %s41, 0
      %p62 = por %p60, %p61
      %p63 = scmp.ne.s32.totalorder %s49, %s50
      %p64 = scmp.eq.s32.totalorder %s42, 1
      %p65 = por %p63, %p64
      %p67 = scmp.ne.s32.totalorder %s50, %s66
      %p68 = scmp.eq.s32.totalorder %s42, 0
      %p69 = por %p67, %p68
      %s71 = sadd.s32 %s70, 1
      %p74 = scmp.eq.s32.totalorder %s36, 1
      %p75 = scmp.ne.s32.totalorder %s70, %s72
      %p76 = scmp.eq.s32.totalorder %s36, 0
      %p77 = por %p75, %p76
      %p78 = scmp.ne.s32.totalorder %s70, %s72
      %p79 = scmp.eq.s32.totalorder %s41, 1
      %p80 = por %p78, %p79
      %p81 = scmp.ne.s32.totalorder %s72, %s73
      %p82 = scmp.eq.s32.totalorder %s41, 0
      %p83 = por %p81, %p82
      %p84 = scmp.ne.s32.totalorder %s72, %s73
      %p85 = scmp.eq.s32.totalorder %s42, 1
      %p86 = por %p84, %p85
      %p88 = scmp.ne.s32.totalorder %s73, %s87
      %p89 = scmp.eq.s32.totalorder %s42, 0
      %p90 = por %p88, %p89
      %s91 = ssub.s32 %s36, %s43
      %p92 = scmp.eq.s32.totalorder %s91, 0
      %s94 = sadd.s32 %s93, 1
      %s95 = scalar_select %p92, %s93, %s94
      %p98 = pneg %p92
      %p99 = scmp.eq.s32.totalorder %s36, 1
      %p100 = por %p98, %p99
      %p101 = scmp.ne.s32.totalorder %s93, %s96
      %p102 = scmp.eq.s32.totalorder %s36, 0
      %p103 = por %p101, %p102
      %p104 = scmp.ne.s32.totalorder %s93, %s96
      %p105 = scmp.eq.s32.totalorder %s41, 1
      %p106 = por %p104, %p105
      %p107 = scmp.ne.s32.totalorder %s96, %s97
      %p108 = scmp.eq.s32.totalorder %s41, 0
      %p109 = por %p107, %p108
      %p110 = scmp.ne.s32.totalorder %s96, %s97
      %p111 = scmp.eq.s32.totalorder %s42, 1
      %p112 = por %p110, %p111
      %p114 = scmp.ne.s32.totalorder %s97, %s113
      %p115 = scmp.eq.s32.totalorder %s42, 0
      %p116 = por %p114, %p115
      %s117 = ssub.s32 %s36, %s43
      %p118 = scmp.eq.s32.totalorder %s117, 0
      %s120 = sadd.s32 %s119, 1
      %s121 = scalar_select %p118, %s119, %s120
      %p124 = pneg %p118
      %p125 = scmp.eq.s32.totalorder %s36, 1
      %p126 = por %p124, %p125
      %p127 = scmp.ne.s32.totalorder %s119, %s122
      %p128 = scmp.eq.s32.totalorder %s36, 0
      %p129 = por %p127, %p128
      %p130 = scmp.ne.s32.totalorder %s119, %s122
      %p131 = scmp.eq.s32.totalorder %s41, 1
      %p132 = por %p130, %p131
      %p133 = scmp.ne.s32.totalorder %s122, %s123
      %p134 = scmp.eq.s32.totalorder %s41, 0
      %p135 = por %p133, %p134
      %p136 = scmp.ne.s32.totalorder %s122, %s123
      %p137 = scmp.eq.s32.totalorder %s42, 1
      %p138 = por %p136, %p137
      %p140 = scmp.ne.s32.totalorder %s123, %s139
      %p141 = scmp.eq.s32.totalorder %s42, 0
      %p142 = por %p140, %p141
      %s144 = sadd.s32 %s143, 1
      %p147 = scmp.eq.s32.totalorder %s36, 1
      %p148 = scmp.ne.s32.totalorder %s143, %s145
      %p149 = scmp.eq.s32.totalorder %s36, 0
      %p150 = por %p148, %p149
      %p151 = scmp.ne.s32.totalorder %s143, %s145
      %p152 = scmp.eq.s32.totalorder %s41, 1
      %p153 = por %p151, %p152
      %p154 = scmp.ne.s32.totalorder %s145, %s146
      %p155 = scmp.eq.s32.totalorder %s41, 0
      %p156 = por %p154, %p155
      %p157 = scmp.ne.s32.totalorder %s145, %s146
      %p158 = scmp.eq.s32.totalorder %s42, 1
      %p159 = por %p157, %p158
      %p161 = scmp.ne.s32.totalorder %s146, %s160
      %p162 = scmp.eq.s32.totalorder %s42, 0
      %p163 = por %p161, %p162
      %s165 = sadd.s32 %s164, 1
      %p168 = scmp.eq.s32.totalorder %s36, 1
      %p169 = scmp.ne.s32.totalorder %s164, %s166
      %p170 = scmp.eq.s32.totalorder %s36, 0
      %p171 = por %p169, %p170
      %p172 = scmp.ne.s32.totalorder %s164, %s166
      %p173 = scmp.eq.s32.totalorder %s41, 1
      %p174 = por %p172, %p173
      %p175 = scmp.ne.s32.totalorder %s166, %s167
      %p176 = scmp.eq.s32.totalorder %s41, 0
      %p177 = por %p175, %p176
      %p178 = scmp.ne.s32.totalorder %s166, %s167
      %p179 = scmp.eq.s32.totalorder %s42, 1
      %p180 = por %p178, %p179
      %p182 = scmp.ne.s32.totalorder %s167, %s181
      %p183 = scmp.eq.s32.totalorder %s42, 0
      %p184 = por %p182, %p183
      %s186 = sadd.s32 %s185, 1
      %p189 = scmp.eq.s32.totalorder %s36, 1
      %p190 = scmp.ne.s32.totalorder %s185, %s187
      %p191 = scmp.eq.s32.totalorder %s36, 0
      %p192 = por %p190, %p191
      %p193 = scmp.ne.s32.totalorder %s185, %s187
      %p194 = scmp.eq.s32.totalorder %s41, 1
      %p195 = por %p193, %p194
      %p196 = scmp.ne.s32.totalorder %s187, %s188
      %p197 = scmp.eq.s32.totalorder %s41, 0
      %p198 = por %p196, %p197
      %p199 = scmp.ne.s32.totalorder %s187, %s188
      %p200 = scmp.eq.s32.totalorder %s42, 1
      %p201 = por %p199, %p200
      %p203 = scmp.ne.s32.totalorder %s188, %s202
      %p204 = scmp.eq.s32.totalorder %s42, 0
      %p205 = por %p203, %p204
      %s207 = sadd.s32 %s206, 1
      %p210 = scmp.eq.s32.totalorder %s36, 1
      %p211 = scmp.ne.s32.totalorder %s206, %s208
      %p212 = scmp.eq.s32.totalorder %s36, 0
      %p213 = por %p211, %p212
      %p214 = scmp.ne.s32.totalorder %s206, %s208
      %p215 = scmp.eq.s32.totalorder %s41, 1
      %p216 = por %p214, %p215
      %p217 = scmp.ne.s32.totalorder %s208, %s209
      %p218 = scmp.eq.s32.totalorder %s41, 0
      %p219 = por %p217, %p218
      %p220 = scmp.ne.s32.totalorder %s208, %s209
      %p221 = scmp.eq.s32.totalorder %s42, 1
      %p222 = por %p220, %p221
      %p224 = scmp.ne.s32.totalorder %s209, %s223
      %p225 = scmp.eq.s32.totalorder %s42, 0
      %p226 = por %p224, %p225
      %s228 = sadd.s32 %s227, 1
      %p231 = scmp.eq.s32.totalorder %s36, 1
      %p232 = scmp.ne.s32.totalorder %s227, %s229
      %p233 = scmp.eq.s32.totalorder %s36, 0
      %p234 = por %p232, %p233
      %p235 = scmp.ne.s32.totalorder %s227, %s229
      %p236 = scmp.eq.s32.totalorder %s41, 1
      %p237 = por %p235, %p236
      %p238 = scmp.ne.s32.totalorder %s229, %s230
      %p239 = scmp.eq.s32.totalorder %s41, 0
      %p240 = por %p238, %p239
      %p241 = scmp.ne.s32.totalorder %s229, %s230
      %p242 = scmp.eq.s32.totalorder %s42, 1
      %p243 = por %p241, %p242
      %p245 = scmp.ne.s32.totalorder %s230, %s244
      %p246 = scmp.eq.s32.totalorder %s42, 0
      %p247 = por %p245, %p246
      %s249 = sadd.s32 %s248, 1
      %p252 = scmp.eq.s32.totalorder %s36, 1
      %p253 = scmp.ne.s32.totalorder %s248, %s250
      %p254 = scmp.eq.s32.totalorder %s36, 0
      %p255 = por %p253, %p254
      %p256 = scmp.ne.s32.totalorder %s248, %s250
      %p257 = scmp.eq.s32.totalorder %s41, 1
      %p258 = por %p256, %p257
      %p259 = scmp.ne.s32.totalorder %s250, %s251
      %p260 = scmp.eq.s32.totalorder %s41, 0
      %p261 = por %p259, %p260
      %p262 = scmp.ne.s32.totalorder %s250, %s251
      %p263 = scmp.eq.s32.totalorder %s42, 1
      %p264 = por %p262, %p263
      %p266 = scmp.ne.s32.totalorder %s251, %s265
      %p267 = scmp.eq.s32.totalorder %s42, 0
      %p268 = por %p266, %p267
      %s270 = sadd.s32 %s269, 1
      %p273 = scmp.eq.s32.totalorder %s36, 1
      %p274 = scmp.ne.s32.totalorder %s269, %s271
      %p275 = scmp.eq.s32.totalorder %s36, 0
      %p276 = por %p274, %p275
      %p277 = scmp.ne.s32.totalorder %s269, %s271
      %p278 = scmp.eq.s32.totalorder %s41, 1
      %p279 = por %p277, %p278
      %p280 = scmp.ne.s32.totalorder %s271, %s272
      %p281 = scmp.eq.s32.totalorder %s41, 0
      %p282 = por %p280, %p281
      %p283 = scmp.ne.s32.totalorder %s271, %s272
      %p284 = scmp.eq.s32.totalorder %s42, 1
      %p285 = por %p283, %p284
      %p287 = scmp.ne.s32.totalorder %s272, %s286
      %p288 = scmp.eq.s32.totalorder %s42, 0
      %p289 = por %p287, %p288
      %s291 = sadd.s32 %s290, 1
      %p294 = scmp.eq.s32.totalorder %s36, 1
      %p295 = scmp.ne.s32.totalorder %s290, %s292
      %p296 = scmp.eq.s32.totalorder %s36, 0
      %p297 = por %p295, %p296
      %p298 = scmp.ne.s32.totalorder %s290, %s292
      %p299 = scmp.eq.s32.totalorder %s41, 1
      %p300 = por %p298, %p299
      %p301 = scmp.ne.s32.totalorder %s292, %s293
      %p302 = scmp.eq.s32.totalorder %s41, 0
      %p303 = por %p301, %p302
      %p304 = scmp.ne.s32.totalorder %s292, %s293
      %p305 = scmp.eq.s32.totalorder %s42, 1
      %p306 = por %p304, %p305
      %p308 = scmp.ne.s32.totalorder %s293, %s307
      %p309 = scmp.eq.s32.totalorder %s42, 0
      %p310 = por %p308, %p309
      %s312 = sadd.s32 %s311, 1
      %p315 = scmp.eq.s32.totalorder %s36, 1
      %p316 = scmp.ne.s32.totalorder %s311, %s313
      %p317 = scmp.eq.s32.totalorder %s36, 0
      %p318 = por %p316, %p317
      %p319 = scmp.ne.s32.totalorder %s311, %s313
      %p320 = scmp.eq.s32.totalorder %s41, 1
      %p321 = por %p319, %p320
      %p322 = scmp.ne.s32.totalorder %s313, %s314
      %p323 = scmp.eq.s32.totalorder %s41, 0
      %p324 = por %p322, %p323
      %p325 = scmp.ne.s32.totalorder %s313, %s314
      %p326 = scmp.eq.s32.totalorder %s42, 1
      %p327 = por %p325, %p326
      %p329 = scmp.ne.s32.totalorder %s314, %s328
      %p330 = scmp.eq.s32.totalorder %s42, 0
      %p331 = por %p329, %p330
      %s333 = sadd.s32 %s332, 1
      %p336 = scmp.eq.s32.totalorder %s36, 1
      %p337 = scmp.ne.s32.totalorder %s332, %s334
      %p338 = scmp.eq.s32.totalorder %s36, 0
      %p339 = por %p337, %p338
      %p340 = scmp.ne.s32.totalorder %s332, %s334
      %p341 = scmp.eq.s32.totalorder %s41, 1
      %p342 = por %p340, %p341
      %p343 = scmp.ne.s32.totalorder %s334, %s335
      %p344 = scmp.eq.s32.totalorder %s41, 0
      %p345 = por %p343, %p344
      %p346 = scmp.ne.s32.totalorder %s334, %s335
      %p347 = scmp.eq.s32.totalorder %s42, 1
      %p348 = por %p346, %p347
      %p350 = scmp.ne.s32.totalorder %s335, %s349
      %p351 = scmp.eq.s32.totalorder %s42, 0
      %p352 = por %p350, %p351
      %s354 = sadd.s32 %s353, 1
      %p357 = scmp.eq.s32.totalorder %s36, 1
      %p358 = scmp.ne.s32.totalorder %s353, %s355
      %p359 = scmp.eq.s32.totalorder %s36, 0
      %p360 = por %p358, %p359
      %p361 = scmp.ne.s32.totalorder %s353, %s355
      %p362 = scmp.eq.s32.totalorder %s41, 1
      %p363 = por %p361, %p362
      %p364 = scmp.ne.s32.totalorder %s355, %s356
      %p365 = scmp.eq.s32.totalorder %s41, 0
      %p366 = por %p364, %p365
      %p367 = scmp.ne.s32.totalorder %s355, %s356
      %p368 = scmp.eq.s32.totalorder %s42, 1
      %p369 = por %p367, %p368
      %p371 = scmp.ne.s32.totalorder %s356, %s370
      %p372 = scmp.eq.s32.totalorder %s42, 0
      %p373 = por %p371, %p372
      %s375 = sadd.s32 %s374, 1
      %p378 = scmp.eq.s32.totalorder %s36, 1
      %p379 = scmp.ne.s32.totalorder %s374, %s376
      %p380 = scmp.eq.s32.totalorder %s36, 0
      %p381 = por %p379, %p380
      %p382 = scmp.ne.s32.totalorder %s374, %s376
      %p383 = scmp.eq.s32.totalorder %s41, 1
      %p384 = por %p382, %p383
      %p385 = scmp.ne.s32.totalorder %s376, %s377
      %p386 = scmp.eq.s32.totalorder %s41, 0
      %p387 = por %p385, %p386
      %p388 = scmp.ne.s32.totalorder %s376, %s377
      %p389 = scmp.eq.s32.totalorder %s42, 1
      %p390 = por %p388, %p389
      %p392 = scmp.ne.s32.totalorder %s377, %s391
      %p393 = scmp.eq.s32.totalorder %s42, 0
      %p394 = por %p392, %p393
      %s396 = sadd.s32 %s395, 1
      %p399 = scmp.eq.s32.totalorder %s36, 1
      %p400 = scmp.ne.s32.totalorder %s395, %s397
      %p401 = scmp.eq.s32.totalorder %s36, 0
      %p402 = por %p400, %p401
      %p403 = scmp.ne.s32.totalorder %s395, %s397
      %p404 = scmp.eq.s32.totalorder %s41, 1
      %p405 = por %p403, %p404
      %p406 = scmp.ne.s32.totalorder %s397, %s398
      %p407 = scmp.eq.s32.totalorder %s41, 0
      %p408 = por %p406, %p407
      %p409 = scmp.ne.s32.totalorder %s397, %s398
      %p410 = scmp.eq.s32.totalorder %s42, 1
      %p411 = por %p409, %p410
      %p413 = scmp.ne.s32.totalorder %s398, %s412
      %p414 = scmp.eq.s32.totalorder %s42, 0
      %p415 = por %p413, %p414
      %s417 = sadd.s32 %s416, 1
      %p420 = scmp.eq.s32.totalorder %s36, 1
      %p421 = scmp.ne.s32.totalorder %s416, %s418
      %p422 = scmp.eq.s32.totalorder %s36, 0
      %p423 = por %p421, %p422
      %p424 = scmp.ne.s32.totalorder %s416, %s418
      %p425 = scmp.eq.s32.totalorder %s41, 1
      %p426 = por %p424, %p425
      %p427 = scmp.ne.s32.totalorder %s418, %s419
      %p428 = scmp.eq.s32.totalorder %s41, 0
      %p429 = por %p427, %p428
      %p430 = scmp.ne.s32.totalorder %s418, %s419
      %p431 = scmp.eq.s32.totalorder %s42, 1
      %p432 = por %p430, %p431
      %p434 = scmp.ne.s32.totalorder %s419, %s433
      %p435 = scmp.eq.s32.totalorder %s42, 0
      %p436 = por %p434, %p435
      %s438 = sadd.s32 %s437, 1
      %p441 = scmp.eq.s32.totalorder %s36, 1
      %p442 = scmp.ne.s32.totalorder %s437, %s439
      %p443 = scmp.eq.s32.totalorder %s36, 0
      %p444 = por %p442, %p443
      %p445 = scmp.ne.s32.totalorder %s437, %s439
      %p446 = scmp.eq.s32.totalorder %s41, 1
      %p447 = por %p445, %p446
      %p448 = scmp.ne.s32.totalorder %s439, %s440
      %p449 = scmp.eq.s32.totalorder %s41, 0
      %p450 = por %p448, %p449
      %p451 = scmp.ne.s32.totalorder %s439, %s440
      %p452 = scmp.eq.s32.totalorder %s42, 1
      %p453 = por %p451, %p452
      %p455 = scmp.ne.s32.totalorder %s440, %s454
      %p456 = scmp.eq.s32.totalorder %s42, 0
      %p457 = por %p455, %p456
      %s459 = sadd.s32 %s458, 1
      %p462 = scmp.eq.s32.totalorder %s36, 1
      %p463 = scmp.ne.s32.totalorder %s458, %s460
      %p464 = scmp.eq.s32.totalorder %s36, 0
      %p465 = por %p463, %p464
      %p466 = scmp.ne.s32.totalorder %s458, %s460
      %p467 = scmp.eq.s32.totalorder %s41, 1
      %p468 = por %p466, %p467
      %p469 = scmp.ne.s32.totalorder %s460, %s461
      %p470 = scmp.eq.s32.totalorder %s41, 0
      %p471 = por %p469, %p470
      %p472 = scmp.ne.s32.totalorder %s460, %s461
      %p473 = scmp.eq.s32.totalorder %s42, 1
      %p474 = por %p472, %p473
      %p476 = scmp.ne.s32.totalorder %s461, %s475
      %p477 = scmp.eq.s32.totalorder %s42, 0
      %p478 = por %p476, %p477
      %s480 = sadd.s32 %s479, 1
      %p483 = scmp.eq.s32.totalorder %s36, 1
      %p484 = scmp.ne.s32.totalorder %s479, %s481
      %p485 = scmp.eq.s32.totalorder %s36, 0
      %p486 = por %p484, %p485
      %p487 = scmp.ne.s32.totalorder %s479, %s481
      %p488 = scmp.eq.s32.totalorder %s41, 1
      %p489 = por %p487, %p488
      %p490 = scmp.ne.s32.totalorder %s481, %s482
      %p491 = scmp.eq.s32.totalorder %s41, 0
      %p492 = por %p490, %p491
      %p493 = scmp.ne.s32.totalorder %s481, %s482
      %p494 = scmp.eq.s32.totalorder %s42, 1
      %p495 = por %p493, %p494
      %p497 = scmp.ne.s32.totalorder %s482, %s496
      %p498 = scmp.eq.s32.totalorder %s42, 0
      %p499 = por %p497, %p498
      %s501 = sadd.s32 %s500, 1
      %p504 = scmp.eq.s32.totalorder %s36, 1
      %p505 = scmp.ne.s32.totalorder %s500, %s502
      %p506 = scmp.eq.s32.totalorder %s36, 0
      %p507 = por %p505, %p506
      %p508 = scmp.ne.s32.totalorder %s500, %s502
      %p509 = scmp.eq.s32.totalorder %s41, 1
      %p510 = por %p508, %p509
      %p511 = scmp.ne.s32.totalorder %s502, %s503
      %p512 = scmp.eq.s32.totalorder %s41, 0
      %p513 = por %p511, %p512
      %p514 = scmp.ne.s32.totalorder %s502, %s503
      %p515 = scmp.eq.s32.totalorder %s42, 1
      %p516 = por %p514, %p515
      %p518 = scmp.ne.s32.totalorder %s503, %s517
      %p519 = scmp.eq.s32.totalorder %s42, 0
      %p520 = por %p518, %p519
      %s522 = sadd.s32 %s521, 1
      %p525 = scmp.eq.s32.totalorder %s36, 1
      %p526 = scmp.ne.s32.totalorder %s521, %s523
      %p527 = scmp.eq.s32.totalorder %s36, 0
      %p528 = por %p526, %p527
      %p529 = scmp.ne.s32.totalorder %s521, %s523
      %p530 = scmp.eq.s32.totalorder %s41, 1
      %p531 = por %p529, %p530
      %p532 = scmp.ne.s32.totalorder %s523, %s524
      %p533 = scmp.eq.s32.totalorder %s41, 0
      %p534 = por %p532, %p533
      %p535 = scmp.ne.s32.totalorder %s523, %s524
      %p536 = scmp.eq.s32.totalorder %s42, 1
      %p537 = por %p535, %p536
      %p539 = scmp.ne.s32.totalorder %s524, %s538
      %p540 = scmp.eq.s32.totalorder %s42, 0
      %p541 = por %p539, %p540
      %s543 = sadd.s32 %s542, 1
      %p546 = scmp.eq.s32.totalorder %s36, 1
      %p547 = scmp.ne.s32.totalorder %s542, %s544
      %p548 = scmp.eq.s32.totalorder %s36, 0
      %p549 = por %p547, %p548
      %p550 = scmp.ne.s32.totalorder %s542, %s544
      %p551 = scmp.eq.s32.totalorder %s41, 1
      %p552 = por %p550, %p551
      %p553 = scmp.ne.s32.totalorder %s544, %s545
      %p554 = scmp.eq.s32.totalorder %s41, 0
      %p555 = por %p553, %p554
      %p556 = scmp.ne.s32.totalorder %s544, %s545
      %p557 = scmp.eq.s32.totalorder %s42, 1
      %p558 = por %p556, %p557
      %p560 = scmp.ne.s32.totalorder %s545, %s559
      %p561 = scmp.eq.s32.totalorder %s42, 0
      %p562 = por %p560, %p561
      %s564 = sadd.s32 %s563, 1
      %p567 = scmp.eq.s32.totalorder %s36, 1
      %p568 = scmp.ne.s32.totalorder %s563, %s565
      %p569 = scmp.eq.s32.totalorder %s36, 0
      %p570 = por %p568, %p569
      %p571 = scmp.ne.s32.totalorder %s563, %s565
      %p572 = scmp.eq.s32.totalorder %s41, 1
      %p573 = por %p571, %p572
      %p574 = scmp.ne.s32.totalorder %s565, %s566
      %p575 = scmp.eq.s32.totalorder %s41, 0
      %p576 = por %p574, %p575
      %p577 = scmp.ne.s32.totalorder %s565, %s566
      %p578 = scmp.eq.s32.totalorder %s42, 1
      %p579 = por %p577, %p578
      %p581 = scmp.ne.s32.totalorder %s566, %s580
      %p582 = scmp.eq.s32.totalorder %s42, 0
      %p583 = por %p581, %p582
      %s585 = sadd.s32 %s584, 1
      %p588 = scmp.eq.s32.totalorder %s36, 1
      %p589 = scmp.ne.s32.totalorder %s584, %s586
      %p590 = scmp.eq.s32.totalorder %s36, 0
      %p591 = por %p589, %p590
      %p592 = scmp.ne.s32.totalorder %s584, %s586
      %p593 = scmp.eq.s32.totalorder %s41, 1
      %p594 = por %p592, %p593
      %p595 = scmp.ne.s32.totalorder %s586, %s587
      %p596 = scmp.eq.s32.totalorder %s41, 0
      %p597 = por %p595, %p596
      %p598 = scmp.ne.s32.totalorder %s586, %s587
      %p599 = scmp.eq.s32.totalorder %s42, 1
      %p600 = por %p598, %p599
      %p602 = scmp.ne.s32.totalorder %s587, %s601
      %p603 = scmp.eq.s32.totalorder %s42, 0
      %p604 = por %p602, %p603
      %s606 = sadd.s32 %s605, 1
      %p609 = scmp.eq.s32.totalorder %s36, 1
      %p610 = scmp.ne.s32.totalorder %s605, %s607
      %p611 = scmp.eq.s32.totalorder %s36, 0
      %p612 = por %p610, %p611
      %p613 = scmp.ne.s32.totalorder %s605, %s607
      %p614 = scmp.eq.s32.totalorder %s41, 1
      %p615 = por %p613, %p614
      %p616 = scmp.ne.s32.totalorder %s607, %s608
      %p617 = scmp.eq.s32.totalorder %s41, 0
      %p618 = por %p616, %p617
      %p619 = scmp.ne.s32.totalorder %s607, %s608
      %p620 = scmp.eq.s32.totalorder %s42, 1
      %p621 = por %p619, %p620
      %p623 = scmp.ne.s32.totalorder %s608, %s622
      %p624 = scmp.eq.s32.totalorder %s42, 0
      %p625 = por %p623, %p624
      %s626 = ssub.s32 %s36, %s43
      %p627 = scmp.eq.s32.totalorder %s626, 0
      %s629 = sadd.s32 %s628, 1
      %s630 = scalar_select %p627, %s628, %s629
      %p633 = pneg %p627
      %p634 = scmp.eq.s32.totalorder %s36, 1
      %p635 = por %p633, %p634
      %p636 = scmp.ne.s32.totalorder %s628, %s631
      %p637 = scmp.eq.s32.totalorder %s36, 0
      %p638 = por %p636, %p637
      %p639 = scmp.ne.s32.totalorder %s628, %s631
      %p640 = scmp.eq.s32.totalorder %s41, 1
      %p641 = por %p639, %p640
      %p642 = scmp.ne.s32.totalorder %s631, %s632
      %p643 = scmp.eq.s32.totalorder %s41, 0
      %p644 = por %p642, %p643
      %p645 = scmp.ne.s32.totalorder %s631, %s632
      %p646 = scmp.eq.s32.totalorder %s42, 1
      %p647 = por %p645, %p646
      %p649 = scmp.ne.s32.totalorder %s632, %s648
      %p650 = scmp.eq.s32.totalorder %s42, 0
      %p651 = por %p649, %p650
      %p652 = scmp.le.s32.totalorder 1, %s36
      %p653 = scmp.lt.s32.totalorder %s36, 3
      %p654 = pnand %p652, %p653
      %p655 = pneg %p654
      // Predicated region
      $region9: #{tpu_custom_call.1} parent=5 // pred_check
        _
      $region10: #{tpu_custom_call.1} parent=5 // pred_check_branch
        %657 = sbr.rel (%p654) target = $region12
      $region11: #{tpu_custom_call.1} parent=5 // pred_region
        %s658 = ssub.s32 %s36, 1
        // Predicated region
        $region13: #{tpu_custom_call.1} parent=11 // pred_check
          %p659 = pneg %p83
        $region14: #{tpu_custom_call.1} parent=11 // pred_check_branch
          %661 = sbr.rel (%p659) target = $region16
        $region15: #{tpu_custom_call.1} parent=11 // pred_region
          _
        $region16: #{tpu_custom_call.1} parent=11 // pred_fallthru
          _
        // Predicated region
        $region17: #{tpu_custom_call.1} parent=11 // pred_check
          %p662 = pneg %p156
        $region18: #{tpu_custom_call.1} parent=11 // pred_check_branch
          %664 = sbr.rel (%p662) target = $region20
        $region19: #{tpu_custom_call.1} parent=11 // pred_region
          _
        $region20: #{tpu_custom_call.1} parent=11 // pred_fallthru
          _
        // Predicated region
        $region21: #{tpu_custom_call.1} parent=11 // pred_check
          %p665 = pneg %p177
        $region22: #{tpu_custom_call.1} parent=11 // pred_check_branch
          %667 = sbr.rel (%p665) target = $region24
        $region23: #{tpu_custom_call.1} parent=11 // pred_region
          _
        $region24: #{tpu_custom_call.1} parent=11 // pred_fallthru
          _
        // Predicated region
        $region25: #{tpu_custom_call.1} parent=11 // pred_check
          %p668 = pneg %p198
        $region26: #{tpu_custom_call.1} parent=11 // pred_check_branch
          %670 = sbr.rel (%p668) target = $region28
        $region27: #{tpu_custom_call.1} parent=11 // pred_region
          _
        $region28: #{tpu_custom_call.1} parent=11 // pred_fallthru
          _
        // Predicated region
        $region29: #{tpu_custom_call.1} parent=11 // pred_check
          %p671 = pneg %p219
        $region30: #{tpu_custom_call.1} parent=11 // pred_check_branch
          %673 = sbr.rel (%p671) target = $region32
        $region31: #{tpu_custom_call.1} parent=11 // pred_region
          _
        $region32: #{tpu_custom_call.1} parent=11 // pred_fallthru
          _
        // Predicated region
        $region33: #{tpu_custom_call.1} parent=11 // pred_check
          %p674 = pneg %p240
        $region34: #{tpu_custom_call.1} parent=11 // pred_check_branch
          %676 = sbr.rel (%p674) target = $region36
        $region35: #{tpu_custom_call.1} parent=11 // pred_region
          _
        $region36: #{tpu_custom_call.1} parent=11 // pred_fallthru
          _
        // Predicated region
        $region37: #{tpu_custom_call.1} parent=11 // pred_check
          %p677 = pneg %p261
        $region38: #{tpu_custom_call.1} parent=11 // pred_check_branch
          %679 = sbr.rel (%p677) target = $region40
        $region39: #{tpu_custom_call.1} parent=11 // pred_region
          _
        $region40: #{tpu_custom_call.1} parent=11 // pred_fallthru
          _
        // Predicated region
        $region41: #{tpu_custom_call.1} parent=11 // pred_check
          %p680 = pneg %p282
        $region42: #{tpu_custom_call.1} parent=11 // pred_check_branch
          %682 = sbr.rel (%p680) target = $region44
        $region43: #{tpu_custom_call.1} parent=11 // pred_region
          _
        $region44: #{tpu_custom_call.1} parent=11 // pred_fallthru
          _
        // Predicated region
        $region45: #{tpu_custom_call.1} parent=11 // pred_check
          %p683 = pneg %p303
        $region46: #{tpu_custom_call.1} parent=11 // pred_check_branch
          %685 = sbr.rel (%p683) target = $region48
        $region47: #{tpu_custom_call.1} parent=11 // pred_region
          _
        $region48: #{tpu_custom_call.1} parent=11 // pred_fallthru
          _
        // Predicated region
        $region49: #{tpu_custom_call.1} parent=11 // pred_check
          %p686 = pneg %p324
        $region50: #{tpu_custom_call.1} parent=11 // pred_check_branch
          %688 = sbr.rel (%p686) target = $region52
        $region51: #{tpu_custom_call.1} parent=11 // pred_region
          _
        $region52: #{tpu_custom_call.1} parent=11 // pred_fallthru
          _
        // Predicated region
        $region53: #{tpu_custom_call.1} parent=11 // pred_check
          %p689 = pneg %p345
        $region54: #{tpu_custom_call.1} parent=11 // pred_check_branch
          %691 = sbr.rel (%p689) target = $region56
        $region55: #{tpu_custom_call.1} parent=11 // pred_region
          _
        $region56: #{tpu_custom_call.1} parent=11 // pred_fallthru
          _
        // Predicated region
        $region57: #{tpu_custom_call.1} parent=11 // pred_check
          %p692 = pneg %p366
        $region58: #{tpu_custom_call.1} parent=11 // pred_check_branch
          %694 = sbr.rel (%p692) target = $region60
        $region59: #{tpu_custom_call.1} parent=11 // pred_region
          _
        $region60: #{tpu_custom_call.1} parent=11 // pred_fallthru
          _
        // Predicated region
        $region61: #{tpu_custom_call.1} parent=11 // pred_check
          %p695 = pneg %p387
        $region62: #{tpu_custom_call.1} parent=11 // pred_check_branch
          %697 = sbr.rel (%p695) target = $region64
        $region63: #{tpu_custom_call.1} parent=11 // pred_region
          _
        $region64: #{tpu_custom_call.1} parent=11 // pred_fallthru
          _
        // Predicated region
        $region65: #{tpu_custom_call.1} parent=11 // pred_check
          %p698 = pneg %p408
        $region66: #{tpu_custom_call.1} parent=11 // pred_check_branch
          %700 = sbr.rel (%p698) target = $region68
        $region67: #{tpu_custom_call.1} parent=11 // pred_region
          _
        $region68: #{tpu_custom_call.1} parent=11 // pred_fallthru
          _
        // Predicated region
        $region69: #{tpu_custom_call.1} parent=11 // pred_check
          %p701 = pneg %p429
        $region70: #{tpu_custom_call.1} parent=11 // pred_check_branch
          %703 = sbr.rel (%p701) target = $region72
        $region71: #{tpu_custom_call.1} parent=11 // pred_region
          _
        $region72: #{tpu_custom_call.1} parent=11 // pred_fallthru
          _
        // Predicated region
        $region73: #{tpu_custom_call.1} parent=11 // pred_check
          %p704 = pneg %p450
        $region74: #{tpu_custom_call.1} parent=11 // pred_check_branch
          %706 = sbr.rel (%p704) target = $region76
        $region75: #{tpu_custom_call.1} parent=11 // pred_region
          _
        $region76: #{tpu_custom_call.1} parent=11 // pred_fallthru
          _
        // Predicated region
        $region77: #{tpu_custom_call.1} parent=11 // pred_check
          %p707 = pneg %p471
        $region78: #{tpu_custom_call.1} parent=11 // pred_check_branch
          %709 = sbr.rel (%p707) target = $region80
        $region79: #{tpu_custom_call.1} parent=11 // pred_region
          _
        $region80: #{tpu_custom_call.1} parent=11 // pred_fallthru
          _
        // Predicated region
        $region81: #{tpu_custom_call.1} parent=11 // pred_check
          %p710 = pneg %p492
        $region82: #{tpu_custom_call.1} parent=11 // pred_check_branch
          %712 = sbr.rel (%p710) target = $region84
        $region83: #{tpu_custom_call.1} parent=11 // pred_region
          _
        $region84: #{tpu_custom_call.1} parent=11 // pred_fallthru
          _
        // Predicated region
        $region85: #{tpu_custom_call.1} parent=11 // pred_check
          %p713 = pneg %p513
        $region86: #{tpu_custom_call.1} parent=11 // pred_check_branch
          %715 = sbr.rel (%p713) target = $region88
        $region87: #{tpu_custom_call.1} parent=11 // pred_region
          _
        $region88: #{tpu_custom_call.1} parent=11 // pred_fallthru
          _
        // Predicated region
        $region89: #{tpu_custom_call.1} parent=11 // pred_check
          %p716 = pneg %p534
        $region90: #{tpu_custom_call.1} parent=11 // pred_check_branch
          %718 = sbr.rel (%p716) target = $region92
        $region91: #{tpu_custom_call.1} parent=11 // pred_region
          _
        $region92: #{tpu_custom_call.1} parent=11 // pred_fallthru
          _
        // Predicated region
        $region93: #{tpu_custom_call.1} parent=11 // pred_check
          %p719 = pneg %p555
        $region94: #{tpu_custom_call.1} parent=11 // pred_check_branch
          %721 = sbr.rel (%p719) target = $region96
        $region95: #{tpu_custom_call.1} parent=11 // pred_region
          _
        $region96: #{tpu_custom_call.1} parent=11 // pred_fallthru
          _
        // Predicated region
        $region97: #{tpu_custom_call.1} parent=11 // pred_check
          %p722 = pneg %p576
        $region98: #{tpu_custom_call.1} parent=11 // pred_check_branch
          %724 = sbr.rel (%p722) target = $region100
        $region99: #{tpu_custom_call.1} parent=11 // pred_region
          _
        $region100: #{tpu_custom_call.1} parent=11 // pred_fallthru
          _
        // Predicated region
        $region101: #{tpu_custom_call.1} parent=11 // pred_check
          %p725 = pneg %p597
        $region102: #{tpu_custom_call.1} parent=11 // pred_check_branch
          %727 = sbr.rel (%p725) target = $region104
        $region103: #{tpu_custom_call.1} parent=11 // pred_region
          _
        $region104: #{tpu_custom_call.1} parent=11 // pred_fallthru
          _
        // Predicated region
        $region105: #{tpu_custom_call.1} parent=11 // pred_check
          %p728 = pneg %p618
        $region106: #{tpu_custom_call.1} parent=11 // pred_check_branch
          %730 = sbr.rel (%p728) target = $region108
        $region107: #{tpu_custom_call.1} parent=11 // pred_region
          _
        $region108: #{tpu_custom_call.1} parent=11 // pred_fallthru
          _
      $region12: #{tpu_custom_call.1} parent=5 // pred_fallthru
        _
      %p731 = scmp.lt.s32.totalorder %s36, 2
      // Predicated region
      $region109: #{tpu_custom_call.1} parent=5 // pred_check
        %p732 = pneg %p731
      $region110: #{tpu_custom_call.1} parent=5 // pred_check_branch
        %734 = sbr.rel (%p732) target = $region112
      $region111: #{tpu_custom_call.1} parent=5 // pred_region
        // Predicated region
        $region113: #{tpu_custom_call.1} parent=111 // pred_check
          %p735 = pneg %p56
        $region114: #{tpu_custom_call.1} parent=111 // pred_check_branch
          %737 = sbr.rel (%p735) target = $region116
        $region115: #{tpu_custom_call.1} parent=111 // pred_region
          %p738 = scmp.lt.s32.totalorder %s36, 1
          %s739 = scalar_select %p738, %s36, 1
          %s740 = smul.addr %s739, 8
          %s741 = scalar_lea.vmem %s0, %s740
        $region116: #{tpu_custom_call.1} parent=111 // pred_fallthru
          _
        // Predicated region
        $region117: #{tpu_custom_call.1} parent=111 // pred_check
          %p742 = pneg %p103
        $region118: #{tpu_custom_call.1} parent=111 // pred_check_branch
          %744 = sbr.rel (%p742) target = $region120
        $region119: #{tpu_custom_call.1} parent=111 // pred_region
          %p745 = scmp.lt.s32.totalorder %s36, 1
          %s746 = scalar_select %p745, %s36, 1
          %s747 = scalar_lea.vmem %s2, %s746
        $region120: #{tpu_custom_call.1} parent=111 // pred_fallthru
          _
        // Predicated region
        $region121: #{tpu_custom_call.1} parent=111 // pred_check
          %p748 = pneg %p129
        $region122: #{tpu_custom_call.1} parent=111 // pred_check_branch
          %750 = sbr.rel (%p748) target = $region124
        $region123: #{tpu_custom_call.1} parent=111 // pred_region
          %p751 = scmp.lt.s32.totalorder %s36, 1
          %s752 = scalar_select %p751, %s36, 1
          %s753 = scalar_lea.vmem %s3, %s752
        $region124: #{tpu_custom_call.1} parent=111 // pred_fallthru
          _
      $region112: #{tpu_custom_call.1} parent=5 // pred_fallthru
        _
      %p754 = scmp.le.s32.totalorder 1, %s36
      %p755 = scmp.lt.s32.totalorder %s36, 3
      %p756 = pnand %p754, %p755
      %p757 = pneg %p756
      // Predicated region
      $region125: #{tpu_custom_call.1} parent=5 // pred_check
        _
      $region126: #{tpu_custom_call.1} parent=5 // pred_check_branch
        %759 = sbr.rel (%p756) target = $region128
      $region127: #{tpu_custom_call.1} parent=5 // pred_region
        %s760 = ssub.s32 %s36, 1
        %p761 = scmp.lt.s32.totalorder %s41, 1
        %s762 = scalar_select %p761, %s41, 1
        %s763 = smul.addr %s762, 8
        %s764 = scalar_lea.vmem %s0, %s763
        %p765 = pneg %p62
        %p766 = pneg %p59
        %p767 = pneg %p83
        %p768 = pneg %p80
        %p769 = scmp.lt.s32.totalorder %s41, 1
        %s770 = scalar_select %p769, %s41, 1
        %s771 = scalar_lea.vmem %s2, %s770
        %p772 = pneg %p109
        %p773 = pneg %p106
        %p774 = scmp.lt.s32.totalorder %s41, 1
        %s775 = scalar_select %p774, %s41, 1
        %s776 = scalar_lea.vmem %s3, %s775
        %p777 = pneg %p135
        %p778 = pneg %p132
        %p779 = pneg %p156
        %p780 = pneg %p153
        %p781 = pneg %p177
        %p782 = pneg %p174
        %p783 = pneg %p198
        %p784 = pneg %p195
        %p785 = pneg %p219
        %p786 = pneg %p216
        %p787 = pneg %p240
        %p788 = pneg %p237
        %p789 = pneg %p261
        %p790 = pneg %p258
        %p791 = pneg %p282
        %p792 = pneg %p279
        %p793 = pneg %p303
        %p794 = pneg %p300
        %p795 = pneg %p324
        %p796 = pneg %p321
        %p797 = pneg %p345
        %p798 = pneg %p342
        %p799 = pneg %p366
        %p800 = pneg %p363
        %p801 = pneg %p387
        %p802 = pneg %p384
        %p803 = pneg %p408
        %p804 = pneg %p405
        %p805 = pneg %p429
        %p806 = pneg %p426
        %p807 = pneg %p450
        %p808 = pneg %p447
        %p809 = pneg %p471
        %p810 = pneg %p468
        %p811 = pneg %p492
        %p812 = pneg %p489
        %p813 = pneg %p513
        %p814 = pneg %p510
        %p815 = pneg %p534
        %p816 = pneg %p531
        %p817 = pneg %p555
        %p818 = pneg %p552
        %p819 = pneg %p576
        %p820 = pneg %p573
        %p821 = pneg %p597
        %p822 = pneg %p594
        %p823 = pneg %p618
        %p824 = pneg %p615
        %p825 = pneg %p644
        %p826 = pneg %p641
        %s827 = sand.u32 %s631, 1
        %s828 = scalar_lea.sflag [#allocation3], %s827
        %s829 = sand.u32 %s631, 1
        %s830 = scalar_lea.vmem [#allocation2], %s829
        %p831 = scmp.lt.s32.totalorder %s41, 1
        %s832 = scalar_select %p831, %s41, 1
        %s833 = smul.addr %s832, 8
        %s834 = scalar_lea.vmem %s0, %s833
        %p835 = scmp.lt.s32.totalorder %s41, 1
        %s836 = scalar_select %p835, %s41, 1
        %s837 = scalar_lea.vmem %s2, %s836
        %p838 = scmp.lt.s32.totalorder %s41, 1
        %s839 = scalar_select %p838, %s41, 1
        %s840 = scalar_lea.vmem %s3, %s839
        %v842 = vld [vmem:[%s834] sm:$0xff]
        %v843 = vld [vmem:[%s1] sm:$0xff]
        %v844 = vld [vmem:[%s837] sm:$0x1]
        %vm845 = vcmp.gt.f32.partialorder %v844, 0.5
        %v846 = vadd.f32 %v842, %v843
        %v847 = vpack.c.bf16 %v846, %v846
        %v848 = vld [vmem:[%s4] sm:$0xf]
        %v849 = vld [vmem:[%s4 + $0x4] sm:$0xf]
        %v850 = vld [vmem:[%s4 + $0x8] sm:$0xf]
        %v851 = vld [vmem:[%s4 + $0xc] sm:$0xf]
        %v852 = vld [vmem:[%s5] sm:$0x1]
        %v854 = vlaneseq
        %v855 = vshrl.u32 %v854, 7
        %v856 = vsub.s32 0, %v855
        %v857 = vrot.slane %v852, %v856
        %v863 = vunpack.c.l.b16 %v848
        %v864 = vunpack.c.l.b16 %v849
        %v865 = vunpack.c.l.b16 %v850
        %v866 = vunpack.c.l.b16 %v851
        %v867 = vpack.c.b16 %v864, %v863
        %v868 = vpack.c.b16 %v866, %v865
        %vm871 = vcmask 261120
        %v873 = vsel %vm871, %v847, 0
        %875 = vmatprep.subr.bf16.mxu0 0
        %876 = vmatpush1.bf16.msra.mxu0 %v867
        %877 = vmatprep.subr.bf16.mxu0 0
        %878 = vmatpush1.bf16.msra.mxu0 %v868
        %879 = vmatprep.subr.bf16.mxu0 0
        %880 = vmatpush1.bf16.msra.mxu0 0
        %881 = vmatprep.subr.bf16.mxu0 0
        %882 = vmatpush1.bf16.msra.mxu0 0
        %883 = vmatprep.subr.bf16.mxu0 0
        %884 = vmatpush1.bf16.msra.mxu0 0
        %885 = vmatprep.subr.bf16.mxu0 0
        %886 = vmatpush1.bf16.msra.mxu0 0
        %887 = vmatprep.subr.bf16.mxu0 0
        %888 = vmatpush1.bf16.msra.mxu0 0
        %889 = vmatprep.subr.bf16.mxu0 0
        %890 = vmatpush1.bf16.msra.mxu0 0
        %891 = vmatprep.subr.bf16.mxu0 0
        %892 = vmatpush1.bf16.msra.mxu0 0
        %893 = vmatprep.subr.bf16.mxu0 0
        %894 = vmatpush1.bf16.msra.mxu0 0
        %895 = vmatprep.subr.bf16.mxu0 0
        %896 = vmatpush1.bf16.msra.mxu0 0
        %897 = vmatprep.subr.bf16.mxu0 0
        %898 = vmatpush1.bf16.msra.mxu0 0
        %899 = vmatprep.subr.bf16.mxu0 0
        %900 = vmatpush1.bf16.msra.mxu0 0
        %901 = vmatprep.subr.bf16.mxu0 0
        %902 = vmatpush1.bf16.msra.mxu0 0
        %903 = vmatprep.subr.bf16.mxu0 0
        %904 = vmatpush1.bf16.msra.mxu0 0
        %905 = vmatprep.subr.bf16.mxu0 0
        %906 = vmatpush1.bf16.msra.mxu0 0
        %907 = vmatprep.mubr.bf16.mxu0 0
        %908 = vmatmul.mubr.bf16.gmra.mrb[0].mxu0 %v873
        %v909 = vpop.f32.mrb[0].mxu0
        %v910 = vadd.f32 %v857, %v909
        %v911 = vpop.f32.mrb[0].mxu0
        %v912 = vpop.f32.mrb[0].mxu0
        %v913 = vpop.f32.mrb[0].mxu0
        %914 = vdwg.mxu0
        %v915 = vld [vmem:[%s6] sm:$0xf]
        %v916 = vld [vmem:[%s6 + $0x4] sm:$0xf]
        %v917 = vld [vmem:[%s6 + $0x8] sm:$0xf]
        %v918 = vld [vmem:[%s6 + $0xc] sm:$0xf]
        %v919 = vld [vmem:[%s7] sm:$0x1]
        %v921 = vlaneseq
        %v922 = vshrl.u32 %v921, 7
        %v923 = vsub.s32 0, %v922
        %v924 = vrot.slane %v919, %v923
        %v930 = vunpack.c.l.b16 %v915
        %v931 = vunpack.c.l.b16 %v916
        %v932 = vunpack.c.l.b16 %v917
        %v933 = vunpack.c.l.b16 %v918
        %v934 = vpack.c.b16 %v931, %v930
        %v935 = vpack.c.b16 %v933, %v932
        %938 = vmatprep.subr.bf16.mxu0 0
        %939 = vmatpush1.bf16.msra.mxu0 %v934
        %940 = vmatprep.subr.bf16.mxu0 0
        %941 = vmatpush1.bf16.msra.mxu0 %v935
        %942 = vmatprep.subr.bf16.mxu0 0
        %943 = vmatpush1.bf16.msra.mxu0 0
        %944 = vmatprep.subr.bf16.mxu0 0
        %945 = vmatpush1.bf16.msra.mxu0 0
        %946 = vmatprep.subr.bf16.mxu0 0
        %947 = vmatpush1.bf16.msra.mxu0 0
        %948 = vmatprep.subr.bf16.mxu0 0
        %949 = vmatpush1.bf16.msra.mxu0 0
        %950 = vmatprep.subr.bf16.mxu0 0
        %951 = vmatpush1.bf16.msra.mxu0 0
        %952 = vmatprep.subr.bf16.mxu0 0
        %953 = vmatpush1.bf16.msra.mxu0 0
        %954 = vmatprep.subr.bf16.mxu0 0
        %955 = vmatpush1.bf16.msra.mxu0 0
        %956 = vmatprep.subr.bf16.mxu0 0
        %957 = vmatpush1.bf16.msra.mxu0 0
        %958 = vmatprep.subr.bf16.mxu0 0
        %959 = vmatpush1.bf16.msra.mxu0 0
        %960 = vmatprep.subr.bf16.mxu0 0
        %961 = vmatpush1.bf16.msra.mxu0 0
        %962 = vmatprep.subr.bf16.mxu0 0
        %963 = vmatpush1.bf16.msra.mxu0 0
        %964 = vmatprep.subr.bf16.mxu0 0
        %965 = vmatpush1.bf16.msra.mxu0 0
        %966 = vmatprep.subr.bf16.mxu0 0
        %967 = vmatpush1.bf16.msra.mxu0 0
        %968 = vmatprep.subr.bf16.mxu0 0
        %969 = vmatpush1.bf16.msra.mxu0 0
        %970 = vmatprep.mubr.bf16.mxu0 0
        %971 = vmatmul.mubr.bf16.gmra.mrb[0].mxu0 %v873
        %v972 = vpop.f32.mrb[0].mxu0
        %v973 = vadd.f32 %v924, %v972
        %v974 = vpop.f32.mrb[0].mxu0
        %v975 = vpop.f32.mrb[0].mxu0
        %v976 = vpop.f32.mrb[0].mxu0
        %977 = vdwg.mxu0
        %v978 = vld [vmem:[%s8] sm:$0xf]
        %v979 = vld [vmem:[%s8 + $0x4] sm:$0xf]
        %v980 = vld [vmem:[%s8 + $0x8] sm:$0xf]
        %v981 = vld [vmem:[%s8 + $0xc] sm:$0xf]
        %v982 = vld [vmem:[%s9] sm:$0x1]
        %v984 = vlaneseq
        %v985 = vshrl.u32 %v984, 7
        %v986 = vsub.s32 0, %v985
        %v987 = vrot.slane %v982, %v986
        %v993 = vunpack.c.l.b16 %v978
        %v994 = vunpack.c.l.b16 %v979
        %v995 = vunpack.c.l.b16 %v980
        %v996 = vunpack.c.l.b16 %v981
        %v997 = vpack.c.b16 %v994, %v993
        %v998 = vpack.c.b16 %v996, %v995
        %1001 = vmatprep.subr.bf16.mxu0 0
        %1002 = vmatpush1.bf16.msra.mxu0 %v997
        %1003 = vmatprep.subr.bf16.mxu0 0
        %1004 = vmatpush1.bf16.msra.mxu0 %v998
        %1005 = vmatprep.subr.bf16.mxu0 0
        %1006 = vmatpush1.bf16.msra.mxu0 0
        %1007 = vmatprep.subr.bf16.mxu0 0
        %1008 = vmatpush1.bf16.msra.mxu0 0
        %1009 = vmatprep.subr.bf16.mxu0 0
        %1010 = vmatpush1.bf16.msra.mxu0 0
        %1011 = vmatprep.subr.bf16.mxu0 0
        %1012 = vmatpush1.bf16.msra.mxu0 0
        %1013 = vmatprep.subr.bf16.mxu0 0
        %1014 = vmatpush1.bf16.msra.mxu0 0
        %1015 = vmatprep.subr.bf16.mxu0 0
        %1016 = vmatpush1.bf16.msra.mxu0 0
        %1017 = vmatprep.subr.bf16.mxu0 0
        %1018 = vmatpush1.bf16.msra.mxu0 0
        %1019 = vmatprep.subr.bf16.mxu0 0
        %1020 = vmatpush1.bf16.msra.mxu0 0
        %1021 = vmatprep.subr.bf16.mxu0 0
        %1022 = vmatpush1.bf16.msra.mxu0 0
        %1023 = vmatprep.subr.bf16.mxu0 0
        %1024 = vmatpush1.bf16.msra.mxu0 0
        %1025 = vmatprep.subr.bf16.mxu0 0
        %1026 = vmatpush1.bf16.msra.mxu0 0
        %1027 = vmatprep.subr.bf16.mxu0 0
        %1028 = vmatpush1.bf16.msra.mxu0 0
        %1029 = vmatprep.subr.bf16.mxu0 0
        %1030 = vmatpush1.bf16.msra.mxu0 0
        %1031 = vmatprep.subr.bf16.mxu0 0
        %1032 = vmatpush1.bf16.msra.mxu0 0
        %1033 = vmatprep.mubr.bf16.mxu0 0
        %1034 = vmatmul.mubr.bf16.gmra.mrb[0].mxu0 %v873
        %v1035 = vpop.f32.mrb[0].mxu0
        %v1036 = vadd.f32 %v987, %v1035
        %v1037 = vpop.f32.mrb[0].mxu0
        %v1038 = vpop.f32.mrb[0].mxu0
        %v1039 = vpop.f32.mrb[0].mxu0
        %1040 = vdwg.mxu0
        %v1041 = vmul.f32 %v910, 0.17677669
        %v1042 = vpack.c.bf16 %v1041, %v1041
        %v1043 = vpack.c.bf16 %v973, %v973
        %v1044 = vpack.c.bf16 %v1036, %v1036
        %v1046 = vsel %vm871, %v1042, 0
        %v1049 = vsel %vm871, %v1043, 0
        %1051 = vmatprep.subr.bf16.mxu0 0
        %1052 = vmatpush1.bf16.xpose.msra.mxu0 %v1049
        %1053 = vmatprep.subr.bf16.mxu0 0
        %1054 = vmatpush1.bf16.xpose.msra.mxu0 0
        %1055 = vmatprep.subr.bf16.mxu0 0
        %1056 = vmatpush1.bf16.xpose.msra.mxu0 0
        %1057 = vmatprep.subr.bf16.mxu0 0
        %1058 = vmatpush1.bf16.xpose.msra.mxu0 0
        %1059 = vmatprep.subr.bf16.mxu0 0
        %1060 = vmatpush1.bf16.xpose.msra.mxu0 0
        %1061 = vmatprep.subr.bf16.mxu0 0
        %1062 = vmatpush1.bf16.xpose.msra.mxu0 0
        %1063 = vmatprep.subr.bf16.mxu0 0
        %1064 = vmatpush1.bf16.xpose.msra.mxu0 0
        %1065 = vmatprep.subr.bf16.mxu0 0
        %1066 = vmatpush1.bf16.xpose.msra.mxu0 0
        %1067 = vmatprep.subr.bf16.mxu0 0
        %1068 = vmatpush1.bf16.xpose.msra.mxu0 0
        %1069 = vmatprep.subr.bf16.mxu0 0
        %1070 = vmatpush1.bf16.xpose.msra.mxu0 0
        %1071 = vmatprep.subr.bf16.mxu0 0
        %1072 = vmatpush1.bf16.xpose.msra.mxu0 0
        %1073 = vmatprep.subr.bf16.mxu0 0
        %1074 = vmatpush1.bf16.xpose.msra.mxu0 0
        %1075 = vmatprep.subr.bf16.mxu0 0
        %1076 = vmatpush1.bf16.xpose.msra.mxu0 0
        %1077 = vmatprep.subr.bf16.mxu0 0
        %1078 = vmatpush1.bf16.xpose.msra.mxu0 0
        %1079 = vmatprep.subr.bf16.mxu0 0
        %1080 = vmatpush1.bf16.xpose.msra.mxu0 0
        %1081 = vmatprep.subr.bf16.mxu0 0
        %1082 = vmatpush1.bf16.xpose.msra.mxu0 0
        %1083 = vmatprep.mubr.bf16.mxu0 0
        %1084 = vmatmul.mubr.bf16.gmra.mrb[0].mxu0 %v1046
        %v1085 = vpop.f32.mrb[0].mxu0
        %v1086 = vadd.f32 0.0, %v1085
        %v1087 = vpop.f32.mrb[0].mxu0
        %v1088 = vpop.f32.mrb[0].mxu0
        %v1089 = vpop.f32.mrb[0].mxu0
        %1090 = vdwg.mxu0
        %v1091 = vsel %vm845, 1, 0
        %v1092 = vlaneseq
        %v1093 = vshrl.u32 %v1092, 7
        %v1094 = vsub.s32 0, %v1093
        %v1095 = vrot.slane %v1091, %v1094
        %vm1096 = vcmp.eq.s32.totalorder %v1095, 1
        %v1097 = vsel %vm1096, -1e+30, %v1086
        %vm1098 = vcmask 64512
        %v1099 = vsel %vm1098, %v1097, -inf
        %1100 = vmax.xlane.f32.xlu0 %v1099
        %v1101 = vpop.xlane.xlu0 %1100
        %v1102 = vsub.f32 %v1097, %v1101
        %v1103 = vmul.f32 %v1102, 1.442695
        %v1104 = vpow.pop %v1103
        %v1105 = vsel %vm1098, %v1104, 0.0
        %1106 = vadd.xlane.f32.xlu0 %v1105
        %v1107 = vpop.xlane.xlu0 %1106
        %v1108 = vrcp.pop %v1107
        %v1109 = vmul.f32 %v1104, %v1108
        %v1110 = vpack.c.bf16 %v1109, %v1109
        %v1112 = vsel %vm1098, %v1110, 0
        %vm1114 = vcmask 1043456
        %v1116 = vsel %vm1114, %v1044, 0
        %1118 = vmatprep.subr.bf16.mxu0 0
        %1119 = vmatpush1.bf16.msra.mxu0 %v1116
        %1120 = vmatprep.subr.bf16.mxu0 0
        %1121 = vmatpush1.bf16.msra.mxu0 0
        %1122 = vmatprep.subr.bf16.mxu0 0
        %1123 = vmatpush1.bf16.msra.mxu0 0
        %1124 = vmatprep.subr.bf16.mxu0 0
        %1125 = vmatpush1.bf16.msra.mxu0 0
        %1126 = vmatprep.subr.bf16.mxu0 0
        %1127 = vmatpush1.bf16.msra.mxu0 0
        %1128 = vmatprep.subr.bf16.mxu0 0
        %1129 = vmatpush1.bf16.msra.mxu0 0
        %1130 = vmatprep.subr.bf16.mxu0 0
        %1131 = vmatpush1.bf16.msra.mxu0 0
        %1132 = vmatprep.subr.bf16.mxu0 0
        %1133 = vmatpush1.bf16.msra.mxu0 0
        %1134 = vmatprep.subr.bf16.mxu0 0
        %1135 = vmatpush1.bf16.msra.mxu0 0
        %1136 = vmatprep.subr.bf16.mxu0 0
        %1137 = vmatpush1.bf16.msra.mxu0 0
        %1138 = vmatprep.subr.bf16.mxu0 0
        %1139 = vmatpush1.bf16.msra.mxu0 0
        %1140 = vmatprep.subr.bf16.mxu0 0
        %1141 = vmatpush1.bf16.msra.mxu0 0
        %1142 = vmatprep.subr.bf16.mxu0 0
        %1143 = vmatpush1.bf16.msra.mxu0 0
        %1144 = vmatprep.subr.bf16.mxu0 0
        %1145 = vmatpush1.bf16.msra.mxu0 0
        %1146 = vmatprep.subr.bf16.mxu0 0
        %1147 = vmatpush1.bf16.msra.mxu0 0
        %1148 = vmatprep.subr.bf16.mxu0 0
        %1149 = vmatpush1.bf16.msra.mxu0 0
        %1150 = vmatprep.mubr.bf16.mxu0 0
        %1151 = vmatmul.mubr.bf16.gmra.mrb[0].mxu0 %v1112
        %v1152 = vpop.f32.mrb[0].mxu0
        %v1153 = vadd.f32 0.0, %v1152
        %v1154 = vpop.f32.mrb[0].mxu0
        %v1155 = vpop.f32.mrb[0].mxu0
        %v1156 = vpop.f32.mrb[0].mxu0
        %1157 = vdwg.mxu0
        %v1158 = vpack.c.bf16 %v1153, %v1153
        %v1159 = vld [vmem:[%s10] sm:$0xf]
        %v1160 = vld [vmem:[%s10 + $0x4] sm:$0xf]
        %v1161 = vld [vmem:[%s10 + $0x8] sm:$0xf]
        %v1162 = vld [vmem:[%s10 + $0xc] sm:$0xf]
        %v1163 = vld [vmem:[%s11] sm:$0x1]
        %v1165 = vlaneseq
        %v1166 = vshrl.u32 %v1165, 7
        %v1167 = vsub.s32 0, %v1166
        %v1168 = vrot.slane %v1163, %v1167
        %v1174 = vunpack.c.l.b16 %v1159
        %v1175 = vunpack.c.l.b16 %v1160
        %v1176 = vunpack.c.l.b16 %v1161
        %v1177 = vunpack.c.l.b16 %v1162
        %v1178 = vpack.c.b16 %v1175, %v1174
        %v1179 = vpack.c.b16 %v1177, %v1176
        %v1183 = vsel %vm871, %v1158, 0
        %1185 = vmatprep.subr.bf16.mxu0 0
        %1186 = vmatpush1.bf16.msra.mxu0 %v1178
        %1187 = vmatprep.subr.bf16.mxu0 0
        %1188 = vmatpush1.bf16.msra.mxu0 %v1179
        %1189 = vmatprep.subr.bf16.mxu0 0
        %1190 = vmatpush1.bf16.msra.mxu0 0
        %1191 = vmatprep.subr.bf16.mxu0 0
        %1192 = vmatpush1.bf16.msra.mxu0 0
        %1193 = vmatprep.subr.bf16.mxu0 0
        %1194 = vmatpush1.bf16.msra.mxu0 0
        %1195 = vmatprep.subr.bf16.mxu0 0
        %1196 = vmatpush1.bf16.msra.mxu0 0
        %1197 = vmatprep.subr.bf16.mxu0 0
        %1198 = vmatpush1.bf16.msra.mxu0 0
        %1199 = vmatprep.subr.bf16.mxu0 0
        %1200 = vmatpush1.bf16.msra.mxu0 0
        %1201 = vmatprep.subr.bf16.mxu0 0
        %1202 = vmatpush1.bf16.msra.mxu0 0
        %1203 = vmatprep.subr.bf16.mxu0 0
        %1204 = vmatpush1.bf16.msra.mxu0 0
        %1205 = vmatprep.subr.bf16.mxu0 0
        %1206 = vmatpush1.bf16.msra.mxu0 0
        %1207 = vmatprep.subr.bf16.mxu0 0
        %1208 = vmatpush1.bf16.msra.mxu0 0
        %1209 = vmatprep.subr.bf16.mxu0 0
        %1210 = vmatpush1.bf16.msra.mxu0 0
        %1211 = vmatprep.subr.bf16.mxu0 0
        %1212 = vmatpush1.bf16.msra.mxu0 0
        %1213 = vmatprep.subr.bf16.mxu0 0
        %1214 = vmatpush1.bf16.msra.mxu0 0
        %1215 = vmatprep.subr.bf16.mxu0 0
        %1216 = vmatpush1.bf16.msra.mxu0 0
        %1217 = vmatprep.mubr.bf16.mxu0 0
        %1218 = vmatmul.mubr.bf16.gmra.mrb[0].mxu0 %v1183
        %v1219 = vpop.f32.mrb[0].mxu0
        %v1220 = vadd.f32 %v1168, %v1219
        %v1221 = vpop.f32.mrb[0].mxu0
        %v1222 = vpop.f32.mrb[0].mxu0
        %v1223 = vpop.f32.mrb[0].mxu0
        %1224 = vdwg.mxu0
        %v1225 = vadd.f32 %v846, %v1220
        %v1226 = vld [vmem:[%s16] sm:$0x1]
        %v1227 = vld [vmem:[%s17] sm:$0x1]
        %v1228 = vsel %vm871, %v1225, 0.0
        %1229 = vadd.xlane.f32.xlu0 %v1228
        %v1230 = vpop.xlane.xlu0 %1229
        %v1231 = vrcp.pop 32.0
        %v1232 = vmul.f32 %v1230, %v1231
        %v1233 = vsub.f32 %v1225, %v1232
        %v1234 = vmul.f32 %v1233, %v1233
        %v1235 = vsel %vm871, %v1234, 0.0
        %1236 = vadd.xlane.f32.xlu0 %v1235
        %v1237 = vpop.xlane.xlu0 %1236
        %v1238 = vmul.f32 %v1237, %v1231
        %v1239 = vadd.f32 %v1238, 1e-05
        %v1240 = vrsqrt.pop %v1239
        %v1241 = vmul.f32 %v1233, %v1240
        %v1243 = vlaneseq
        %v1244 = vshrl.u32 %v1243, 7
        %v1245 = vsub.s32 0, %v1244
        %v1246 = vrot.slane %v1226, %v1245
        %v1248 = vmul.f32 %v1241, %v1246
        %v1250 = vlaneseq
        %v1251 = vshrl.u32 %v1250, 7
        %v1252 = vsub.s32 0, %v1251
        %v1253 = vrot.slane %v1227, %v1252
        %v1255 = vadd.f32 %v1248, %v1253
        %v1256 = vpack.c.bf16 %v1255, %v1255
        %v1257 = vld [vmem:[%s12] sm:$0xff]
        %v1258 = vld [vmem:[%s12 + $0x8] sm:$0xff]
        %v1259 = vld [vmem:[%s12 + $0x10] sm:$0xff]
        %v1260 = vld [vmem:[%s12 + $0x18] sm:$0xff]
        %v1261 = vld [vmem:[%s12 + $0x20] sm:$0xff]
        %v1262 = vld [vmem:[%s12 + $0x28] sm:$0xff]
        %v1263 = vld [vmem:[%s12 + $0x30] sm:$0xff]
        %v1264 = vld [vmem:[%s12 + $0x38] sm:$0xff]
        %v1265 = vld [vmem:[%s12 + $0x40] sm:$0xff]
        %v1266 = vld [vmem:[%s12 + $0x48] sm:$0xff]
        %v1267 = vld [vmem:[%s12 + $0x50] sm:$0xff]
        %v1268 = vld [vmem:[%s12 + $0x58] sm:$0xff]
        %v1269 = vld [vmem:[%s12 + $0x60] sm:$0xff]
        %v1270 = vld [vmem:[%s12 + $0x68] sm:$0xff]
        %v1271 = vld [vmem:[%s12 + $0x70] sm:$0xff]
        %v1272 = vld [vmem:[%s12 + $0x78] sm:$0xff]
        %v1273 = vld [vmem:[%s12 + $0x80] sm:$0xff]
        %v1274 = vld [vmem:[%s12 + $0x88] sm:$0xff]
        %v1275 = vld [vmem:[%s12 + $0x90] sm:$0xff]
        %v1276 = vld [vmem:[%s12 + $0x98] sm:$0xff]
        %v1277 = vld [vmem:[%s12 + $0xa0] sm:$0xff]
        %v1278 = vld [vmem:[%s12 + $0xa8] sm:$0xff]
        %v1279 = vld [vmem:[%s12 + $0xb0] sm:$0xff]
        %v1280 = vld [vmem:[%s12 + $0xb8] sm:$0xff]
        %v1281 = vld [vmem:[%s12 + $0xc0] sm:$0xff]
        %v1282 = vld [vmem:[%s12 + $0xc8] sm:$0xff]
        %v1283 = vld [vmem:[%s12 + $0xd0] sm:$0xff]
        %v1284 = vld [vmem:[%s12 + $0xd8] sm:$0xff]
        %v1285 = vld [vmem:[%s12 + $0xe0] sm:$0xff]
        %v1286 = vld [vmem:[%s12 + $0xe8] sm:$0xff]
        %v1287 = vld [vmem:[%s12 + $0xf0] sm:$0xff]
        %v1288 = vld [vmem:[%s12 + $0xf8] sm:$0xff]
        %v1289 = vld [vmem:[%s13] sm:$0xff]
        %v1290 = vld [vmem:[%s13 + $0x8] sm:$0xff]
        %v1293 = vlaneseq
        %v1294 = vshrl.u32 %v1293, 7
        %v1295 = vsub.s32 0, %v1294
        %v1296 = vrot.slane %v1289, %v1295
        %v1297 = vlaneseq
        %v1298 = vshrl.u32 %v1297, 7
        %v1299 = vsub.s32 1, %v1298
        %v1300 = vrot.slane %v1289, %v1299
        %v1301 = vlaneseq
        %v1302 = vshrl.u32 %v1301, 7
        %v1303 = vsub.s32 2, %v1302
        %v1304 = vrot.slane %v1289, %v1303
        %v1305 = vlaneseq
        %v1306 = vshrl.u32 %v1305, 7
        %v1307 = vsub.s32 3, %v1306
        %v1308 = vrot.slane %v1289, %v1307
        %v1309 = vlaneseq
        %v1310 = vshrl.u32 %v1309, 7
        %v1311 = vsub.s32 4, %v1310
        %v1312 = vrot.slane %v1289, %v1311
        %v1313 = vlaneseq
        %v1314 = vshrl.u32 %v1313, 7
        %v1315 = vsub.s32 5, %v1314
        %v1316 = vrot.slane %v1289, %v1315
        %v1317 = vlaneseq
        %v1318 = vshrl.u32 %v1317, 7
        %v1319 = vsub.s32 6, %v1318
        %v1320 = vrot.slane %v1289, %v1319
        %v1321 = vlaneseq
        %v1322 = vshrl.u32 %v1321, 7
        %v1323 = vsub.s32 7, %v1322
        %v1324 = vrot.slane %v1289, %v1323
        %v1325 = vlaneseq
        %v1326 = vshrl.u32 %v1325, 7
        %v1327 = vsub.s32 0, %v1326
        %v1328 = vrot.slane %v1290, %v1327
        %v1329 = vlaneseq
        %v1330 = vshrl.u32 %v1329, 7
        %v1331 = vsub.s32 1, %v1330
        %v1332 = vrot.slane %v1290, %v1331
        %v1333 = vlaneseq
        %v1334 = vshrl.u32 %v1333, 7
        %v1335 = vsub.s32 2, %v1334
        %v1336 = vrot.slane %v1290, %v1335
        %v1337 = vlaneseq
        %v1338 = vshrl.u32 %v1337, 7
        %v1339 = vsub.s32 3, %v1338
        %v1340 = vrot.slane %v1290, %v1339
        %v1341 = vlaneseq
        %v1342 = vshrl.u32 %v1341, 7
        %v1343 = vsub.s32 4, %v1342
        %v1344 = vrot.slane %v1290, %v1343
        %v1345 = vlaneseq
        %v1346 = vshrl.u32 %v1345, 7
        %v1347 = vsub.s32 5, %v1346
        %v1348 = vrot.slane %v1290, %v1347
        %v1349 = vlaneseq
        %v1350 = vshrl.u32 %v1349, 7
        %v1351 = vsub.s32 6, %v1350
        %v1352 = vrot.slane %v1290, %v1351
        %v1353 = vlaneseq
        %v1354 = vshrl.u32 %v1353, 7
        %v1355 = vsub.s32 7, %v1354
        %v1356 = vrot.slane %v1290, %v1355
        %v1405 = vunpack.c.l.b16 %v1257
        %v1406 = vunpack.c.h.b16 %v1257
        %v1407 = vunpack.c.l.b16 %v1258
        %v1408 = vunpack.c.h.b16 %v1258
        %v1409 = vunpack.c.l.b16 %v1259
        %v1410 = vunpack.c.h.b16 %v1259
        %v1411 = vunpack.c.l.b16 %v1260
        %v1412 = vunpack.c.h.b16 %v1260
        %v1413 = vunpack.c.l.b16 %v1261
        %v1414 = vunpack.c.h.b16 %v1261
        %v1415 = vunpack.c.l.b16 %v1262
        %v1416 = vunpack.c.h.b16 %v1262
        %v1417 = vunpack.c.l.b16 %v1263
        %v1418 = vunpack.c.h.b16 %v1263
        %v1419 = vunpack.c.l.b16 %v1264
        %v1420 = vunpack.c.h.b16 %v1264
        %v1421 = vunpack.c.l.b16 %v1265
        %v1422 = vunpack.c.h.b16 %v1265
        %v1423 = vunpack.c.l.b16 %v1266
        %v1424 = vunpack.c.h.b16 %v1266
        %v1425 = vunpack.c.l.b16 %v1267
        %v1426 = vunpack.c.h.b16 %v1267
        %v1427 = vunpack.c.l.b16 %v1268
        %v1428 = vunpack.c.h.b16 %v1268
        %v1429 = vunpack.c.l.b16 %v1269
        %v1430 = vunpack.c.h.b16 %v1269
        %v1431 = vunpack.c.l.b16 %v1270
        %v1432 = vunpack.c.h.b16 %v1270
        %v1433 = vunpack.c.l.b16 %v1271
        %v1434 = vunpack.c.h.b16 %v1271
        %v1435 = vunpack.c.l.b16 %v1272
        %v1436 = vunpack.c.h.b16 %v1272
        %v1437 = vunpack.c.l.b16 %v1273
        %v1438 = vunpack.c.h.b16 %v1273
        %v1439 = vunpack.c.l.b16 %v1274
        %v1440 = vunpack.c.h.b16 %v1274
        %v1441 = vunpack.c.l.b16 %v1275
        %v1442 = vunpack.c.h.b16 %v1275
        %v1443 = vunpack.c.l.b16 %v1276
        %v1444 = vunpack.c.h.b16 %v1276
        %v1445 = vunpack.c.l.b16 %v1277
        %v1446 = vunpack.c.h.b16 %v1277
        %v1447 = vunpack.c.l.b16 %v1278
        %v1448 = vunpack.c.h.b16 %v1278
        %v1449 = vunpack.c.l.b16 %v1279
        %v1450 = vunpack.c.h.b16 %v1279
        %v1451 = vunpack.c.l.b16 %v1280
        %v1452 = vunpack.c.h.b16 %v1280
        %v1453 = vunpack.c.l.b16 %v1281
        %v1454 = vunpack.c.h.b16 %v1281
        %v1455 = vunpack.c.l.b16 %v1282
        %v1456 = vunpack.c.h.b16 %v1282
        %v1457 = vunpack.c.l.b16 %v1283
        %v1458 = vunpack.c.h.b16 %v1283
        %v1459 = vunpack.c.l.b16 %v1284
        %v1460 = vunpack.c.h.b16 %v1284
        %v1461 = vunpack.c.l.b16 %v1285
        %v1462 = vunpack.c.h.b16 %v1285
        %v1463 = vunpack.c.l.b16 %v1286
        %v1464 = vunpack.c.h.b16 %v1286
        %v1465 = vunpack.c.l.b16 %v1287
        %v1466 = vunpack.c.h.b16 %v1287
        %v1467 = vunpack.c.l.b16 %v1288
        %v1468 = vunpack.c.h.b16 %v1288
        %v1469 = vpack.c.b16 %v1421, %v1405
        %v1470 = vpack.c.b16 %v1422, %v1406
        %v1471 = vpack.c.b16 %v1423, %v1407
        %v1472 = vpack.c.b16 %v1424, %v1408
        %v1473 = vpack.c.b16 %v1425, %v1409
        %v1474 = vpack.c.b16 %v1426, %v1410
        %v1475 = vpack.c.b16 %v1427, %v1411
        %v1476 = vpack.c.b16 %v1428, %v1412
        %v1477 = vpack.c.b16 %v1429, %v1413
        %v1478 = vpack.c.b16 %v1430, %v1414
        %v1479 = vpack.c.b16 %v1431, %v1415
        %v1480 = vpack.c.b16 %v1432, %v1416
        %v1481 = vpack.c.b16 %v1433, %v1417
        %v1482 = vpack.c.b16 %v1434, %v1418
        %v1483 = vpack.c.b16 %v1435, %v1419
        %v1484 = vpack.c.b16 %v1436, %v1420
        %v1485 = vpack.c.b16 %v1453, %v1437
        %v1486 = vpack.c.b16 %v1454, %v1438
        %v1487 = vpack.c.b16 %v1455, %v1439
        %v1488 = vpack.c.b16 %v1456, %v1440
        %v1489 = vpack.c.b16 %v1457, %v1441
        %v1490 = vpack.c.b16 %v1458, %v1442
        %v1491 = vpack.c.b16 %v1459, %v1443
        %v1492 = vpack.c.b16 %v1460, %v1444
        %v1493 = vpack.c.b16 %v1461, %v1445
        %v1494 = vpack.c.b16 %v1462, %v1446
        %v1495 = vpack.c.b16 %v1463, %v1447
        %v1496 = vpack.c.b16 %v1464, %v1448
        %v1497 = vpack.c.b16 %v1465, %v1449
        %v1498 = vpack.c.b16 %v1466, %v1450
        %v1499 = vpack.c.b16 %v1467, %v1451
        %v1500 = vpack.c.b16 %v1468, %v1452
        %v1534 = vsel %vm871, %v1256, 0
        %1536 = vmatprep.subr.bf16.mxu0 %v1470
        %1537 = vmatpush1.bf16.msra.mxu0 %v1469
        %1538 = vmatprep.subr.bf16.mxu0 %v1486
        %1539 = vmatpush1.bf16.msra.mxu0 %v1485
        %1540 = vmatprep.subr.bf16.mxu0 0
        %1541 = vmatpush1.bf16.msra.mxu0 0
        %1542 = vmatprep.subr.bf16.mxu0 0
        %1543 = vmatpush1.bf16.msra.mxu0 0
        %1544 = vmatprep.subr.bf16.mxu0 0
        %1545 = vmatpush1.bf16.msra.mxu0 0
        %1546 = vmatprep.subr.bf16.mxu0 0
        %1547 = vmatpush1.bf16.msra.mxu0 0
        %1548 = vmatprep.subr.bf16.mxu0 0
        %1549 = vmatpush1.bf16.msra.mxu0 0
        %1550 = vmatprep.subr.bf16.mxu0 0
        %1551 = vmatpush1.bf16.msra.mxu0 0
        %1552 = vmatprep.subr.bf16.mxu0 0
        %1553 = vmatpush1.bf16.msra.mxu0 0
        %1554 = vmatprep.subr.bf16.mxu0 0
        %1555 = vmatpush1.bf16.msra.mxu0 0
        %1556 = vmatprep.subr.bf16.mxu0 0
        %1557 = vmatpush1.bf16.msra.mxu0 0
        %1558 = vmatprep.subr.bf16.mxu0 0
        %1559 = vmatpush1.bf16.msra.mxu0 0
        %1560 = vmatprep.subr.bf16.mxu0 0
        %1561 = vmatpush1.bf16.msra.mxu0 0
        %1562 = vmatprep.subr.bf16.mxu0 0
        %1563 = vmatpush1.bf16.msra.mxu0 0
        %1564 = vmatprep.subr.bf16.mxu0 0
        %1565 = vmatpush1.bf16.msra.mxu0 0
        %1566 = vmatprep.subr.bf16.mxu0 0
        %1567 = vmatpush1.bf16.msra.mxu0 0
        %1568 = vmatprep.mubr.bf16.mxu0 0
        %1569 = vmatmul.mubr.bf16.gmra.mrb[0].mxu0 %v1534
        %v1570 = vpop.f32.mrb[0].mxu0
        %v1571 = vadd.f32 %v1296, %v1570
        %v1572 = vpop.f32.mrb[0].mxu0
        %v1573 = vadd.f32 %v1300, %v1572
        %v1574 = vpop.f32.mrb[0].mxu0
        %v1575 = vpop.f32.mrb[0].mxu0
        %1576 = vdwg.mxu0
        %1577 = vmatprep.subr.bf16.mxu0 %v1472
        %1578 = vmatpush1.bf16.msra.mxu0 %v1471
        %1579 = vmatprep.subr.bf16.mxu0 %v1488
        %1580 = vmatpush1.bf16.msra.mxu0 %v1487
        %1581 = vmatprep.subr.bf16.mxu0 0
        %1582 = vmatpush1.bf16.msra.mxu0 0
        %1583 = vmatprep.subr.bf16.mxu0 0
        %1584 = vmatpush1.bf16.msra.mxu0 0
        %1585 = vmatprep.subr.bf16.mxu0 0
        %1586 = vmatpush1.bf16.msra.mxu0 0
        %1587 = vmatprep.subr.bf16.mxu0 0
        %1588 = vmatpush1.bf16.msra.mxu0 0
        %1589 = vmatprep.subr.bf16.mxu0 0
        %1590 = vmatpush1.bf16.msra.mxu0 0
        %1591 = vmatprep.subr.bf16.mxu0 0
        %1592 = vmatpush1.bf16.msra.mxu0 0
        %1593 = vmatprep.subr.bf16.mxu0 0
        %1594 = vmatpush1.bf16.msra.mxu0 0
        %1595 = vmatprep.subr.bf16.mxu0 0
        %1596 = vmatpush1.bf16.msra.mxu0 0
        %1597 = vmatprep.subr.bf16.mxu0 0
        %1598 = vmatpush1.bf16.msra.mxu0 0
        %1599 = vmatprep.subr.bf16.mxu0 0
        %1600 = vmatpush1.bf16.msra.mxu0 0
        %1601 = vmatprep.subr.bf16.mxu0 0
        %1602 = vmatpush1.bf16.msra.mxu0 0
        %1603 = vmatprep.subr.bf16.mxu0 0
        %1604 = vmatpush1.bf16.msra.mxu0 0
        %1605 = vmatprep.subr.bf16.mxu0 0
        %1606 = vmatpush1.bf16.msra.mxu0 0
        %1607 = vmatprep.subr.bf16.mxu0 0
        %1608 = vmatpush1.bf16.msra.mxu0 0
        %1609 = vmatprep.mubr.bf16.mxu0 0
        %1610 = vmatmul.mubr.bf16.gmra.mrb[0].mxu0 %v1534
        %v1611 = vpop.f32.mrb[0].mxu0
        %v1612 = vadd.f32 %v1304, %v1611
        %v1613 = vpop.f32.mrb[0].mxu0
        %v1614 = vadd.f32 %v1308, %v1613
        %v1615 = vpop.f32.mrb[0].mxu0
        %v1616 = vpop.f32.mrb[0].mxu0
        %1617 = vdwg.mxu0
        %1618 = vmatprep.subr.bf16.mxu0 %v1474
        %1619 = vmatpush1.bf16.msra.mxu0 %v1473
        %1620 = vmatprep.subr.bf16.mxu0 %v1490
        %1621 = vmatpush1.bf16.msra.mxu0 %v1489
        %1622 = vmatprep.subr.bf16.mxu0 0
        %1623 = vmatpush1.bf16.msra.mxu0 0
        %1624 = vmatprep.subr.bf16.mxu0 0
        %1625 = vmatpush1.bf16.msra.mxu0 0
        %1626 = vmatprep.subr.bf16.mxu0 0
        %1627 = vmatpush1.bf16.msra.mxu0 0
        %1628 = vmatprep.subr.bf16.mxu0 0
        %1629 = vmatpush1.bf16.msra.mxu0 0
        %1630 = vmatprep.subr.bf16.mxu0 0
        %1631 = vmatpush1.bf16.msra.mxu0 0
        %1632 = vmatprep.subr.bf16.mxu0 0
        %1633 = vmatpush1.bf16.msra.mxu0 0
        %1634 = vmatprep.subr.bf16.mxu0 0
        %1635 = vmatpush1.bf16.msra.mxu0 0
        %1636 = vmatprep.subr.bf16.mxu0 0
        %1637 = vmatpush1.bf16.msra.mxu0 0
        %1638 = vmatprep.subr.bf16.mxu0 0
        %1639 = vmatpush1.bf16.msra.mxu0 0
        %1640 = vmatprep.subr.bf16.mxu0 0
        %1641 = vmatpush1.bf16.msra.mxu0 0
        %1642 = vmatprep.subr.bf16.mxu0 0
        %1643 = vmatpush1.bf16.msra.mxu0 0
        %1644 = vmatprep.subr.bf16.mxu0 0
        %1645 = vmatpush1.bf16.msra.mxu0 0
        %1646 = vmatprep.subr.bf16.mxu0 0
        %1647 = vmatpush1.bf16.msra.mxu0 0
        %1648 = vmatprep.subr.bf16.mxu0 0
        %1649 = vmatpush1.bf16.msra.mxu0 0
        %1650 = vmatprep.mubr.bf16.mxu0 0
        %1651 = vmatmul.mubr.bf16.gmra.mrb[0].mxu0 %v1534
        %v1652 = vpop.f32.mrb[0].mxu0
        %v1653 = vadd.f32 %v1312, %v1652
        %v1654 = vpop.f32.mrb[0].mxu0
        %v1655 = vadd.f32 %v1316, %v1654
        %v1656 = vpop.f32.mrb[0].mxu0
        %v1657 = vpop.f32.mrb[0].mxu0
        %1658 = vdwg.mxu0
        %1659 = vmatprep.subr.bf16.mxu0 %v1476
        %1660 = vmatpush1.bf16.msra.mxu0 %v1475
        %1661 = vmatprep.subr.bf16.mxu0 %v1492
        %1662 = vmatpush1.bf16.msra.mxu0 %v1491
        %1663 = vmatprep.subr.bf16.mxu0 0
        %1664 = vmatpush1.bf16.msra.mxu0 0
        %1665 = vmatprep.subr.bf16.mxu0 0
        %1666 = vmatpush1.bf16.msra.mxu0 0
        %1667 = vmatprep.subr.bf16.mxu0 0
        %1668 = vmatpush1.bf16.msra.mxu0 0
        %1669 = vmatprep.subr.bf16.mxu0 0
        %1670 = vmatpush1.bf16.msra.mxu0 0
        %1671 = vmatprep.subr.bf16.mxu0 0
        %1672 = vmatpush1.bf16.msra.mxu0 0
        %1673 = vmatprep.subr.bf16.mxu0 0
        %1674 = vmatpush1.bf16.msra.mxu0 0
        %1675 = vmatprep.subr.bf16.mxu0 0
        %1676 = vmatpush1.bf16.msra.mxu0 0
        %1677 = vmatprep.subr.bf16.mxu0 0
        %1678 = vmatpush1.bf16.msra.mxu0 0
        %1679 = vmatprep.subr.bf16.mxu0 0
        %1680 = vmatpush1.bf16.msra.mxu0 0
        %1681 = vmatprep.subr.bf16.mxu0 0
        %1682 = vmatpush1.bf16.msra.mxu0 0
        %1683 = vmatprep.subr.bf16.mxu0 0
        %1684 = vmatpush1.bf16.msra.mxu0 0
        %1685 = vmatprep.subr.bf16.mxu0 0
        %1686 = vmatpush1.bf16.msra.mxu0 0
        %1687 = vmatprep.subr.bf16.mxu0 0
        %1688 = vmatpush1.bf16.msra.mxu0 0
        %1689 = vmatprep.subr.bf16.mxu0 0
        %1690 = vmatpush1.bf16.msra.mxu0 0
        %1691 = vmatprep.mubr.bf16.mxu0 0
        %1692 = vmatmul.mubr.bf16.gmra.mrb[0].mxu0 %v1534
        %v1693 = vpop.f32.mrb[0].mxu0
        %v1694 = vadd.f32 %v1320, %v1693
        %v1695 = vpop.f32.mrb[0].mxu0
        %v1696 = vadd.f32 %v1324, %v1695
        %v1697 = vpop.f32.mrb[0].mxu0
        %v1698 = vpop.f32.mrb[0].mxu0
        %1699 = vdwg.mxu0
        %1700 = vmatprep.subr.bf16.mxu0 %v1478
        %1701 = vmatpush1.bf16.msra.mxu0 %v1477
        %1702 = vmatprep.subr.bf16.mxu0 %v1494
        %1703 = vmatpush1.bf16.msra.mxu0 %v1493
        %1704 = vmatprep.subr.bf16.mxu0 0
        %1705 = vmatpush1.bf16.msra.mxu0 0
        %1706 = vmatprep.subr.bf16.mxu0 0
        %1707 = vmatpush1.bf16.msra.mxu0 0
        %1708 = vmatprep.subr.bf16.mxu0 0
        %1709 = vmatpush1.bf16.msra.mxu0 0
        %1710 = vmatprep.subr.bf16.mxu0 0
        %1711 = vmatpush1.bf16.msra.mxu0 0
        %1712 = vmatprep.subr.bf16.mxu0 0
        %1713 = vmatpush1.bf16.msra.mxu0 0
        %1714 = vmatprep.subr.bf16.mxu0 0
        %1715 = vmatpush1.bf16.msra.mxu0 0
        %1716 = vmatprep.subr.bf16.mxu0 0
        %1717 = vmatpush1.bf16.msra.mxu0 0
        %1718 = vmatprep.subr.bf16.mxu0 0
        %1719 = vmatpush1.bf16.msra.mxu0 0
        %1720 = vmatprep.subr.bf16.mxu0 0
        %1721 = vmatpush1.bf16.msra.mxu0 0
        %1722 = vmatprep.subr.bf16.mxu0 0
        %1723 = vmatpush1.bf16.msra.mxu0 0
        %1724 = vmatprep.subr.bf16.mxu0 0
        %1725 = vmatpush1.bf16.msra.mxu0 0
        %1726 = vmatprep.subr.bf16.mxu0 0
        %1727 = vmatpush1.bf16.msra.mxu0 0
        %1728 = vmatprep.subr.bf16.mxu0 0
        %1729 = vmatpush1.bf16.msra.mxu0 0
        %1730 = vmatprep.subr.bf16.mxu0 0
        %1731 = vmatpush1.bf16.msra.mxu0 0
        %1732 = vmatprep.mubr.bf16.mxu0 0
        %1733 = vmatmul.mubr.bf16.gmra.mrb[0].mxu0 %v1534
        %v1734 = vpop.f32.mrb[0].mxu0
        %v1735 = vadd.f32 %v1328, %v1734
        %v1736 = vpop.f32.mrb[0].mxu0
        %v1737 = vadd.f32 %v1332, %v1736
        %v1738 = vpop.f32.mrb[0].mxu0
        %v1739 = vpop.f32.mrb[0].mxu0
        %1740 = vdwg.mxu0
        %1741 = vmatprep.subr.bf16.mxu0 %v1480
        %1742 = vmatpush1.bf16.msra.mxu0 %v1479
        %1743 = vmatprep.subr.bf16.mxu0 %v1496
        %1744 = vmatpush1.bf16.msra.mxu0 %v1495
        %1745 = vmatprep.subr.bf16.mxu0 0
        %1746 = vmatpush1.bf16.msra.mxu0 0
        %1747 = vmatprep.subr.bf16.mxu0 0
        %1748 = vmatpush1.bf16.msra.mxu0 0
        %1749 = vmatprep.subr.bf16.mxu0 0
        %1750 = vmatpush1.bf16.msra.mxu0 0
        %1751 = vmatprep.subr.bf16.mxu0 0
        %1752 = vmatpush1.bf16.msra.mxu0 0
        %1753 = vmatprep.subr.bf16.mxu0 0
        %1754 = vmatpush1.bf16.msra.mxu0 0
        %1755 = vmatprep.subr.bf16.mxu0 0
        %1756 = vmatpush1.bf16.msra.mxu0 0
        %1757 = vmatprep.subr.bf16.mxu0 0
        %1758 = vmatpush1.bf16.msra.mxu0 0
        %1759 = vmatprep.subr.bf16.mxu0 0
        %1760 = vmatpush1.bf16.msra.mxu0 0
        %1761 = vmatprep.subr.bf16.mxu0 0
        %1762 = vmatpush1.bf16.msra.mxu0 0
        %1763 = vmatprep.subr.bf16.mxu0 0
        %1764 = vmatpush1.bf16.msra.mxu0 0
        %1765 = vmatprep.subr.bf16.mxu0 0
        %1766 = vmatpush1.bf16.msra.mxu0 0
        %1767 = vmatprep.subr.bf16.mxu0 0
        %1768 = vmatpush1.bf16.msra.mxu0 0
        %1769 = vmatprep.subr.bf16.mxu0 0
        %1770 = vmatpush1.bf16.msra.mxu0 0
        %1771 = vmatprep.subr.bf16.mxu0 0
        %1772 = vmatpush1.bf16.msra.mxu0 0
        %1773 = vmatprep.mubr.bf16.mxu0 0
        %1774 = vmatmul.mubr.bf16.gmra.mrb[0].mxu0 %v1534
        %v1775 = vpop.f32.mrb[0].mxu0
        %v1776 = vadd.f32 %v1336, %v1775
        %v1777 = vpop.f32.mrb[0].mxu0
        %v1778 = vadd.f32 %v1340, %v1777
        %v1779 = vpop.f32.mrb[0].mxu0
        %v1780 = vpop.f32.mrb[0].mxu0
        %1781 = vdwg.mxu0
        %1782 = vmatprep.subr.bf16.mxu0 %v1482
        %1783 = vmatpush1.bf16.msra.mxu0 %v1481
        %1784 = vmatprep.subr.bf16.mxu0 %v1498
        %1785 = vmatpush1.bf16.msra.mxu0 %v1497
        %1786 = vmatprep.subr.bf16.mxu0 0
        %1787 = vmatpush1.bf16.msra.mxu0 0
        %1788 = vmatprep.subr.bf16.mxu0 0
        %1789 = vmatpush1.bf16.msra.mxu0 0
        %1790 = vmatprep.subr.bf16.mxu0 0
        %1791 = vmatpush1.bf16.msra.mxu0 0
        %1792 = vmatprep.subr.bf16.mxu0 0
        %1793 = vmatpush1.bf16.msra.mxu0 0
        %1794 = vmatprep.subr.bf16.mxu0 0
        %1795 = vmatpush1.bf16.msra.mxu0 0
        %1796 = vmatprep.subr.bf16.mxu0 0
        %1797 = vmatpush1.bf16.msra.mxu0 0
        %1798 = vmatprep.subr.bf16.mxu0 0
        %1799 = vmatpush1.bf16.msra.mxu0 0
        %1800 = vmatprep.subr.bf16.mxu0 0
        %1801 = vmatpush1.bf16.msra.mxu0 0
        %1802 = vmatprep.subr.bf16.mxu0 0
        %1803 = vmatpush1.bf16.msra.mxu0 0
        %1804 = vmatprep.subr.bf16.mxu0 0
        %1805 = vmatpush1.bf16.msra.mxu0 0
        %1806 = vmatprep.subr.bf16.mxu0 0
        %1807 = vmatpush1.bf16.msra.mxu0 0
        %1808 = vmatprep.subr.bf16.mxu0 0
        %1809 = vmatpush1.bf16.msra.mxu0 0
        %1810 = vmatprep.subr.bf16.mxu0 0
        %1811 = vmatpush1.bf16.msra.mxu0 0
        %1812 = vmatprep.subr.bf16.mxu0 0
        %1813 = vmatpush1.bf16.msra.mxu0 0
        %1814 = vmatprep.mubr.bf16.mxu0 0
        %1815 = vmatmul.mubr.bf16.gmra.mrb[0].mxu0 %v1534
        %v1816 = vpop.f32.mrb[0].mxu0
        %v1817 = vadd.f32 %v1344, %v1816
        %v1818 = vpop.f32.mrb[0].mxu0
        %v1819 = vadd.f32 %v1348, %v1818
        %v1820 = vpop.f32.mrb[0].mxu0
        %v1821 = vpop.f32.mrb[0].mxu0
        %1822 = vdwg.mxu0
        %1823 = vmatprep.subr.bf16.mxu0 %v1484
        %1824 = vmatpush1.bf16.msra.mxu0 %v1483
        %1825 = vmatprep.subr.bf16.mxu0 %v1500
        %1826 = vmatpush1.bf16.msra.mxu0 %v1499
        %1827 = vmatprep.subr.bf16.mxu0 0
        %1828 = vmatpush1.bf16.msra.mxu0 0
        %1829 = vmatprep.subr.bf16.mxu0 0
        %1830 = vmatpush1.bf16.msra.mxu0 0
        %1831 = vmatprep.subr.bf16.mxu0 0
        %1832 = vmatpush1.bf16.msra.mxu0 0
        %1833 = vmatprep.subr.bf16.mxu0 0
        %1834 = vmatpush1.bf16.msra.mxu0 0
        %1835 = vmatprep.subr.bf16.mxu0 0
        %1836 = vmatpush1.bf16.msra.mxu0 0
        %1837 = vmatprep.subr.bf16.mxu0 0
        %1838 = vmatpush1.bf16.msra.mxu0 0
        %1839 = vmatprep.subr.bf16.mxu0 0
        %1840 = vmatpush1.bf16.msra.mxu0 0
        %1841 = vmatprep.subr.bf16.mxu0 0
        %1842 = vmatpush1.bf16.msra.mxu0 0
        %1843 = vmatprep.subr.bf16.mxu0 0
        %1844 = vmatpush1.bf16.msra.mxu0 0
        %1845 = vmatprep.subr.bf16.mxu0 0
        %1846 = vmatpush1.bf16.msra.mxu0 0
        %1847 = vmatprep.subr.bf16.mxu0 0
        %1848 = vmatpush1.bf16.msra.mxu0 0
        %1849 = vmatprep.subr.bf16.mxu0 0
        %1850 = vmatpush1.bf16.msra.mxu0 0
        %1851 = vmatprep.subr.bf16.mxu0 0
        %1852 = vmatpush1.bf16.msra.mxu0 0
        %1853 = vmatprep.subr.bf16.mxu0 0
        %1854 = vmatpush1.bf16.msra.mxu0 0
        %1855 = vmatprep.mubr.bf16.mxu0 0
        %1856 = vmatmul.mubr.bf16.gmra.mrb[0].mxu0 %v1534
        %v1857 = vpop.f32.mrb[0].mxu0
        %v1858 = vadd.f32 %v1352, %v1857
        %v1859 = vpop.f32.mrb[0].mxu0
        %v1860 = vadd.f32 %v1356, %v1859
        %v1861 = vpop.f32.mrb[0].mxu0
        %v1862 = vpop.f32.mrb[0].mxu0
        %1863 = vdwg.mxu0
        %v1864 = vmax.f32 %v1571, 0.0
        %v1865 = vmax.f32 %v1573, 0.0
        %v1866 = vmax.f32 %v1612, 0.0
        %v1867 = vmax.f32 %v1614, 0.0
        %v1868 = vmax.f32 %v1653, 0.0
        %v1869 = vmax.f32 %v1655, 0.0
        %v1870 = vmax.f32 %v1694, 0.0
        %v1871 = vmax.f32 %v1696, 0.0
        %v1872 = vmax.f32 %v1735, 0.0
        %v1873 = vmax.f32 %v1737, 0.0
        %v1874 = vmax.f32 %v1776, 0.0
        %v1875 = vmax.f32 %v1778, 0.0
        %v1876 = vmax.f32 %v1817, 0.0
        %v1877 = vmax.f32 %v1819, 0.0
        %v1878 = vmax.f32 %v1858, 0.0
        %v1879 = vmax.f32 %v1860, 0.0
        %v1880 = vpack.c.bf16 %v1864, %v1864
        %v1881 = vpack.c.bf16 %v1865, %v1865
        %v1882 = vpack.c.bf16 %v1866, %v1866
        %v1883 = vpack.c.bf16 %v1867, %v1867
        %v1884 = vpack.c.bf16 %v1868, %v1868
        %v1885 = vpack.c.bf16 %v1869, %v1869
        %v1886 = vpack.c.bf16 %v1870, %v1870
        %v1887 = vpack.c.bf16 %v1871, %v1871
        %v1888 = vpack.c.bf16 %v1872, %v1872
        %v1889 = vpack.c.bf16 %v1873, %v1873
        %v1890 = vpack.c.bf16 %v1874, %v1874
        %v1891 = vpack.c.bf16 %v1875, %v1875
        %v1892 = vpack.c.bf16 %v1876, %v1876
        %v1893 = vpack.c.bf16 %v1877, %v1877
        %v1894 = vpack.c.bf16 %v1878, %v1878
        %v1895 = vpack.c.bf16 %v1879, %v1879
        %v1896 = vld [vmem:[%s14] sm:$0xf]
        %v1897 = vld [vmem:[%s14 + $0x4] sm:$0xf]
        %v1898 = vld [vmem:[%s14 + $0x8] sm:$0xf]
        %v1899 = vld [vmem:[%s14 + $0xc] sm:$0xf]
        %v1900 = vld [vmem:[%s14 + $0x10] sm:$0xf]
        %v1901 = vld [vmem:[%s14 + $0x14] sm:$0xf]
        %v1902 = vld [vmem:[%s14 + $0x18] sm:$0xf]
        %v1903 = vld [vmem:[%s14 + $0x1c] sm:$0xf]
        %v1904 = vld [vmem:[%s14 + $0x20] sm:$0xf]
        %v1905 = vld [vmem:[%s14 + $0x24] sm:$0xf]
        %v1906 = vld [vmem:[%s14 + $0x28] sm:$0xf]
        %v1907 = vld [vmem:[%s14 + $0x2c] sm:$0xf]
        %v1908 = vld [vmem:[%s14 + $0x30] sm:$0xf]
        %v1909 = vld [vmem:[%s14 + $0x34] sm:$0xf]
        %v1910 = vld [vmem:[%s14 + $0x38] sm:$0xf]
        %v1911 = vld [vmem:[%s14 + $0x3c] sm:$0xf]
        %v1912 = vld [vmem:[%s14 + $0x40] sm:$0xf]
        %v1913 = vld [vmem:[%s14 + $0x44] sm:$0xf]
        %v1914 = vld [vmem:[%s14 + $0x48] sm:$0xf]
        %v1915 = vld [vmem:[%s14 + $0x4c] sm:$0xf]
        %v1916 = vld [vmem:[%s14 + $0x50] sm:$0xf]
        %v1917 = vld [vmem:[%s14 + $0x54] sm:$0xf]
        %v1918 = vld [vmem:[%s14 + $0x58] sm:$0xf]
        %v1919 = vld [vmem:[%s14 + $0x5c] sm:$0xf]
        %v1920 = vld [vmem:[%s14 + $0x60] sm:$0xf]
        %v1921 = vld [vmem:[%s14 + $0x64] sm:$0xf]
        %v1922 = vld [vmem:[%s14 + $0x68] sm:$0xf]
        %v1923 = vld [vmem:[%s14 + $0x6c] sm:$0xf]
        %v1924 = vld [vmem:[%s14 + $0x70] sm:$0xf]
        %v1925 = vld [vmem:[%s14 + $0x74] sm:$0xf]
        %v1926 = vld [vmem:[%s14 + $0x78] sm:$0xf]
        %v1927 = vld [vmem:[%s14 + $0x7c] sm:$0xf]
        %v1928 = vld [vmem:[%s14 + $0x80] sm:$0xf]
        %v1929 = vld [vmem:[%s14 + $0x84] sm:$0xf]
        %v1930 = vld [vmem:[%s14 + $0x88] sm:$0xf]
        %v1931 = vld [vmem:[%s14 + $0x8c] sm:$0xf]
        %v1932 = vld [vmem:[%s14 + $0x90] sm:$0xf]
        %v1933 = vld [vmem:[%s14 + $0x94] sm:$0xf]
        %v1934 = vld [vmem:[%s14 + $0x98] sm:$0xf]
        %v1935 = vld [vmem:[%s14 + $0x9c] sm:$0xf]
        %v1936 = vld [vmem:[%s14 + $0xa0] sm:$0xf]
        %v1937 = vld [vmem:[%s14 + $0xa4] sm:$0xf]
        %v1938 = vld [vmem:[%s14 + $0xa8] sm:$0xf]
        %v1939 = vld [vmem:[%s14 + $0xac] sm:$0xf]
        %v1940 = vld [vmem:[%s14 + $0xb0] sm:$0xf]
        %v1941 = vld [vmem:[%s14 + $0xb4] sm:$0xf]
        %v1942 = vld [vmem:[%s14 + $0xb8] sm:$0xf]
        %v1943 = vld [vmem:[%s14 + $0xbc] sm:$0xf]
        %v1944 = vld [vmem:[%s14 + $0xc0] sm:$0xf]
        %v1945 = vld [vmem:[%s14 + $0xc4] sm:$0xf]
        %v1946 = vld [vmem:[%s14 + $0xc8] sm:$0xf]
        %v1947 = vld [vmem:[%s14 + $0xcc] sm:$0xf]
        %v1948 = vld [vmem:[%s14 + $0xd0] sm:$0xf]
        %v1949 = vld [vmem:[%s14 + $0xd4] sm:$0xf]
        %v1950 = vld [vmem:[%s14 + $0xd8] sm:$0xf]
        %v1951 = vld [vmem:[%s14 + $0xdc] sm:$0xf]
        %v1952 = vld [vmem:[%s14 + $0xe0] sm:$0xf]
        %v1953 = vld [vmem:[%s14 + $0xe4] sm:$0xf]
        %v1954 = vld [vmem:[%s14 + $0xe8] sm:$0xf]
        %v1955 = vld [vmem:[%s14 + $0xec] sm:$0xf]
        %v1956 = vld [vmem:[%s14 + $0xf0] sm:$0xf]
        %v1957 = vld [vmem:[%s14 + $0xf4] sm:$0xf]
        %v1958 = vld [vmem:[%s14 + $0xf8] sm:$0xf]
        %v1959 = vld [vmem:[%s14 + $0xfc] sm:$0xf]
        %v1960 = vld [vmem:[%s14 + $0x100] sm:$0xf]
        %v1961 = vld [vmem:[%s14 + $0x104] sm:$0xf]
        %v1962 = vld [vmem:[%s14 + $0x108] sm:$0xf]
        %v1963 = vld [vmem:[%s14 + $0x10c] sm:$0xf]
        %v1964 = vld [vmem:[%s14 + $0x110] sm:$0xf]
        %v1965 = vld [vmem:[%s14 + $0x114] sm:$0xf]
        %v1966 = vld [vmem:[%s14 + $0x118] sm:$0xf]
        %v1967 = vld [vmem:[%s14 + $0x11c] sm:$0xf]
        %v1968 = vld [vmem:[%s14 + $0x120] sm:$0xf]
        %v1969 = vld [vmem:[%s14 + $0x124] sm:$0xf]
        %v1970 = vld [vmem:[%s14 + $0x128] sm:$0xf]
        %v1971 = vld [vmem:[%s14 + $0x12c] sm:$0xf]
        %v1972 = vld [vmem:[%s14 + $0x130] sm:$0xf]
        %v1973 = vld [vmem:[%s14 + $0x134] sm:$0xf]
        %v1974 = vld [vmem:[%s14 + $0x138] sm:$0xf]
        %v1975 = vld [vmem:[%s14 + $0x13c] sm:$0xf]
        %v1976 = vld [vmem:[%s14 + $0x140] sm:$0xf]
        %v1977 = vld [vmem:[%s14 + $0x144] sm:$0xf]
        %v1978 = vld [vmem:[%s14 + $0x148] sm:$0xf]
        %v1979 = vld [vmem:[%s14 + $0x14c] sm:$0xf]
        %v1980 = vld [vmem:[%s14 + $0x150] sm:$0xf]
        %v1981 = vld [vmem:[%s14 + $0x154] sm:$0xf]
        %v1982 = vld [vmem:[%s14 + $0x158] sm:$0xf]
        %v1983 = vld [vmem:[%s14 + $0x15c] sm:$0xf]
        %v1984 = vld [vmem:[%s14 + $0x160] sm:$0xf]
        %v1985 = vld [vmem:[%s14 + $0x164] sm:$0xf]
        %v1986 = vld [vmem:[%s14 + $0x168] sm:$0xf]
        %v1987 = vld [vmem:[%s14 + $0x16c] sm:$0xf]
        %v1988 = vld [vmem:[%s14 + $0x170] sm:$0xf]
        %v1989 = vld [vmem:[%s14 + $0x174] sm:$0xf]
        %v1990 = vld [vmem:[%s14 + $0x178] sm:$0xf]
        %v1991 = vld [vmem:[%s14 + $0x17c] sm:$0xf]
        %v1992 = vld [vmem:[%s14 + $0x180] sm:$0xf]
        %v1993 = vld [vmem:[%s14 + $0x184] sm:$0xf]
        %v1994 = vld [vmem:[%s14 + $0x188] sm:$0xf]
        %v1995 = vld [vmem:[%s14 + $0x18c] sm:$0xf]
        %v1996 = vld [vmem:[%s14 + $0x190] sm:$0xf]
        %v1997 = vld [vmem:[%s14 + $0x194] sm:$0xf]
        %v1998 = vld [vmem:[%s14 + $0x198] sm:$0xf]
        %v1999 = vld [vmem:[%s14 + $0x19c] sm:$0xf]
        %v2000 = vld [vmem:[%s14 + $0x1a0] sm:$0xf]
        %v2001 = vld [vmem:[%s14 + $0x1a4] sm:$0xf]
        %v2002 = vld [vmem:[%s14 + $0x1a8] sm:$0xf]
        %v2003 = vld [vmem:[%s14 + $0x1ac] sm:$0xf]
        %v2004 = vld [vmem:[%s14 + $0x1b0] sm:$0xf]
        %v2005 = vld [vmem:[%s14 + $0x1b4] sm:$0xf]
        %v2006 = vld [vmem:[%s14 + $0x1b8] sm:$0xf]
        %v2007 = vld [vmem:[%s14 + $0x1bc] sm:$0xf]
        %v2008 = vld [vmem:[%s14 + $0x1c0] sm:$0xf]
        %v2009 = vld [vmem:[%s14 + $0x1c4] sm:$0xf]
        %v2010 = vld [vmem:[%s14 + $0x1c8] sm:$0xf]
        %v2011 = vld [vmem:[%s14 + $0x1cc] sm:$0xf]
        %v2012 = vld [vmem:[%s14 + $0x1d0] sm:$0xf]
        %v2013 = vld [vmem:[%s14 + $0x1d4] sm:$0xf]
        %v2014 = vld [vmem:[%s14 + $0x1d8] sm:$0xf]
        %v2015 = vld [vmem:[%s14 + $0x1dc] sm:$0xf]
        %v2016 = vld [vmem:[%s14 + $0x1e0] sm:$0xf]
        %v2017 = vld [vmem:[%s14 + $0x1e4] sm:$0xf]
        %v2018 = vld [vmem:[%s14 + $0x1e8] sm:$0xf]
        %v2019 = vld [vmem:[%s14 + $0x1ec] sm:$0xf]
        %v2020 = vld [vmem:[%s14 + $0x1f0] sm:$0xf]
        %v2021 = vld [vmem:[%s14 + $0x1f4] sm:$0xf]
        %v2022 = vld [vmem:[%s14 + $0x1f8] sm:$0xf]
        %v2023 = vld [vmem:[%s14 + $0x1fc] sm:$0xf]
        %v2024 = vld [vmem:[%s14 + $0x200] sm:$0xf]
        %v2025 = vld [vmem:[%s14 + $0x204] sm:$0xf]
        %v2026 = vld [vmem:[%s14 + $0x208] sm:$0xf]
        %v2027 = vld [vmem:[%s14 + $0x20c] sm:$0xf]
        %v2028 = vld [vmem:[%s14 + $0x210] sm:$0xf]
        %v2029 = vld [vmem:[%s14 + $0x214] sm:$0xf]
        %v2030 = vld [vmem:[%s14 + $0x218] sm:$0xf]
        %v2031 = vld [vmem:[%s14 + $0x21c] sm:$0xf]
        %v2032 = vld [vmem:[%s14 + $0x220] sm:$0xf]
        %v2033 = vld [vmem:[%s14 + $0x224] sm:$0xf]
        %v2034 = vld [vmem:[%s14 + $0x228] sm:$0xf]
        %v2035 = vld [vmem:[%s14 + $0x22c] sm:$0xf]
        %v2036 = vld [vmem:[%s14 + $0x230] sm:$0xf]
        %v2037 = vld [vmem:[%s14 + $0x234] sm:$0xf]
        %v2038 = vld [vmem:[%s14 + $0x238] sm:$0xf]
        %v2039 = vld [vmem:[%s14 + $0x23c] sm:$0xf]
        %v2040 = vld [vmem:[%s14 + $0x240] sm:$0xf]
        %v2041 = vld [vmem:[%s14 + $0x244] sm:$0xf]
        %v2042 = vld [vmem:[%s14 + $0x248] sm:$0xf]
        %v2043 = vld [vmem:[%s14 + $0x24c] sm:$0xf]
        %v2044 = vld [vmem:[%s14 + $0x250] sm:$0xf]
        %v2045 = vld [vmem:[%s14 + $0x254] sm:$0xf]
        %v2046 = vld [vmem:[%s14 + $0x258] sm:$0xf]
        %v2047 = vld [vmem:[%s14 + $0x25c] sm:$0xf]
        %v2048 = vld [vmem:[%s14 + $0x260] sm:$0xf]
        %v2049 = vld [vmem:[%s14 + $0x264] sm:$0xf]
        %v2050 = vld [vmem:[%s14 + $0x268] sm:$0xf]
        %v2051 = vld [vmem:[%s14 + $0x26c] sm:$0xf]
        %v2052 = vld [vmem:[%s14 + $0x270] sm:$0xf]
        %v2053 = vld [vmem:[%s14 + $0x274] sm:$0xf]
        %v2054 = vld [vmem:[%s14 + $0x278] sm:$0xf]
        %v2055 = vld [vmem:[%s14 + $0x27c] sm:$0xf]
        %v2056 = vld [vmem:[%s14 + $0x280] sm:$0xf]
        %v2057 = vld [vmem:[%s14 + $0x284] sm:$0xf]
        %v2058 = vld [vmem:[%s14 + $0x288] sm:$0xf]
        %v2059 = vld [vmem:[%s14 + $0x28c] sm:$0xf]
        %v2060 = vld [vmem:[%s14 + $0x290] sm:$0xf]
        %v2061 = vld [vmem:[%s14 + $0x294] sm:$0xf]
        %v2062 = vld [vmem:[%s14 + $0x298] sm:$0xf]
        %v2063 = vld [vmem:[%s14 + $0x29c] sm:$0xf]
        %v2064 = vld [vmem:[%s14 + $0x2a0] sm:$0xf]
        %v2065 = vld [vmem:[%s14 + $0x2a4] sm:$0xf]
        %v2066 = vld [vmem:[%s14 + $0x2a8] sm:$0xf]
        %v2067 = vld [vmem:[%s14 + $0x2ac] sm:$0xf]
        %v2068 = vld [vmem:[%s14 + $0x2b0] sm:$0xf]
        %v2069 = vld [vmem:[%s14 + $0x2b4] sm:$0xf]
        %v2070 = vld [vmem:[%s14 + $0x2b8] sm:$0xf]
        %v2071 = vld [vmem:[%s14 + $0x2bc] sm:$0xf]
        %v2072 = vld [vmem:[%s14 + $0x2c0] sm:$0xf]
        %v2073 = vld [vmem:[%s14 + $0x2c4] sm:$0xf]
        %v2074 = vld [vmem:[%s14 + $0x2c8] sm:$0xf]
        %v2075 = vld [vmem:[%s14 + $0x2cc] sm:$0xf]
        %v2076 = vld [vmem:[%s14 + $0x2d0] sm:$0xf]
        %v2077 = vld [vmem:[%s14 + $0x2d4] sm:$0xf]
        %v2078 = vld [vmem:[%s14 + $0x2d8] sm:$0xf]
        %v2079 = vld [vmem:[%s14 + $0x2dc] sm:$0xf]
        %v2080 = vld [vmem:[%s14 + $0x2e0] sm:$0xf]
        %v2081 = vld [vmem:[%s14 + $0x2e4] sm:$0xf]
        %v2082 = vld [vmem:[%s14 + $0x2e8] sm:$0xf]
        %v2083 = vld [vmem:[%s14 + $0x2ec] sm:$0xf]
        %v2084 = vld [vmem:[%s14 + $0x2f0] sm:$0xf]
        %v2085 = vld [vmem:[%s14 + $0x2f4] sm:$0xf]
        %v2086 = vld [vmem:[%s14 + $0x2f8] sm:$0xf]
        %v2087 = vld [vmem:[%s14 + $0x2fc] sm:$0xf]
        %v2088 = vld [vmem:[%s14 + $0x300] sm:$0xf]
        %v2089 = vld [vmem:[%s14 + $0x304] sm:$0xf]
        %v2090 = vld [vmem:[%s14 + $0x308] sm:$0xf]
        %v2091 = vld [vmem:[%s14 + $0x30c] sm:$0xf]
        %v2092 = vld [vmem:[%s14 + $0x310] sm:$0xf]
        %v2093 = vld [vmem:[%s14 + $0x314] sm:$0xf]
        %v2094 = vld [vmem:[%s14 + $0x318] sm:$0xf]
        %v2095 = vld [vmem:[%s14 + $0x31c] sm:$0xf]
        %v2096 = vld [vmem:[%s14 + $0x320] sm:$0xf]
        %v2097 = vld [vmem:[%s14 + $0x324] sm:$0xf]
        %v2098 = vld [vmem:[%s14 + $0x328] sm:$0xf]
        %v2099 = vld [vmem:[%s14 + $0x32c] sm:$0xf]
        %v2100 = vld [vmem:[%s14 + $0x330] sm:$0xf]
        %v2101 = vld [vmem:[%s14 + $0x334] sm:$0xf]
        %v2102 = vld [vmem:[%s14 + $0x338] sm:$0xf]
        %v2103 = vld [vmem:[%s14 + $0x33c] sm:$0xf]
        %v2104 = vld [vmem:[%s14 + $0x340] sm:$0xf]
        %v2105 = vld [vmem:[%s14 + $0x344] sm:$0xf]
        %v2106 = vld [vmem:[%s14 + $0x348] sm:$0xf]
        %v2107 = vld [vmem:[%s14 + $0x34c] sm:$0xf]
        %v2108 = vld [vmem:[%s14 + $0x350] sm:$0xf]
        %v2109 = vld [vmem:[%s14 + $0x354] sm:$0xf]
        %v2110 = vld [vmem:[%s14 + $0x358] sm:$0xf]
        %v2111 = vld [vmem:[%s14 + $0x35c] sm:$0xf]
        %v2112 = vld [vmem:[%s14 + $0x360] sm:$0xf]
        %v2113 = vld [vmem:[%s14 + $0x364] sm:$0xf]
        %v2114 = vld [vmem:[%s14 + $0x368] sm:$0xf]
        %v2115 = vld [vmem:[%s14 + $0x36c] sm:$0xf]
        %v2116 = vld [vmem:[%s14 + $0x370] sm:$0xf]
        %v2117 = vld [vmem:[%s14 + $0x374] sm:$0xf]
        %v2118 = vld [vmem:[%s14 + $0x378] sm:$0xf]
        %v2119 = vld [vmem:[%s14 + $0x37c] sm:$0xf]
        %v2120 = vld [vmem:[%s14 + $0x380] sm:$0xf]
        %v2121 = vld [vmem:[%s14 + $0x384] sm:$0xf]
        %v2122 = vld [vmem:[%s14 + $0x388] sm:$0xf]
        %v2123 = vld [vmem:[%s14 + $0x38c] sm:$0xf]
        %v2124 = vld [vmem:[%s14 + $0x390] sm:$0xf]
        %v2125 = vld [vmem:[%s14 + $0x394] sm:$0xf]
        %v2126 = vld [vmem:[%s14 + $0x398] sm:$0xf]
        %v2127 = vld [vmem:[%s14 + $0x39c] sm:$0xf]
        %v2128 = vld [vmem:[%s14 + $0x3a0] sm:$0xf]
        %v2129 = vld [vmem:[%s14 + $0x3a4] sm:$0xf]
        %v2130 = vld [vmem:[%s14 + $0x3a8] sm:$0xf]
        %v2131 = vld [vmem:[%s14 + $0x3ac] sm:$0xf]
        %v2132 = vld [vmem:[%s14 + $0x3b0] sm:$0xf]
        %v2133 = vld [vmem:[%s14 + $0x3b4] sm:$0xf]
        %v2134 = vld [vmem:[%s14 + $0x3b8] sm:$0xf]
        %v2135 = vld [vmem:[%s14 + $0x3bc] sm:$0xf]
        %v2136 = vld [vmem:[%s14 + $0x3c0] sm:$0xf]
        %v2137 = vld [vmem:[%s14 + $0x3c4] sm:$0xf]
        %v2138 = vld [vmem:[%s14 + $0x3c8] sm:$0xf]
        %v2139 = vld [vmem:[%s14 + $0x3cc] sm:$0xf]
        %v2140 = vld [vmem:[%s14 + $0x3d0] sm:$0xf]
        %v2141 = vld [vmem:[%s14 + $0x3d4] sm:$0xf]
        %v2142 = vld [vmem:[%s14 + $0x3d8] sm:$0xf]
        %v2143 = vld [vmem:[%s14 + $0x3dc] sm:$0xf]
        %v2144 = vld [vmem:[%s14 + $0x3e0] sm:$0xf]
        %v2145 = vld [vmem:[%s14 + $0x3e4] sm:$0xf]
        %v2146 = vld [vmem:[%s14 + $0x3e8] sm:$0xf]
        %v2147 = vld [vmem:[%s14 + $0x3ec] sm:$0xf]
        %v2148 = vld [vmem:[%s14 + $0x3f0] sm:$0xf]
        %v2149 = vld [vmem:[%s14 + $0x3f4] sm:$0xf]
        %v2150 = vld [vmem:[%s14 + $0x3f8] sm:$0xf]
        %v2151 = vld [vmem:[%s14 + $0x3fc] sm:$0xf]
        %v2152 = vld [vmem:[%s15] sm:$0x1]
        %v2154 = vlaneseq
        %v2155 = vshrl.u32 %v2154, 7
        %v2156 = vsub.s32 0, %v2155
        %v2157 = vrot.slane %v2152, %v2156
        %v2415 = vunpack.c.l.b16 %v1896
        %v2416 = vunpack.c.l.b16 %v1897
        %v2417 = vunpack.c.l.b16 %v1898
        %v2418 = vunpack.c.l.b16 %v1899
        %v2419 = vunpack.c.l.b16 %v1900
        %v2420 = vunpack.c.l.b16 %v1901
        %v2421 = vunpack.c.l.b16 %v1902
        %v2422 = vunpack.c.l.b16 %v1903
        %v2423 = vunpack.c.l.b16 %v1904
        %v2424 = vunpack.c.l.b16 %v1905
        %v2425 = vunpack.c.l.b16 %v1906
        %v2426 = vunpack.c.l.b16 %v1907
        %v2427 = vunpack.c.l.b16 %v1908
        %v2428 = vunpack.c.l.b16 %v1909
        %v2429 = vunpack.c.l.b16 %v1910
        %v2430 = vunpack.c.l.b16 %v1911
        %v2431 = vunpack.c.l.b16 %v1912
        %v2432 = vunpack.c.l.b16 %v1913
        %v2433 = vunpack.c.l.b16 %v1914
        %v2434 = vunpack.c.l.b16 %v1915
        %v2435 = vunpack.c.l.b16 %v1916
        %v2436 = vunpack.c.l.b16 %v1917
        %v2437 = vunpack.c.l.b16 %v1918
        %v2438 = vunpack.c.l.b16 %v1919
        %v2439 = vunpack.c.l.b16 %v1920
        %v2440 = vunpack.c.l.b16 %v1921
        %v2441 = vunpack.c.l.b16 %v1922
        %v2442 = vunpack.c.l.b16 %v1923
        %v2443 = vunpack.c.l.b16 %v1924
        %v2444 = vunpack.c.l.b16 %v1925
        %v2445 = vunpack.c.l.b16 %v1926
        %v2446 = vunpack.c.l.b16 %v1927
        %v2447 = vunpack.c.l.b16 %v1928
        %v2448 = vunpack.c.l.b16 %v1929
        %v2449 = vunpack.c.l.b16 %v1930
        %v2450 = vunpack.c.l.b16 %v1931
        %v2451 = vunpack.c.l.b16 %v1932
        %v2452 = vunpack.c.l.b16 %v1933
        %v2453 = vunpack.c.l.b16 %v1934
        %v2454 = vunpack.c.l.b16 %v1935
        %v2455 = vunpack.c.l.b16 %v1936
        %v2456 = vunpack.c.l.b16 %v1937
        %v2457 = vunpack.c.l.b16 %v1938
        %v2458 = vunpack.c.l.b16 %v1939
        %v2459 = vunpack.c.l.b16 %v1940
        %v2460 = vunpack.c.l.b16 %v1941
        %v2461 = vunpack.c.l.b16 %v1942
        %v2462 = vunpack.c.l.b16 %v1943
        %v2463 = vunpack.c.l.b16 %v1944
        %v2464 = vunpack.c.l.b16 %v1945
        %v2465 = vunpack.c.l.b16 %v1946
        %v2466 = vunpack.c.l.b16 %v1947
        %v2467 = vunpack.c.l.b16 %v1948
        %v2468 = vunpack.c.l.b16 %v1949
        %v2469 = vunpack.c.l.b16 %v1950
        %v2470 = vunpack.c.l.b16 %v1951
        %v2471 = vunpack.c.l.b16 %v1952
        %v2472 = vunpack.c.l.b16 %v1953
        %v2473 = vunpack.c.l.b16 %v1954
        %v2474 = vunpack.c.l.b16 %v1955
        %v2475 = vunpack.c.l.b16 %v1956
        %v2476 = vunpack.c.l.b16 %v1957
        %v2477 = vunpack.c.l.b16 %v1958
        %v2478 = vunpack.c.l.b16 %v1959
        %v2479 = vunpack.c.l.b16 %v1960
        %v2480 = vunpack.c.l.b16 %v1961
        %v2481 = vunpack.c.l.b16 %v1962
        %v2482 = vunpack.c.l.b16 %v1963
        %v2483 = vunpack.c.l.b16 %v1964
        %v2484 = vunpack.c.l.b16 %v1965
        %v2485 = vunpack.c.l.b16 %v1966
        %v2486 = vunpack.c.l.b16 %v1967
        %v2487 = vunpack.c.l.b16 %v1968
        %v2488 = vunpack.c.l.b16 %v1969
        %v2489 = vunpack.c.l.b16 %v1970
        %v2490 = vunpack.c.l.b16 %v1971
        %v2491 = vunpack.c.l.b16 %v1972
        %v2492 = vunpack.c.l.b16 %v1973
        %v2493 = vunpack.c.l.b16 %v1974
        %v2494 = vunpack.c.l.b16 %v1975
        %v2495 = vunpack.c.l.b16 %v1976
        %v2496 = vunpack.c.l.b16 %v1977
        %v2497 = vunpack.c.l.b16 %v1978
        %v2498 = vunpack.c.l.b16 %v1979
        %v2499 = vunpack.c.l.b16 %v1980
        %v2500 = vunpack.c.l.b16 %v1981
        %v2501 = vunpack.c.l.b16 %v1982
        %v2502 = vunpack.c.l.b16 %v1983
        %v2503 = vunpack.c.l.b16 %v1984
        %v2504 = vunpack.c.l.b16 %v1985
        %v2505 = vunpack.c.l.b16 %v1986
        %v2506 = vunpack.c.l.b16 %v1987
        %v2507 = vunpack.c.l.b16 %v1988
        %v2508 = vunpack.c.l.b16 %v1989
        %v2509 = vunpack.c.l.b16 %v1990
        %v2510 = vunpack.c.l.b16 %v1991
        %v2511 = vunpack.c.l.b16 %v1992
        %v2512 = vunpack.c.l.b16 %v1993
        %v2513 = vunpack.c.l.b16 %v1994
        %v2514 = vunpack.c.l.b16 %v1995
        %v2515 = vunpack.c.l.b16 %v1996
        %v2516 = vunpack.c.l.b16 %v1997
        %v2517 = vunpack.c.l.b16 %v1998
        %v2518 = vunpack.c.l.b16 %v1999
        %v2519 = vunpack.c.l.b16 %v2000
        %v2520 = vunpack.c.l.b16 %v2001
        %v2521 = vunpack.c.l.b16 %v2002
        %v2522 = vunpack.c.l.b16 %v2003
        %v2523 = vunpack.c.l.b16 %v2004
        %v2524 = vunpack.c.l.b16 %v2005
        %v2525 = vunpack.c.l.b16 %v2006
        %v2526 = vunpack.c.l.b16 %v2007
        %v2527 = vunpack.c.l.b16 %v2008
        %v2528 = vunpack.c.l.b16 %v2009
        %v2529 = vunpack.c.l.b16 %v2010
        %v2530 = vunpack.c.l.b16 %v2011
        %v2531 = vunpack.c.l.b16 %v2012
        %v2532 = vunpack.c.l.b16 %v2013
        %v2533 = vunpack.c.l.b16 %v2014
        %v2534 = vunpack.c.l.b16 %v2015
        %v2535 = vunpack.c.l.b16 %v2016
        %v2536 = vunpack.c.l.b16 %v2017
        %v2537 = vunpack.c.l.b16 %v2018
        %v2538 = vunpack.c.l.b16 %v2019
        %v2539 = vunpack.c.l.b16 %v2020
        %v2540 = vunpack.c.l.b16 %v2021
        %v2541 = vunpack.c.l.b16 %v2022
        %v2542 = vunpack.c.l.b16 %v2023
        %v2543 = vunpack.c.l.b16 %v2024
        %v2544 = vunpack.c.l.b16 %v2025
        %v2545 = vunpack.c.l.b16 %v2026
        %v2546 = vunpack.c.l.b16 %v2027
        %v2547 = vunpack.c.l.b16 %v2028
        %v2548 = vunpack.c.l.b16 %v2029
        %v2549 = vunpack.c.l.b16 %v2030
        %v2550 = vunpack.c.l.b16 %v2031
        %v2551 = vunpack.c.l.b16 %v2032
        %v2552 = vunpack.c.l.b16 %v2033
        %v2553 = vunpack.c.l.b16 %v2034
        %v2554 = vunpack.c.l.b16 %v2035
        %v2555 = vunpack.c.l.b16 %v2036
        %v2556 = vunpack.c.l.b16 %v2037
        %v2557 = vunpack.c.l.b16 %v2038
        %v2558 = vunpack.c.l.b16 %v2039
        %v2559 = vunpack.c.l.b16 %v2040
        %v2560 = vunpack.c.l.b16 %v2041
        %v2561 = vunpack.c.l.b16 %v2042
        %v2562 = vunpack.c.l.b16 %v2043
        %v2563 = vunpack.c.l.b16 %v2044
        %v2564 = vunpack.c.l.b16 %v2045
        %v2565 = vunpack.c.l.b16 %v2046
        %v2566 = vunpack.c.l.b16 %v2047
        %v2567 = vunpack.c.l.b16 %v2048
        %v2568 = vunpack.c.l.b16 %v2049
        %v2569 = vunpack.c.l.b16 %v2050
        %v2570 = vunpack.c.l.b16 %v2051
        %v2571 = vunpack.c.l.b16 %v2052
        %v2572 = vunpack.c.l.b16 %v2053
        %v2573 = vunpack.c.l.b16 %v2054
        %v2574 = vunpack.c.l.b16 %v2055
        %v2575 = vunpack.c.l.b16 %v2056
        %v2576 = vunpack.c.l.b16 %v2057
        %v2577 = vunpack.c.l.b16 %v2058
        %v2578 = vunpack.c.l.b16 %v2059
        %v2579 = vunpack.c.l.b16 %v2060
        %v2580 = vunpack.c.l.b16 %v2061
        %v2581 = vunpack.c.l.b16 %v2062
        %v2582 = vunpack.c.l.b16 %v2063
        %v2583 = vunpack.c.l.b16 %v2064
        %v2584 = vunpack.c.l.b16 %v2065
        %v2585 = vunpack.c.l.b16 %v2066
        %v2586 = vunpack.c.l.b16 %v2067
        %v2587 = vunpack.c.l.b16 %v2068
        %v2588 = vunpack.c.l.b16 %v2069
        %v2589 = vunpack.c.l.b16 %v2070
        %v2590 = vunpack.c.l.b16 %v2071
        %v2591 = vunpack.c.l.b16 %v2072
        %v2592 = vunpack.c.l.b16 %v2073
        %v2593 = vunpack.c.l.b16 %v2074
        %v2594 = vunpack.c.l.b16 %v2075
        %v2595 = vunpack.c.l.b16 %v2076
        %v2596 = vunpack.c.l.b16 %v2077
        %v2597 = vunpack.c.l.b16 %v2078
        %v2598 = vunpack.c.l.b16 %v2079
        %v2599 = vunpack.c.l.b16 %v2080
        %v2600 = vunpack.c.l.b16 %v2081
        %v2601 = vunpack.c.l.b16 %v2082
        %v2602 = vunpack.c.l.b16 %v2083
        %v2603 = vunpack.c.l.b16 %v2084
        %v2604 = vunpack.c.l.b16 %v2085
        %v2605 = vunpack.c.l.b16 %v2086
        %v2606 = vunpack.c.l.b16 %v2087
        %v2607 = vunpack.c.l.b16 %v2088
        %v2608 = vunpack.c.l.b16 %v2089
        %v2609 = vunpack.c.l.b16 %v2090
        %v2610 = vunpack.c.l.b16 %v2091
        %v2611 = vunpack.c.l.b16 %v2092
        %v2612 = vunpack.c.l.b16 %v2093
        %v2613 = vunpack.c.l.b16 %v2094
        %v2614 = vunpack.c.l.b16 %v2095
        %v2615 = vunpack.c.l.b16 %v2096
        %v2616 = vunpack.c.l.b16 %v2097
        %v2617 = vunpack.c.l.b16 %v2098
        %v2618 = vunpack.c.l.b16 %v2099
        %v2619 = vunpack.c.l.b16 %v2100
        %v2620 = vunpack.c.l.b16 %v2101
        %v2621 = vunpack.c.l.b16 %v2102
        %v2622 = vunpack.c.l.b16 %v2103
        %v2623 = vunpack.c.l.b16 %v2104
        %v2624 = vunpack.c.l.b16 %v2105
        %v2625 = vunpack.c.l.b16 %v2106
        %v2626 = vunpack.c.l.b16 %v2107
        %v2627 = vunpack.c.l.b16 %v2108
        %v2628 = vunpack.c.l.b16 %v2109
        %v2629 = vunpack.c.l.b16 %v2110
        %v2630 = vunpack.c.l.b16 %v2111
        %v2631 = vunpack.c.l.b16 %v2112
        %v2632 = vunpack.c.l.b16 %v2113
        %v2633 = vunpack.c.l.b16 %v2114
        %v2634 = vunpack.c.l.b16 %v2115
        %v2635 = vunpack.c.l.b16 %v2116
        %v2636 = vunpack.c.l.b16 %v2117
        %v2637 = vunpack.c.l.b16 %v2118
        %v2638 = vunpack.c.l.b16 %v2119
        %v2639 = vunpack.c.l.b16 %v2120
        %v2640 = vunpack.c.l.b16 %v2121
        %v2641 = vunpack.c.l.b16 %v2122
        %v2642 = vunpack.c.l.b16 %v2123
        %v2643 = vunpack.c.l.b16 %v2124
        %v2644 = vunpack.c.l.b16 %v2125
        %v2645 = vunpack.c.l.b16 %v2126
        %v2646 = vunpack.c.l.b16 %v2127
        %v2647 = vunpack.c.l.b16 %v2128
        %v2648 = vunpack.c.l.b16 %v2129
        %v2649 = vunpack.c.l.b16 %v2130
        %v2650 = vunpack.c.l.b16 %v2131
        %v2651 = vunpack.c.l.b16 %v2132
        %v2652 = vunpack.c.l.b16 %v2133
        %v2653 = vunpack.c.l.b16 %v2134
        %v2654 = vunpack.c.l.b16 %v2135
        %v2655 = vunpack.c.l.b16 %v2136
        %v2656 = vunpack.c.l.b16 %v2137
        %v2657 = vunpack.c.l.b16 %v2138
        %v2658 = vunpack.c.l.b16 %v2139
        %v2659 = vunpack.c.l.b16 %v2140
        %v2660 = vunpack.c.l.b16 %v2141
        %v2661 = vunpack.c.l.b16 %v2142
        %v2662 = vunpack.c.l.b16 %v2143
        %v2663 = vunpack.c.l.b16 %v2144
        %v2664 = vunpack.c.l.b16 %v2145
        %v2665 = vunpack.c.l.b16 %v2146
        %v2666 = vunpack.c.l.b16 %v2147
        %v2667 = vunpack.c.l.b16 %v2148
        %v2668 = vunpack.c.l.b16 %v2149
        %v2669 = vunpack.c.l.b16 %v2150
        %v2670 = vunpack.c.l.b16 %v2151
        %v2671 = vpack.c.b16 %v2416, %v2415
        %v2672 = vpack.c.b16 %v2418, %v2417
        %v2673 = vpack.c.b16 %v2420, %v2419
        %v2674 = vpack.c.b16 %v2422, %v2421
        %v2675 = vpack.c.b16 %v2424, %v2423
        %v2676 = vpack.c.b16 %v2426, %v2425
        %v2677 = vpack.c.b16 %v2428, %v2427
        %v2678 = vpack.c.b16 %v2430, %v2429
        %v2679 = vpack.c.b16 %v2432, %v2431
        %v2680 = vpack.c.b16 %v2434, %v2433
        %v2681 = vpack.c.b16 %v2436, %v2435
        %v2682 = vpack.c.b16 %v2438, %v2437
        %v2683 = vpack.c.b16 %v2440, %v2439
        %v2684 = vpack.c.b16 %v2442, %v2441
        %v2685 = vpack.c.b16 %v2444, %v2443
        %v2686 = vpack.c.b16 %v2446, %v2445
        %v2687 = vpack.c.b16 %v2448, %v2447
        %v2688 = vpack.c.b16 %v2450, %v2449
        %v2689 = vpack.c.b16 %v2452, %v2451
        %v2690 = vpack.c.b16 %v2454, %v2453
        %v2691 = vpack.c.b16 %v2456, %v2455
        %v2692 = vpack.c.b16 %v2458, %v2457
        %v2693 = vpack.c.b16 %v2460, %v2459
        %v2694 = vpack.c.b16 %v2462, %v2461
        %v2695 = vpack.c.b16 %v2464, %v2463
        %v2696 = vpack.c.b16 %v2466, %v2465
        %v2697 = vpack.c.b16 %v2468, %v2467
        %v2698 = vpack.c.b16 %v2470, %v2469
        %v2699 = vpack.c.b16 %v2472, %v2471
        %v2700 = vpack.c.b16 %v2474, %v2473
        %v2701 = vpack.c.b16 %v2476, %v2475
        %v2702 = vpack.c.b16 %v2478, %v2477
        %v2703 = vpack.c.b16 %v2480, %v2479
        %v2704 = vpack.c.b16 %v2482, %v2481
        %v2705 = vpack.c.b16 %v2484, %v2483
        %v2706 = vpack.c.b16 %v2486, %v2485
        %v2707 = vpack.c.b16 %v2488, %v2487
        %v2708 = vpack.c.b16 %v2490, %v2489
        %v2709 = vpack.c.b16 %v2492, %v2491
        %v2710 = vpack.c.b16 %v2494, %v2493
        %v2711 = vpack.c.b16 %v2496, %v2495
        %v2712 = vpack.c.b16 %v2498, %v2497
        %v2713 = vpack.c.b16 %v2500, %v2499
        %v2714 = vpack.c.b16 %v2502, %v2501
        %v2715 = vpack.c.b16 %v2504, %v2503
        %v2716 = vpack.c.b16 %v2506, %v2505
        %v2717 = vpack.c.b16 %v2508, %v2507
        %v2718 = vpack.c.b16 %v2510, %v2509
        %v2719 = vpack.c.b16 %v2512, %v2511
        %v2720 = vpack.c.b16 %v2514, %v2513
        %v2721 = vpack.c.b16 %v2516, %v2515
        %v2722 = vpack.c.b16 %v2518, %v2517
        %v2723 = vpack.c.b16 %v2520, %v2519
        %v2724 = vpack.c.b16 %v2522, %v2521
        %v2725 = vpack.c.b16 %v2524, %v2523
        %v2726 = vpack.c.b16 %v2526, %v2525
        %v2727 = vpack.c.b16 %v2528, %v2527
        %v2728 = vpack.c.b16 %v2530, %v2529
        %v2729 = vpack.c.b16 %v2532, %v2531
        %v2730 = vpack.c.b16 %v2534, %v2533
        %v2731 = vpack.c.b16 %v2536, %v2535
        %v2732 = vpack.c.b16 %v2538, %v2537
        %v2733 = vpack.c.b16 %v2540, %v2539
        %v2734 = vpack.c.b16 %v2542, %v2541
        %v2735 = vpack.c.b16 %v2544, %v2543
        %v2736 = vpack.c.b16 %v2546, %v2545
        %v2737 = vpack.c.b16 %v2548, %v2547
        %v2738 = vpack.c.b16 %v2550, %v2549
        %v2739 = vpack.c.b16 %v2552, %v2551
        %v2740 = vpack.c.b16 %v2554, %v2553
        %v2741 = vpack.c.b16 %v2556, %v2555
        %v2742 = vpack.c.b16 %v2558, %v2557
        %v2743 = vpack.c.b16 %v2560, %v2559
        %v2744 = vpack.c.b16 %v2562, %v2561
        %v2745 = vpack.c.b16 %v2564, %v2563
        %v2746 = vpack.c.b16 %v2566, %v2565
        %v2747 = vpack.c.b16 %v2568, %v2567
        %v2748 = vpack.c.b16 %v2570, %v2569
        %v2749 = vpack.c.b16 %v2572, %v2571
        %v2750 = vpack.c.b16 %v2574, %v2573
        %v2751 = vpack.c.b16 %v2576, %v2575
        %v2752 = vpack.c.b16 %v2578, %v2577
        %v2753 = vpack.c.b16 %v2580, %v2579
        %v2754 = vpack.c.b16 %v2582, %v2581
        %v2755 = vpack.c.b16 %v2584, %v2583
        %v2756 = vpack.c.b16 %v2586, %v2585
        %v2757 = vpack.c.b16 %v2588, %v2587
        %v2758 = vpack.c.b16 %v2590, %v2589
        %v2759 = vpack.c.b16 %v2592, %v2591
        %v2760 = vpack.c.b16 %v2594, %v2593
        %v2761 = vpack.c.b16 %v2596, %v2595
        %v2762 = vpack.c.b16 %v2598, %v2597
        %v2763 = vpack.c.b16 %v2600, %v2599
        %v2764 = vpack.c.b16 %v2602, %v2601
        %v2765 = vpack.c.b16 %v2604, %v2603
        %v2766 = vpack.c.b16 %v2606, %v2605
        %v2767 = vpack.c.b16 %v2608, %v2607
        %v2768 = vpack.c.b16 %v2610, %v2609
        %v2769 = vpack.c.b16 %v2612, %v2611
        %v2770 = vpack.c.b16 %v2614, %v2613
        %v2771 = vpack.c.b16 %v2616, %v2615
        %v2772 = vpack.c.b16 %v2618, %v2617
        %v2773 = vpack.c.b16 %v2620, %v2619
        %v2774 = vpack.c.b16 %v2622, %v2621
        %v2775 = vpack.c.b16 %v2624, %v2623
        %v2776 = vpack.c.b16 %v2626, %v2625
        %v2777 = vpack.c.b16 %v2628, %v2627
        %v2778 = vpack.c.b16 %v2630, %v2629
        %v2779 = vpack.c.b16 %v2632, %v2631
        %v2780 = vpack.c.b16 %v2634, %v2633
        %v2781 = vpack.c.b16 %v2636, %v2635
        %v2782 = vpack.c.b16 %v2638, %v2637
        %v2783 = vpack.c.b16 %v2640, %v2639
        %v2784 = vpack.c.b16 %v2642, %v2641
        %v2785 = vpack.c.b16 %v2644, %v2643
        %v2786 = vpack.c.b16 %v2646, %v2645
        %v2787 = vpack.c.b16 %v2648, %v2647
        %v2788 = vpack.c.b16 %v2650, %v2649
        %v2789 = vpack.c.b16 %v2652, %v2651
        %v2790 = vpack.c.b16 %v2654, %v2653
        %v2791 = vpack.c.b16 %v2656, %v2655
        %v2792 = vpack.c.b16 %v2658, %v2657
        %v2793 = vpack.c.b16 %v2660, %v2659
        %v2794 = vpack.c.b16 %v2662, %v2661
        %v2795 = vpack.c.b16 %v2664, %v2663
        %v2796 = vpack.c.b16 %v2666, %v2665
        %v2797 = vpack.c.b16 %v2668, %v2667
        %v2798 = vpack.c.b16 %v2670, %v2669
        %2927 = vmatprep.subr.bf16.mxu0 0
        %2928 = vmatpush1.bf16.msra.mxu0 %v2671
        %2929 = vmatprep.subr.bf16.mxu0 0
        %2930 = vmatpush1.bf16.msra.mxu0 %v2672
        %2931 = vmatprep.subr.bf16.mxu0 0
        %2932 = vmatpush1.bf16.msra.mxu0 %v2673
        %2933 = vmatprep.subr.bf16.mxu0 0
        %2934 = vmatpush1.bf16.msra.mxu0 %v2674
        %2935 = vmatprep.subr.bf16.mxu0 0
        %2936 = vmatpush1.bf16.msra.mxu0 %v2675
        %2937 = vmatprep.subr.bf16.mxu0 0
        %2938 = vmatpush1.bf16.msra.mxu0 %v2676
        %2939 = vmatprep.subr.bf16.mxu0 0
        %2940 = vmatpush1.bf16.msra.mxu0 %v2677
        %2941 = vmatprep.subr.bf16.mxu0 0
        %2942 = vmatpush1.bf16.msra.mxu0 %v2678
        %2943 = vmatprep.subr.bf16.mxu0 0
        %2944 = vmatpush1.bf16.msra.mxu0 %v2679
        %2945 = vmatprep.subr.bf16.mxu0 0
        %2946 = vmatpush1.bf16.msra.mxu0 %v2680
        %2947 = vmatprep.subr.bf16.mxu0 0
        %2948 = vmatpush1.bf16.msra.mxu0 %v2681
        %2949 = vmatprep.subr.bf16.mxu0 0
        %2950 = vmatpush1.bf16.msra.mxu0 %v2682
        %2951 = vmatprep.subr.bf16.mxu0 0
        %2952 = vmatpush1.bf16.msra.mxu0 %v2683
        %2953 = vmatprep.subr.bf16.mxu0 0
        %2954 = vmatpush1.bf16.msra.mxu0 %v2684
        %2955 = vmatprep.subr.bf16.mxu0 0
        %2956 = vmatpush1.bf16.msra.mxu0 %v2685
        %2957 = vmatprep.subr.bf16.mxu0 0
        %2958 = vmatpush1.bf16.msra.mxu0 %v2686
        %2959 = vmatprep.mubr.bf16.mxu0 %v1881
        %2960 = vmatmul.mubr.bf16.gmra.mrb[0].mxu0 %v1880
        %v2961 = vpop.f32.mrb[0].mxu0
        %v2962 = vadd.f32 %v2157, %v2961
        %v2963 = vpop.f32.mrb[0].mxu0
        %v2964 = vpop.f32.mrb[0].mxu0
        %v2965 = vpop.f32.mrb[0].mxu0
        %2966 = vdwg.mxu0
        %2967 = vmatprep.subr.bf16.mxu0 0
        %2968 = vmatpush1.bf16.msra.mxu0 %v2687
        %2969 = vmatprep.subr.bf16.mxu0 0
        %2970 = vmatpush1.bf16.msra.mxu0 %v2688
        %2971 = vmatprep.subr.bf16.mxu0 0
        %2972 = vmatpush1.bf16.msra.mxu0 %v2689
        %2973 = vmatprep.subr.bf16.mxu0 0
        %2974 = vmatpush1.bf16.msra.mxu0 %v2690
        %2975 = vmatprep.subr.bf16.mxu0 0
        %2976 = vmatpush1.bf16.msra.mxu0 %v2691
        %2977 = vmatprep.subr.bf16.mxu0 0
        %2978 = vmatpush1.bf16.msra.mxu0 %v2692
        %2979 = vmatprep.subr.bf16.mxu0 0
        %2980 = vmatpush1.bf16.msra.mxu0 %v2693
        %2981 = vmatprep.subr.bf16.mxu0 0
        %2982 = vmatpush1.bf16.msra.mxu0 %v2694
        %2983 = vmatprep.subr.bf16.mxu0 0
        %2984 = vmatpush1.bf16.msra.mxu0 %v2695
        %2985 = vmatprep.subr.bf16.mxu0 0
        %2986 = vmatpush1.bf16.msra.mxu0 %v2696
        %2987 = vmatprep.subr.bf16.mxu0 0
        %2988 = vmatpush1.bf16.msra.mxu0 %v2697
        %2989 = vmatprep.subr.bf16.mxu0 0
        %2990 = vmatpush1.bf16.msra.mxu0 %v2698
        %2991 = vmatprep.subr.bf16.mxu0 0
        %2992 = vmatpush1.bf16.msra.mxu0 %v2699
        %2993 = vmatprep.subr.bf16.mxu0 0
        %2994 = vmatpush1.bf16.msra.mxu0 %v2700
        %2995 = vmatprep.subr.bf16.mxu0 0
        %2996 = vmatpush1.bf16.msra.mxu0 %v2701
        %2997 = vmatprep.subr.bf16.mxu0 0
        %2998 = vmatpush1.bf16.msra.mxu0 %v2702
        %2999 = vmatprep.mubr.bf16.mxu0 %v1883
        %3000 = vmatmul.mubr.bf16.gmra.mrb[0].mxu0 %v1882
        %v3001 = vpop.f32.mrb[0].mxu0
        %v3002 = vadd.f32 %v2962, %v3001
        %v3003 = vpop.f32.mrb[0].mxu0
        %v3004 = vpop.f32.mrb[0].mxu0
        %v3005 = vpop.f32.mrb[0].mxu0
        %3006 = vdwg.mxu0
        %3007 = vmatprep.subr.bf16.mxu0 0
        %3008 = vmatpush1.bf16.msra.mxu0 %v2703
        %3009 = vmatprep.subr.bf16.mxu0 0
        %3010 = vmatpush1.bf16.msra.mxu0 %v2704
        %3011 = vmatprep.subr.bf16.mxu0 0
        %3012 = vmatpush1.bf16.msra.mxu0 %v2705
        %3013 = vmatprep.subr.bf16.mxu0 0
        %3014 = vmatpush1.bf16.msra.mxu0 %v2706
        %3015 = vmatprep.subr.bf16.mxu0 0
        %3016 = vmatpush1.bf16.msra.mxu0 %v2707
        %3017 = vmatprep.subr.bf16.mxu0 0
        %3018 = vmatpush1.bf16.msra.mxu0 %v2708
        %3019 = vmatprep.subr.bf16.mxu0 0
        %3020 = vmatpush1.bf16.msra.mxu0 %v2709
        %3021 = vmatprep.subr.bf16.mxu0 0
        %3022 = vmatpush1.bf16.msra.mxu0 %v2710
        %3023 = vmatprep.subr.bf16.mxu0 0
        %3024 = vmatpush1.bf16.msra.mxu0 %v2711
        %3025 = vmatprep.subr.bf16.mxu0 0
        %3026 = vmatpush1.bf16.msra.mxu0 %v2712
        %3027 = vmatprep.subr.bf16.mxu0 0
        %3028 = vmatpush1.bf16.msra.mxu0 %v2713
        %3029 = vmatprep.subr.bf16.mxu0 0
        %3030 = vmatpush1.bf16.msra.mxu0 %v2714
        %3031 = vmatprep.subr.bf16.mxu0 0
        %3032 = vmatpush1.bf16.msra.mxu0 %v2715
        %3033 = vmatprep.subr.bf16.mxu0 0
        %3034 = vmatpush1.bf16.msra.mxu0 %v2716
        %3035 = vmatprep.subr.bf16.mxu0 0
        %3036 = vmatpush1.bf16.msra.mxu0 %v2717
        %3037 = vmatprep.subr.bf16.mxu0 0
        %3038 = vmatpush1.bf16.msra.mxu0 %v2718
        %3039 = vmatprep.mubr.bf16.mxu0 %v1885
        %3040 = vmatmul.mubr.bf16.gmra.mrb[0].mxu0 %v1884
        %v3041 = vpop.f32.mrb[0].mxu0
        %v3042 = vadd.f32 %v3002, %v3041
        %v3043 = vpop.f32.mrb[0].mxu0
        %v3044 = vpop.f32.mrb[0].mxu0
        %v3045 = vpop.f32.mrb[0].mxu0
        %3046 = vdwg.mxu0
        %3047 = vmatprep.subr.bf16.mxu0 0
        %3048 = vmatpush1.bf16.msra.mxu0 %v2719
        %3049 = vmatprep.subr.bf16.mxu0 0
        %3050 = vmatpush1.bf16.msra.mxu0 %v2720
        %3051 = vmatprep.subr.bf16.mxu0 0
        %3052 = vmatpush1.bf16.msra.mxu0 %v2721
        %3053 = vmatprep.subr.bf16.mxu0 0
        %3054 = vmatpush1.bf16.msra.mxu0 %v2722
        %3055 = vmatprep.subr.bf16.mxu0 0
        %3056 = vmatpush1.bf16.msra.mxu0 %v2723
        %3057 = vmatprep.subr.bf16.mxu0 0
        %3058 = vmatpush1.bf16.msra.mxu0 %v2724
        %3059 = vmatprep.subr.bf16.mxu0 0
        %3060 = vmatpush1.bf16.msra.mxu0 %v2725
        %3061 = vmatprep.subr.bf16.mxu0 0
        %3062 = vmatpush1.bf16.msra.mxu0 %v2726
        %3063 = vmatprep.subr.bf16.mxu0 0
        %3064 = vmatpush1.bf16.msra.mxu0 %v2727
        %3065 = vmatprep.subr.bf16.mxu0 0
        %3066 = vmatpush1.bf16.msra.mxu0 %v2728
        %3067 = vmatprep.subr.bf16.mxu0 0
        %3068 = vmatpush1.bf16.msra.mxu0 %v2729
        %3069 = vmatprep.subr.bf16.mxu0 0
        %3070 = vmatpush1.bf16.msra.mxu0 %v2730
        %3071 = vmatprep.subr.bf16.mxu0 0
        %3072 = vmatpush1.bf16.msra.mxu0 %v2731
        %3073 = vmatprep.subr.bf16.mxu0 0
        %3074 = vmatpush1.bf16.msra.mxu0 %v2732
        %3075 = vmatprep.subr.bf16.mxu0 0
        %3076 = vmatpush1.bf16.msra.mxu0 %v2733
        %3077 = vmatprep.subr.bf16.mxu0 0
        %3078 = vmatpush1.bf16.msra.mxu0 %v2734
        %3079 = vmatprep.mubr.bf16.mxu0 %v1887
        %3080 = vmatmul.mubr.bf16.gmra.mrb[0].mxu0 %v1886
        %v3081 = vpop.f32.mrb[0].mxu0
        %v3082 = vadd.f32 %v3042, %v3081
        %v3083 = vpop.f32.mrb[0].mxu0
        %v3084 = vpop.f32.mrb[0].mxu0
        %v3085 = vpop.f32.mrb[0].mxu0
        %3086 = vdwg.mxu0
        %3087 = vmatprep.subr.bf16.mxu0 0
        %3088 = vmatpush1.bf16.msra.mxu0 %v2735
        %3089 = vmatprep.subr.bf16.mxu0 0
        %3090 = vmatpush1.bf16.msra.mxu0 %v2736
        %3091 = vmatprep.subr.bf16.mxu0 0
        %3092 = vmatpush1.bf16.msra.mxu0 %v2737
        %3093 = vmatprep.subr.bf16.mxu0 0
        %3094 = vmatpush1.bf16.msra.mxu0 %v2738
        %3095 = vmatprep.subr.bf16.mxu0 0
        %3096 = vmatpush1.bf16.msra.mxu0 %v2739
        %3097 = vmatprep.subr.bf16.mxu0 0
        %3098 = vmatpush1.bf16.msra.mxu0 %v2740
        %3099 = vmatprep.subr.bf16.mxu0 0
        %3100 = vmatpush1.bf16.msra.mxu0 %v2741
        %3101 = vmatprep.subr.bf16.mxu0 0
        %3102 = vmatpush1.bf16.msra.mxu0 %v2742
        %3103 = vmatprep.subr.bf16.mxu0 0
        %3104 = vmatpush1.bf16.msra.mxu0 %v2743
        %3105 = vmatprep.subr.bf16.mxu0 0
        %3106 = vmatpush1.bf16.msra.mxu0 %v2744
        %3107 = vmatprep.subr.bf16.mxu0 0
        %3108 = vmatpush1.bf16.msra.mxu0 %v2745
        %3109 = vmatprep.subr.bf16.mxu0 0
        %3110 = vmatpush1.bf16.msra.mxu0 %v2746
        %3111 = vmatprep.subr.bf16.mxu0 0
        %3112 = vmatpush1.bf16.msra.mxu0 %v2747
        %3113 = vmatprep.subr.bf16.mxu0 0
        %3114 = vmatpush1.bf16.msra.mxu0 %v2748
        %3115 = vmatprep.subr.bf16.mxu0 0
        %3116 = vmatpush1.bf16.msra.mxu0 %v2749
        %3117 = vmatprep.subr.bf16.mxu0 0
        %3118 = vmatpush1.bf16.msra.mxu0 %v2750
        %3119 = vmatprep.mubr.bf16.mxu0 %v1889
        %3120 = vmatmul.mubr.bf16.gmra.mrb[0].mxu0 %v1888
        %v3121 = vpop.f32.mrb[0].mxu0
        %v3122 = vadd.f32 %v3082, %v3121
        %v3123 = vpop.f32.mrb[0].mxu0
        %v3124 = vpop.f32.mrb[0].mxu0
        %v3125 = vpop.f32.mrb[0].mxu0
        %3126 = vdwg.mxu0
        %3127 = vmatprep.subr.bf16.mxu0 0
        %3128 = vmatpush1.bf16.msra.mxu0 %v2751
        %3129 = vmatprep.subr.bf16.mxu0 0
        %3130 = vmatpush1.bf16.msra.mxu0 %v2752
        %3131 = vmatprep.subr.bf16.mxu0 0
        %3132 = vmatpush1.bf16.msra.mxu0 %v2753
        %3133 = vmatprep.subr.bf16.mxu0 0
        %3134 = vmatpush1.bf16.msra.mxu0 %v2754
        %3135 = vmatprep.subr.bf16.mxu0 0
        %3136 = vmatpush1.bf16.msra.mxu0 %v2755
        %3137 = vmatprep.subr.bf16.mxu0 0
        %3138 = vmatpush1.bf16.msra.mxu0 %v2756
        %3139 = vmatprep.subr.bf16.mxu0 0
        %3140 = vmatpush1.bf16.msra.mxu0 %v2757
        %3141 = vmatprep.subr.bf16.mxu0 0
        %3142 = vmatpush1.bf16.msra.mxu0 %v2758
        %3143 = vmatprep.subr.bf16.mxu0 0
        %3144 = vmatpush1.bf16.msra.mxu0 %v2759
        %3145 = vmatprep.subr.bf16.mxu0 0
        %3146 = vmatpush1.bf16.msra.mxu0 %v2760
        %3147 = vmatprep.subr.bf16.mxu0 0
        %3148 = vmatpush1.bf16.msra.mxu0 %v2761
        %3149 = vmatprep.subr.bf16.mxu0 0
        %3150 = vmatpush1.bf16.msra.mxu0 %v2762
        %3151 = vmatprep.subr.bf16.mxu0 0
        %3152 = vmatpush1.bf16.msra.mxu0 %v2763
        %3153 = vmatprep.subr.bf16.mxu0 0
        %3154 = vmatpush1.bf16.msra.mxu0 %v2764
        %3155 = vmatprep.subr.bf16.mxu0 0
        %3156 = vmatpush1.bf16.msra.mxu0 %v2765
        %3157 = vmatprep.subr.bf16.mxu0 0
        %3158 = vmatpush1.bf16.msra.mxu0 %v2766
        %3159 = vmatprep.mubr.bf16.mxu0 %v1891
        %3160 = vmatmul.mubr.bf16.gmra.mrb[0].mxu0 %v1890
        %v3161 = vpop.f32.mrb[0].mxu0
        %v3162 = vadd.f32 %v3122, %v3161
        %v3163 = vpop.f32.mrb[0].mxu0
        %v3164 = vpop.f32.mrb[0].mxu0
        %v3165 = vpop.f32.mrb[0].mxu0
        %3166 = vdwg.mxu0
        %3167 = vmatprep.subr.bf16.mxu0 0
        %3168 = vmatpush1.bf16.msra.mxu0 %v2767
        %3169 = vmatprep.subr.bf16.mxu0 0
        %3170 = vmatpush1.bf16.msra.mxu0 %v2768
        %3171 = vmatprep.subr.bf16.mxu0 0
        %3172 = vmatpush1.bf16.msra.mxu0 %v2769
        %3173 = vmatprep.subr.bf16.mxu0 0
        %3174 = vmatpush1.bf16.msra.mxu0 %v2770
        %3175 = vmatprep.subr.bf16.mxu0 0
        %3176 = vmatpush1.bf16.msra.mxu0 %v2771
        %3177 = vmatprep.subr.bf16.mxu0 0
        %3178 = vmatpush1.bf16.msra.mxu0 %v2772
        %3179 = vmatprep.subr.bf16.mxu0 0
        %3180 = vmatpush1.bf16.msra.mxu0 %v2773
        %3181 = vmatprep.subr.bf16.mxu0 0
        %3182 = vmatpush1.bf16.msra.mxu0 %v2774
        %3183 = vmatprep.subr.bf16.mxu0 0
        %3184 = vmatpush1.bf16.msra.mxu0 %v2775
        %3185 = vmatprep.subr.bf16.mxu0 0
        %3186 = vmatpush1.bf16.msra.mxu0 %v2776
        %3187 = vmatprep.subr.bf16.mxu0 0
        %3188 = vmatpush1.bf16.msra.mxu0 %v2777
        %3189 = vmatprep.subr.bf16.mxu0 0
        %3190 = vmatpush1.bf16.msra.mxu0 %v2778
        %3191 = vmatprep.subr.bf16.mxu0 0
        %3192 = vmatpush1.bf16.msra.mxu0 %v2779
        %3193 = vmatprep.subr.bf16.mxu0 0
        %3194 = vmatpush1.bf16.msra.mxu0 %v2780
        %3195 = vmatprep.subr.bf16.mxu0 0
        %3196 = vmatpush1.bf16.msra.mxu0 %v2781
        %3197 = vmatprep.subr.bf16.mxu0 0
        %3198 = vmatpush1.bf16.msra.mxu0 %v2782
        %3199 = vmatprep.mubr.bf16.mxu0 %v1893
        %3200 = vmatmul.mubr.bf16.gmra.mrb[0].mxu0 %v1892
        %v3201 = vpop.f32.mrb[0].mxu0
        %v3202 = vadd.f32 %v3162, %v3201
        %v3203 = vpop.f32.mrb[0].mxu0
        %v3204 = vpop.f32.mrb[0].mxu0
        %v3205 = vpop.f32.mrb[0].mxu0
        %3206 = vdwg.mxu0
        %3207 = vmatprep.subr.bf16.mxu0 0
        %3208 = vmatpush1.bf16.msra.mxu0 %v2783
        %3209 = vmatprep.subr.bf16.mxu0 0
        %3210 = vmatpush1.bf16.msra.mxu0 %v2784
        %3211 = vmatprep.subr.bf16.mxu0 0
        %3212 = vmatpush1.bf16.msra.mxu0 %v2785
        %3213 = vmatprep.subr.bf16.mxu0 0
        %3214 = vmatpush1.bf16.msra.mxu0 %v2786
        %3215 = vmatprep.subr.bf16.mxu0 0
        %3216 = vmatpush1.bf16.msra.mxu0 %v2787
        %3217 = vmatprep.subr.bf16.mxu0 0
        %3218 = vmatpush1.bf16.msra.mxu0 %v2788
        %3219 = vmatprep.subr.bf16.mxu0 0
        %3220 = vmatpush1.bf16.msra.mxu0 %v2789
        %3221 = vmatprep.subr.bf16.mxu0 0
        %3222 = vmatpush1.bf16.msra.mxu0 %v2790
        %3223 = vmatprep.subr.bf16.mxu0 0
        %3224 = vmatpush1.bf16.msra.mxu0 %v2791
        %3225 = vmatprep.subr.bf16.mxu0 0
        %3226 = vmatpush1.bf16.msra.mxu0 %v2792
        %3227 = vmatprep.subr.bf16.mxu0 0
        %3228 = vmatpush1.bf16.msra.mxu0 %v2793
        %3229 = vmatprep.subr.bf16.mxu0 0
        %3230 = vmatpush1.bf16.msra.mxu0 %v2794
        %3231 = vmatprep.subr.bf16.mxu0 0
        %3232 = vmatpush1.bf16.msra.mxu0 %v2795
        %3233 = vmatprep.subr.bf16.mxu0 0
        %3234 = vmatpush1.bf16.msra.mxu0 %v2796
        %3235 = vmatprep.subr.bf16.mxu0 0
        %3236 = vmatpush1.bf16.msra.mxu0 %v2797
        %3237 = vmatprep.subr.bf16.mxu0 0
        %3238 = vmatpush1.bf16.msra.mxu0 %v2798
        %3239 = vmatprep.mubr.bf16.mxu0 %v1895
        %3240 = vmatmul.mubr.bf16.gmra.mrb[0].mxu0 %v1894
        %v3241 = vpop.f32.mrb[0].mxu0
        %v3242 = vadd.f32 %v3202, %v3241
        %v3243 = vpop.f32.mrb[0].mxu0
        %v3244 = vpop.f32.mrb[0].mxu0
        %v3245 = vpop.f32.mrb[0].mxu0
        %3246 = vdwg.mxu0
        %v3247 = vadd.f32 %v1255, %v3242
        %v3248 = vld [vmem:[%s18] sm:$0x1]
        %v3249 = vld [vmem:[%s19] sm:$0x1]
        %v3250 = vsel %vm871, %v3247, 0.0
        %3251 = vadd.xlane.f32.xlu0 %v3250
        %v3252 = vpop.xlane.xlu0 %3251
        %v3253 = vmul.f32 %v3252, %v1231
        %v3254 = vsub.f32 %v3247, %v3253
        %v3255 = vmul.f32 %v3254, %v3254
        %v3256 = vsel %vm871, %v3255, 0.0
        %3257 = vadd.xlane.f32.xlu0 %v3256
        %v3258 = vpop.xlane.xlu0 %3257
        %v3259 = vmul.f32 %v3258, %v1231
        %v3260 = vadd.f32 %v3259, 1e-05
        %v3261 = vrsqrt.pop %v3260
        %v3262 = vmul.f32 %v3254, %v3261
        %v3264 = vlaneseq
        %v3265 = vshrl.u32 %v3264, 7
        %v3266 = vsub.s32 0, %v3265
        %v3267 = vrot.slane %v3248, %v3266
        %v3269 = vmul.f32 %v3262, %v3267
        %v3271 = vlaneseq
        %v3272 = vshrl.u32 %v3271, 7
        %v3273 = vsub.s32 0, %v3272
        %v3274 = vrot.slane %v3249, %v3273
        %v3276 = vadd.f32 %v3269, %v3274
        %v3277 = vld [vmem:[%s20] sm:$0x1]
        %v3278 = vld [vmem:[%s21] sm:$0x1]
        %v3279 = vsel %vm871, %v3276, 0.0
        %3280 = vadd.xlane.f32.xlu0 %v3279
        %v3281 = vpop.xlane.xlu0 %3280
        %v3282 = vmul.f32 %v3281, %v1231
        %v3283 = vsub.f32 %v3276, %v3282
        %v3284 = vmul.f32 %v3283, %v3283
        %v3285 = vsel %vm871, %v3284, 0.0
        %3286 = vadd.xlane.f32.xlu0 %v3285
        %v3287 = vpop.xlane.xlu0 %3286
        %v3288 = vmul.f32 %v3287, %v1231
        %v3289 = vadd.f32 %v3288, 1e-05
        %v3290 = vrsqrt.pop %v3289
        %v3291 = vmul.f32 %v3283, %v3290
        %v3293 = vlaneseq
        %v3294 = vshrl.u32 %v3293, 7
        %v3295 = vsub.s32 0, %v3294
        %v3296 = vrot.slane %v3277, %v3295
        %v3298 = vmul.f32 %v3291, %v3296
        %v3300 = vlaneseq
        %v3301 = vshrl.u32 %v3300, 7
        %v3302 = vsub.s32 0, %v3301
        %v3303 = vrot.slane %v3278, %v3302
        %v3305 = vadd.f32 %v3298, %v3303
        %v3306 = vld [vmem:[%s22] sm:$0xff]
        %v3307 = vld [vmem:[%s22 + $0x8] sm:$0xff]
        %v3308 = vld [vmem:[%s22 + $0x10] sm:$0xff]
        %v3309 = vld [vmem:[%s22 + $0x18] sm:$0xff]
        %v3310 = vld [vmem:[%s23] sm:$0x1]
        %v3312 = vrot.slane %v842, 7
        %v3313 = vsel %vm871, %v3312, 0
        %3315 = vmatprep.subr.mxu0 0.0
        %3316 = vmatpush1.msra.mxu0 %v3306
        %3317 = vmatprep.subr.mxu0 0.0
        %3318 = vmatpush1.msra.mxu0 %v3307
        %3319 = vmatprep.subr.mxu0 0.0
        %3320 = vmatpush1.msra.mxu0 %v3308
        %3321 = vmatprep.subr.mxu0 0.0
        %3322 = vmatpush1.msra.mxu0 %v3309
        %3323 = vmatprep.subr.mxu0 0.0
        %3324 = vmatpush1.msra.mxu0 0.0
        %3325 = vmatprep.subr.mxu0 0.0
        %3326 = vmatpush1.msra.mxu0 0.0
        %3327 = vmatprep.subr.mxu0 0.0
        %3328 = vmatpush1.msra.mxu0 0.0
        %3329 = vmatprep.subr.mxu0 0.0
        %3330 = vmatpush1.msra.mxu0 0.0
        %3331 = vmatprep.subr.mxu0 0.0
        %3332 = vmatpush1.msra.mxu0 0.0
        %3333 = vmatprep.subr.mxu0 0.0
        %3334 = vmatpush1.msra.mxu0 0.0
        %3335 = vmatprep.subr.mxu0 0.0
        %3336 = vmatpush1.msra.mxu0 0.0
        %3337 = vmatprep.subr.mxu0 0.0
        %3338 = vmatpush1.msra.mxu0 0.0
        %3339 = vmatprep.subr.mxu0 0.0
        %3340 = vmatpush1.msra.mxu0 0.0
        %3341 = vmatprep.subr.mxu0 0.0
        %3342 = vmatpush1.msra.mxu0 0.0
        %3343 = vmatprep.subr.mxu0 0.0
        %3344 = vmatpush1.msra.mxu0 0.0
        %3345 = vmatprep.subr.mxu0 0.0
        %3346 = vmatpush1.msra.mxu0 0.0
        %3347 = vmatprep.subr.mxu0 0.0
        %3348 = vmatpush1.msra.mxu0 0.0
        %3349 = vmatprep.subr.mxu0 0.0
        %3350 = vmatpush1.msra.mxu0 0.0
        %3351 = vmatprep.subr.mxu0 0.0
        %3352 = vmatpush1.msra.mxu0 0.0
        %3353 = vmatprep.subr.mxu0 0.0
        %3354 = vmatpush1.msra.mxu0 0.0
        %3355 = vmatprep.subr.mxu0 0.0
        %3356 = vmatpush1.msra.mxu0 0.0
        %3357 = vmatprep.subr.mxu0 0.0
        %3358 = vmatpush1.msra.mxu0 0.0
        %3359 = vmatprep.subr.mxu0 0.0
        %3360 = vmatpush1.msra.mxu0 0.0
        %3361 = vmatprep.subr.mxu0 0.0
        %3362 = vmatpush1.msra.mxu0 0.0
        %3363 = vmatprep.subr.mxu0 0.0
        %3364 = vmatpush1.msra.mxu0 0.0
        %3365 = vmatprep.subr.mxu0 0.0
        %3366 = vmatpush1.msra.mxu0 0.0
        %3367 = vmatprep.subr.mxu0 0.0
        %3368 = vmatpush1.msra.mxu0 0.0
        %3369 = vmatprep.subr.mxu0 0.0
        %3370 = vmatpush1.msra.mxu0 0.0
        %3371 = vmatprep.subr.mxu0 0.0
        %3372 = vmatpush1.msra.mxu0 0.0
        %3373 = vmatprep.subr.mxu0 0.0
        %3374 = vmatpush1.msra.mxu0 0.0
        %3375 = vmatprep.subr.mxu0 0.0
        %3376 = vmatpush1.msra.mxu0 0.0
        %3377 = vmatprep.subr.mxu0 0.0
        %3378 = vmatpush1.msra.mxu0 0.0
        %3379 = vmatprep.mubr.f32.mxu0 0.0
        %3380 = vmatmul.mubr.f32.gmra.mrb[0].mxu0 %v3313
        %v3381 = vpop.f32.mrb[0].mxu0
        %v3382 = vadd.f32 %v3310, %v3381
        %v3383 = vpop.f32.mrb[0].mxu0
        %3384 = vdwg.mxu0
        %v3385 = vmul.f32 %v3382, 0.17677669
        %v3386 = vld [vmem:[%s24] sm:$0xff]
        %v3387 = vld [vmem:[%s24 + $0x8] sm:$0xff]
        %v3388 = vld [vmem:[%s24 + $0x10] sm:$0xff]
        %v3389 = vld [vmem:[%s24 + $0x18] sm:$0xff]
        %v3390 = vld [vmem:[%s25] sm:$0x1]
        %v3392 = vlaneseq
        %v3393 = vshrl.u32 %v3392, 7
        %v3394 = vsub.s32 0, %v3393
        %v3395 = vrot.slane %v3390, %v3394
        %v3398 = vsel %vm871, %v3305, 0
        %3400 = vmatprep.subr.mxu0 0.0
        %3401 = vmatpush1.msra.mxu0 %v3386
        %3402 = vmatprep.subr.mxu0 0.0
        %3403 = vmatpush1.msra.mxu0 %v3387
        %3404 = vmatprep.subr.mxu0 0.0
        %3405 = vmatpush1.msra.mxu0 %v3388
        %3406 = vmatprep.subr.mxu0 0.0
        %3407 = vmatpush1.msra.mxu0 %v3389
        %3408 = vmatprep.subr.mxu0 0.0
        %3409 = vmatpush1.msra.mxu0 0.0
        %3410 = vmatprep.subr.mxu0 0.0
        %3411 = vmatpush1.msra.mxu0 0.0
        %3412 = vmatprep.subr.mxu0 0.0
        %3413 = vmatpush1.msra.mxu0 0.0
        %3414 = vmatprep.subr.mxu0 0.0
        %3415 = vmatpush1.msra.mxu0 0.0
        %3416 = vmatprep.subr.mxu0 0.0
        %3417 = vmatpush1.msra.mxu0 0.0
        %3418 = vmatprep.subr.mxu0 0.0
        %3419 = vmatpush1.msra.mxu0 0.0
        %3420 = vmatprep.subr.mxu0 0.0
        %3421 = vmatpush1.msra.mxu0 0.0
        %3422 = vmatprep.subr.mxu0 0.0
        %3423 = vmatpush1.msra.mxu0 0.0
        %3424 = vmatprep.subr.mxu0 0.0
        %3425 = vmatpush1.msra.mxu0 0.0
        %3426 = vmatprep.subr.mxu0 0.0
        %3427 = vmatpush1.msra.mxu0 0.0
        %3428 = vmatprep.subr.mxu0 0.0
        %3429 = vmatpush1.msra.mxu0 0.0
        %3430 = vmatprep.subr.mxu0 0.0
        %3431 = vmatpush1.msra.mxu0 0.0
        %3432 = vmatprep.subr.mxu0 0.0
        %3433 = vmatpush1.msra.mxu0 0.0
        %3434 = vmatprep.subr.mxu0 0.0
        %3435 = vmatpush1.msra.mxu0 0.0
        %3436 = vmatprep.subr.mxu0 0.0
        %3437 = vmatpush1.msra.mxu0 0.0
        %3438 = vmatprep.subr.mxu0 0.0
        %3439 = vmatpush1.msra.mxu0 0.0
        %3440 = vmatprep.subr.mxu0 0.0
        %3441 = vmatpush1.msra.mxu0 0.0
        %3442 = vmatprep.subr.mxu0 0.0
        %3443 = vmatpush1.msra.mxu0 0.0
        %3444 = vmatprep.subr.mxu0 0.0
        %3445 = vmatpush1.msra.mxu0 0.0
        %3446 = vmatprep.subr.mxu0 0.0
        %3447 = vmatpush1.msra.mxu0 0.0
        %3448 = vmatprep.subr.mxu0 0.0
        %3449 = vmatpush1.msra.mxu0 0.0
        %3450 = vmatprep.subr.mxu0 0.0
        %3451 = vmatpush1.msra.mxu0 0.0
        %3452 = vmatprep.subr.mxu0 0.0
        %3453 = vmatpush1.msra.mxu0 0.0
        %3454 = vmatprep.subr.mxu0 0.0
        %3455 = vmatpush1.msra.mxu0 0.0
        %3456 = vmatprep.subr.mxu0 0.0
        %3457 = vmatpush1.msra.mxu0 0.0
        %3458 = vmatprep.subr.mxu0 0.0
        %3459 = vmatpush1.msra.mxu0 0.0
        %3460 = vmatprep.subr.mxu0 0.0
        %3461 = vmatpush1.msra.mxu0 0.0
        %3462 = vmatprep.subr.mxu0 0.0
        %3463 = vmatpush1.msra.mxu0 0.0
        %3464 = vmatprep.mubr.f32.mxu0 0.0
        %3465 = vmatmul.mubr.f32.gmra.mrb[0].mxu0 %v3398
        %v3466 = vpop.f32.mrb[0].mxu0
        %v3467 = vadd.f32 %v3395, %v3466
        %v3468 = vpop.f32.mrb[0].mxu0
        %3469 = vdwg.mxu0
        %v3470 = vlaneseq
        %v3471 = vshrl.u32 %v3470, 7
        %v3472 = vsub.s32 0, %v3471
        %v3473 = vrot.slane %v3385, %v3472
        %v3474 = vmul.f32 %v3473, %v3467
        %v3475 = vsel %vm871, %v3474, 0.0
        %3476 = vadd.xlane.f32.xlu0 %v3475
        %v3477 = vpop.xlane.xlu0 %3476
        %v3479 = vlaneseq
        %v3480 = vshrl.u32 %v3479, 7
        %v3481 = vsub.s32 0, %v3480
        %v3482 = vrot.slane %v3477, %v3481
        %v3483 = vlaneseq
        %v3484 = vshrl.u32 %v3483, 7
        %v3485 = vsub.s32 1, %v3484
        %v3486 = vrot.slane %v3477, %v3485
        %v3487 = vlaneseq
        %v3488 = vshrl.u32 %v3487, 7
        %v3489 = vsub.s32 2, %v3488
        %v3490 = vrot.slane %v3477, %v3489
        %v3491 = vlaneseq
        %v3492 = vshrl.u32 %v3491, 7
        %v3493 = vsub.s32 3, %v3492
        %v3494 = vrot.slane %v3477, %v3493
        %v3495 = vlaneseq
        %v3496 = vshrl.u32 %v3495, 7
        %v3497 = vsub.s32 4, %v3496
        %v3498 = vrot.slane %v3477, %v3497
        %v3499 = vlaneseq
        %v3500 = vshrl.u32 %v3499, 7
        %v3501 = vsub.s32 5, %v3500
        %v3502 = vrot.slane %v3477, %v3501
        %v3503 = vlaneseq
        %v3504 = vshrl.u32 %v3503, 7
        %v3505 = vsub.s32 6, %v3504
        %v3506 = vrot.slane %v3477, %v3505
        %v3507 = vlaneseq
        %v3508 = vshrl.u32 %v3507, 7
        %v3509 = vsub.s32 7, %v3508
        %v3510 = vrot.slane %v3477, %v3509
        %v3511 = vcombine.low %v3482, %v3486
        %v3512 = vcombine.low %v3490, %v3494
        %v3513 = vcombine.low %v3498, %v3502
        %v3514 = vcombine.low %v3506, %v3510
        %v3516 = vunpack.c.l.s4 1966171168
        %v3517 = vunpack.c.0.s8 %v3516
        %v3518 = vlaneseq
        %v3519 = vshrl.u32 %v3518, 7
        %v3520 = vsub.s32 %v3517, %v3519
        %v3521 = vrot.slane %v3511, %v3520
        %v3523 = vunpack.c.l.s4 1966171168
        %v3524 = vunpack.c.0.s8 %v3523
        %v3525 = vlaneseq
        %v3526 = vshrl.u32 %v3525, 7
        %v3527 = vsub.s32 %v3524, %v3526
        %v3528 = vrot.slane %v3512, %v3527
        %v3530 = vunpack.c.l.s4 1966171168
        %v3531 = vunpack.c.0.s8 %v3530
        %v3532 = vlaneseq
        %v3533 = vshrl.u32 %v3532, 7
        %v3534 = vsub.s32 %v3531, %v3533
        %v3535 = vrot.slane %v3513, %v3534
        %v3537 = vunpack.c.l.s4 1966171168
        %v3538 = vunpack.c.0.s8 %v3537
        %v3539 = vlaneseq
        %v3540 = vshrl.u32 %v3539, 7
        %v3541 = vsub.s32 %v3538, %v3540
        %v3542 = vrot.slane %v3514, %v3541
        %v3543 = vcombine.low %v3521, %v3528
        %v3544 = vcombine.low %v3535, %v3542
        %v3546 = vunpack.c.l.s4 1966171168
        %v3547 = vunpack.c.0.s8 %v3546
        %v3548 = vlaneseq
        %v3549 = vshrl.u32 %v3548, 7
        %v3550 = vsub.s32 %v3547, %v3549
        %v3551 = vrot.slane %v3543, %v3550
        %v3553 = vunpack.c.l.s4 1966171168
        %v3554 = vunpack.c.0.s8 %v3553
        %v3555 = vlaneseq
        %v3556 = vshrl.u32 %v3555, 7
        %v3557 = vsub.s32 %v3554, %v3556
        %v3558 = vrot.slane %v3544, %v3557
        %v3559 = vcombine.low %v3551, %v3558
        %3560 = vset.pattern.permute.xlu0 0
        %3561 = vperm.xlu0 %3560, %v3559
        %v3562 = vpop.permute.xlu0 %3561
        %v3563 = vlaneseq
        %v3564 = vand.u32 %v3563, 127
        %v3565 = vlaneseq
        %v3566 = vshrl.u32 %v3565, 7
        %v3567 = vsub.s32 %v3564, %v3566
        %v3568 = vrot.slane %v3562, %v3567
        %v3570 = vunpack.c.l.s4 1966171168
        %v3571 = vunpack.c.0.s8 %v3570
        %v3572 = vlaneseq
        %v3573 = vshrl.u32 %v3572, 7
        %v3574 = vsub.s32 %v3571, %v3573
        %v3575 = vrot.slane %v3568, %v3574
        %v3577 = vunpack.c.l.s4 1966171168
        %v3578 = vunpack.c.0.s8 %v3577
        %v3579 = vlaneseq
        %v3580 = vshrl.u32 %v3579, 7
        %v3581 = vsub.s32 %v3578, %v3580
        %v3582 = vrot.slane %v3575, %v3581
        %v3584 = vsel %vm845, -1e+30, %v3582
        %vm3585 = vcmask 57344
        %v3586 = vsel %vm3585, %v3584, -inf
        %3587 = vmax.xlane.f32.xlu0 %v3586
        %v3588 = vpop.xlane.xlu0 %3587
        %v3589 = vsub.f32 %v3584, %v3588
        %v3590 = vmul.f32 %v3589, 1.442695
        %v3591 = vpow.pop %v3590
        %v3592 = vsel %vm3585, %v3591, 0.0
        %3593 = vadd.xlane.f32.xlu0 %v3592
        %v3594 = vpop.xlane.xlu0 %3593
        %v3595 = vrcp.pop %v3594
        %v3596 = vmul.f32 %v3591, %v3595
        %v3597 = vsub.f32 1.0, %v844
        %v3598 = vmul.f32 %v3596, %v3597
        %v3599 = vld [vmem:[%s840] sm:$0x1]
        %v3600 = vmul.f32 %v3598, %v3599
        %v3601 = vsel %vm845, -1e+30, %v3600
        %v3602 = vsel %vm3585, %v3601, -inf
        %3603 = vmax.xlane.f32.xlu0 %v3602
        %v3604 = vpop.xlane.xlu0 %3603
        %v3605 = vsub.f32 %v3601, %v3604
        %v3606 = vmul.f32 %v3605, 1.442695
        %v3607 = vpow.pop %v3606
        %v3608 = vsel %vm3585, %v3607, 0.0
        %3609 = vadd.xlane.f32.xlu0 %v3608
        %v3610 = vpop.xlane.xlu0 %3609
        %v3611 = vrcp.pop %v3610
        %v3612 = vmul.f32 %v3607, %v3611
        %v3613 = vlaneseq
        %v3614 = vshrl.u32 %v3613, 7
        %v3615 = vsub.s32 0, %v3614
        %v3616 = vrot.slane %v3612, %v3615
        %3618 = vbcast.lane.b32.xlu0 %v3616, 256
        %v3619 = vpop.permute.xlu0 %3618
        %v3620 = vmul.f32 %v3619, %v842
        %v3621 = vsel %vm871, %v3620, 0.0
        %v3622 = vrot.slane %v3621, 4
        %v3623 = vadd.f32 %v3621, %v3622
        %v3624 = vrot.slane %v3623, 2
        %v3625 = vadd.f32 %v3623, %v3624
        %v3626 = vrot.slane %v3625, 1
        %v3627 = vadd.f32 %v3625, %v3626
        %v3628 = vpack.c.bf16 %v3627, %v3627
        %v3629 = vld [vmem:[%s26] sm:$0xf]
        %v3630 = vld [vmem:[%s26 + $0x4] sm:$0xf]
        %v3631 = vld [vmem:[%s26 + $0x8] sm:$0xf]
        %v3632 = vld [vmem:[%s26 + $0xc] sm:$0xf]
        %v3637 = vunpack.c.l.b16 %v3629
        %v3638 = vunpack.c.l.b16 %v3630
        %v3639 = vunpack.c.l.b16 %v3631
        %v3640 = vunpack.c.l.b16 %v3632
        %v3641 = vpack.c.b16 %v3638, %v3637
        %v3642 = vpack.c.b16 %v3640, %v3639
        %v3646 = vsel %vm871, %v3628, 0
        %3648 = vmatprep.subr.bf16.mxu0 0
        %3649 = vmatpush1.bf16.msra.mxu0 %v3641
        %3650 = vmatprep.subr.bf16.mxu0 0
        %3651 = vmatpush1.bf16.msra.mxu0 %v3642
        %3652 = vmatprep.subr.bf16.mxu0 0
        %3653 = vmatpush1.bf16.msra.mxu0 0
        %3654 = vmatprep.subr.bf16.mxu0 0
        %3655 = vmatpush1.bf16.msra.mxu0 0
        %3656 = vmatprep.subr.bf16.mxu0 0
        %3657 = vmatpush1.bf16.msra.mxu0 0
        %3658 = vmatprep.subr.bf16.mxu0 0
        %3659 = vmatpush1.bf16.msra.mxu0 0
        %3660 = vmatprep.subr.bf16.mxu0 0
        %3661 = vmatpush1.bf16.msra.mxu0 0
        %3662 = vmatprep.subr.bf16.mxu0 0
        %3663 = vmatpush1.bf16.msra.mxu0 0
        %3664 = vmatprep.subr.bf16.mxu0 0
        %3665 = vmatpush1.bf16.msra.mxu0 0
        %3666 = vmatprep.subr.bf16.mxu0 0
        %3667 = vmatpush1.bf16.msra.mxu0 0
        %3668 = vmatprep.subr.bf16.mxu0 0
        %3669 = vmatpush1.bf16.msra.mxu0 0
        %3670 = vmatprep.subr.bf16.mxu0 0
        %3671 = vmatpush1.bf16.msra.mxu0 0
        %3672 = vmatprep.subr.bf16.mxu0 0
        %3673 = vmatpush1.bf16.msra.mxu0 0
        %3674 = vmatprep.subr.bf16.mxu0 0
        %3675 = vmatpush1.bf16.msra.mxu0 0
        %3676 = vmatprep.subr.bf16.mxu0 0
        %3677 = vmatpush1.bf16.msra.mxu0 0
        %3678 = vmatprep.subr.bf16.mxu0 0
        %3679 = vmatpush1.bf16.msra.mxu0 0
        %3680 = vmatprep.mubr.bf16.mxu0 0
        %3681 = vmatmul.mubr.bf16.gmra.mrb[0].mxu0 %v3646
        %v3682 = vpop.f32.mrb[0].mxu0
        %v3683 = vadd.f32 0.0, %v3682
        %v3684 = vpop.f32.mrb[0].mxu0
        %v3685 = vpop.f32.mrb[0].mxu0
        %v3686 = vpop.f32.mrb[0].mxu0
        %3687 = vdwg.mxu0
        %vm3688 = vcmask 253952
        %3689 = vst.msk [vmem:[%s830] sm:$0x1] %vm3688, %v3683
        %s3690 = sand.u32 %s631, 1
        %s3691 = scalar_lea.sflag [#allocation3], %s3690
        %s3692 = sand.u32 %s631, 1
        %s3693 = scalar_lea.vmem [#allocation2], %s3692
        // Predicated region
        $region129: #{tpu_custom_call.1} parent=127 // pred_check
          %p3694 = pneg %p641
        $region130: #{tpu_custom_call.1} parent=127 // pred_check_branch
          %3696 = sbr.rel (%p3694) target = $region132
        $region131: #{tpu_custom_call.1} parent=127 // pred_region
          %s3698 = ssub.s32 16, 16
          %3699 = vsyncadd %s3691, %s3698
          %s3700 = smul.addr %s41, 16
          %s3701 = scalar_lea.hbm %s27, %s3700
          %s3703 = sshll.u32 %s3693, 4
          %s3704 = int_to_ptr.vmem [resolvable:$true] %s3703
          %3706 = dma.vmem_to_hbm [thread:$0]  %s3704, 16, %s3701, %s3691
        $region132: #{tpu_custom_call.1} parent=127 // pred_fallthru
          _
      $region128: #{tpu_custom_call.1} parent=5 // pred_fallthru
        _
      %p3707 = scmp.le.s32.totalorder 2, %s36
      // Predicated region
      $region133: #{tpu_custom_call.1} parent=5 // pred_check
        %p3708 = pneg %p3707
      $region134: #{tpu_custom_call.1} parent=5 // pred_check_branch
        %3710 = sbr.rel (%p3708) target = $region136
      $region135: #{tpu_custom_call.1} parent=5 // pred_region
        %s3711 = ssub.s32 %s36, 2
        // Predicated region
        $region137: #{tpu_custom_call.1} parent=135 // pred_check
          %p3712 = pneg %p647
        $region138: #{tpu_custom_call.1} parent=135 // pred_check_branch
          %3714 = sbr.rel (%p3712) target = $region140
        $region139: #{tpu_custom_call.1} parent=135 // pred_region
          %s3715 = sand.u32 %s632, 1
          %s3716 = scalar_lea.sflag [#allocation3], %s3715
          %s3717 = sand.u32 %s632, 1
          %s3718 = scalar_lea.vmem [#allocation2], %s3717
          %3719 = dma.done %s3716, 16
        $region140: #{tpu_custom_call.1} parent=135 // pred_fallthru
          _
      $region136: #{tpu_custom_call.1} parent=5 // pred_fallthru
        _
    $region6: #{tpu_custom_call.1} parent=1 // loop_footer
      %s40 = sadd.s32 1, %s36
    $region7: #{tpu_custom_call.1} parent=1 // loop_footer_branch
      %35 = sbr.rel target = $region3
    $region8: #{tpu_custom_call.1} parent=1 // loop_exit
      _
    %3720 = vsyncpa [#allocation3], 1
    %s3721 = scalar_lea.sflag [#allocation3], 1
    %3722 = vsyncpa %s3721, 1

</llo_original>
